<compile_context>
chip_gen: v7x
topology: tpu7x:2x2x1
jax: 0.10.0
libtpu: 0.0.40
codegen_flags: <defaults>
</compile_context>

<pallas_src>
import functools

import jax
import jax.numpy as jnp
from jax import lax
from jax.experimental import pallas as pl
from jax.experimental.pallas import tpu as pltpu

LANES = 128  # TPU lane width


def _round_up(x, m):
    return ((x + m - 1) // m) * m


def _convbn_kernel(x_ref, w_ref, scale_ref, bias_ref, o_ref, *, KH, KW, stride, tile_h):
    # x_ref:     (1, Hp, Wp, Cin)       whole padded NHWC image (bf16, resident per n)
    # w_ref:     (KH*KW, Cin, CT)       per-tap weights, bf16 (resident across h sweep)
    # scale_ref: (1, CT)                folded BN scale = gamma / sqrt(var + eps)  (f32)
    # bias_ref:  (1, CT)                folded BN bias  = beta - mean * scale      (f32)
    # o_ref:     (1, tile_h, Wo_p, CT)  bf16 output tile
    cin = x_ref.shape[-1]
    wo = o_ref.shape[2]
    ct = o_ref.shape[-1]
    th = tile_h

    hi = pl.program_id(2)  # row-tile axis is innermost
    row0 = pl.multiple_of(hi * (th * stride), th * stride)
    win = (th - 1) * stride + KH
    xw = x_ref[0, pl.ds(row0, win), :, :]               # (win, Wp, Cin) bf16

    # KH*KW accumulated MXU matmuls, f32 accumulation (no lane-axis im2col concat).
    acc = jnp.zeros((th * wo, ct), jnp.float32)
    for dy in range(KH):
        for dx in range(KW):
            if stride == 1:
                tap = xw[dy:dy + th, dx:dx + wo, :]     # contiguous static slice
            else:
                # TODO(synk): stride>1 lowers to a strided gather; stride-2 layers
                #             should pre-arrange the layout instead.
                tap = lax.slice(
                    xw, (dy, dx, 0),
                    (dy + (th - 1) * stride + 1, dx + (wo - 1) * stride + 1, cin),
                    (stride, stride, 1))
            # (th, wo, cin) -> (th*wo, cin): free view (wrapper pads Wo to a sublane
            # multiple so this merge does not relayout).
            tap2 = tap.reshape(th * wo, cin)
            acc = acc + jnp.dot(tap2, w_ref[dy * KW + dx],
                                preferred_element_type=jnp.float32)

    # Fused inference BatchNorm + ReLU6 epilogue in f32, stored as bf16.
    y = acc * scale_ref[...] + bias_ref[...]
    y = jnp.minimum(jnp.maximum(y, 0.0), 6.0)
    o_ref[0] = y.reshape(th, wo, ct).astype(o_ref.dtype)


def conv_bn_relu6(x_nchw, w_oihw, gamma, beta, run_mean, run_var, *,
                  stride=1, eps=1e-5, row_tile_m=512, cout_tile=LANES):
    """Fused Conv2d(bias=False) + BatchNorm2d(eval) + ReLU6. NCHW in / NCHW(bf16) out.

    cout_tile: Cout lane-tile width; 128 is best on v5e, 256 is better on v6e/v7x
               when Cout >= 256 (2x256x256 MXU).
    """
    N, Cin, H, W = x_nchw.shape
    Cout, Cin_w, KH, KW = w_oihw.shape
    assert Cin_w == Cin, "groups=1 only"  # TODO(synk): depthwise (groups>1) unsupported
    pad = (KH - 1) // 2
    Ho = (H + 2 * pad - KH) // stride + 1
    Wo = (W + 2 * pad - KW) // stride + 1

    # Pad output width to a sublane multiple (free in-kernel reshape, aligned stores).
    Wo_p = _round_up(Wo, 8)

    # Row tile: M = tile_h * Wo_p targeted at ~row_tile_m; ragged last tile allowed.
    tile_h = max(1, min(Ho, row_tile_m // Wo_p))
    n_ht = pl.cdiv(Ho, tile_h)
    Ho_pad = n_ht * tile_h

    # Cout tiling: no lane padding when Cout <= cout_tile (masked store beats writing
    # up to 16x zero-padded output); otherwise tile by cout_tile.
    ct = Cout if Cout <= cout_tile else cout_tile
    cout_pad = _round_up(Cout, ct)
    n_ct = cout_pad // ct

    # Padded input must cover the last (ragged) row tile and Wo_p columns.
    Hp = max(H + 2 * pad, (Ho_pad - 1) * stride + KH)
    Wp = max(W + 2 * pad, (Wo_p - 1) * stride + KW)

    # --- wrapper glue: layout conversion, padding, BN folding (plain JAX) ---
    x_nhwc = jnp.transpose(x_nchw, (0, 2, 3, 1))
    x_pad = jnp.pad(
        x_nhwc, ((0, 0), (pad, Hp - H - pad), (pad, Wp - W - pad), (0, 0))
    ).astype(jnp.bfloat16)

    # Weights: (Cout,Cin,KH,KW) -> per-tap (KH*KW, Cin, cout_pad), bf16.
    w3 = jnp.transpose(w_oihw, (2, 3, 1, 0)).reshape(KH * KW, Cin, Cout)
    w3 = jnp.pad(w3, ((0, 0), (0, 0), (0, cout_pad - Cout))).astype(jnp.bfloat16)

    scale = (gamma / jnp.sqrt(run_var + eps)).astype(jnp.float32)
    bias = (beta - run_mean * scale).astype(jnp.float32)
    scale = jnp.pad(scale, (0, cout_pad - Cout)).reshape(1, cout_pad)
    bias = jnp.pad(bias, (0, cout_pad - Cout)).reshape(1, cout_pad)

    kernel = functools.partial(_convbn_kernel, KH=KH, KW=KW, stride=stride, tile_h=tile_h)

    # VMEM budget from (sublane, lane)-padded block footprints + temporaries; capped
    # below the 64 MiB per-TC VMEM of v7x.
    cin_l = _round_up(Cin, LANES)
    ct_l = _round_up(ct, LANES)
    x_blk = Hp * _round_up(Wp, 16) * cin_l * 2
    w_blk = KH * KW * _round_up(Cin, 16) * ct_l * 2
    o_blk = tile_h * _round_up(Wo_p, 16) * ct_l * 2
    tmp = ((tile_h + KH) * _round_up(Wp, 16) * cin_l * 2        # xw window + taps
           + 2 * tile_h * Wo_p * ct_l * 4)                      # f32 acc / epilogue
    need = 2 * (x_blk + w_blk + o_blk) + tmp + (1 << 20)
    vmem_limit = int(min(max(need, 32 * 2**20), 48 * 2**20))

    flops = 2 * N * Ho * Wo * Cout * KH * KW * Cin
    bytes_accessed = (x_pad.size * 2 + w3.size * 2 + (scale.size + bias.size) * 4
                      + N * Ho_pad * Wo_p * cout_pad * 2)

    out_nhwc = pl.pallas_call(
        kernel,
        out_shape=jax.ShapeDtypeStruct((N, Ho_pad, Wo_p, cout_pad), jnp.bfloat16),
        grid_spec=pltpu.PrefetchScalarGridSpec(
            num_scalar_prefetch=0,
            # row axis innermost -> weight/scale/bias blocks (c-only index_maps) stay
            # resident across the whole row sweep; x (n-only) resident either way.
            grid=(N, n_ct, n_ht),
            in_specs=[
                # whole padded image per batch element, resident across c/h tiles
                # TODO(synk): pipeline_mode=pl.Buffered(1) here would drop the second
                #             (useless) buffer of the resident image on v7x (64 MiB VMEM).
                pl.BlockSpec((1, Hp, Wp, Cin), lambda n, c, h: (n, 0, 0, 0)),
                pl.BlockSpec((KH * KW, Cin, ct), lambda n, c, h: (0, 0, c)),
                pl.BlockSpec((1, ct), lambda n, c, h: (0, c)),
                pl.BlockSpec((1, ct), lambda n, c, h: (0, c)),
            ],
            out_specs=pl.BlockSpec((1, tile_h, Wo_p, ct), lambda n, c, h: (n, h, 0, c)),
        ),
        compiler_params=pltpu.CompilerParams(
            dimension_semantics=("parallel", "parallel", "parallel"),
            vmem_limit_bytes=vmem_limit),
        cost_estimate=pl.CostEstimate(flops=flops, transcendentals=0,
                                      bytes_accessed=bytes_accessed),
    )(x_pad, w3, scale, bias)

    out = out_nhwc[:, :Ho, :Wo, :Cout]            # drop row/col/cout padding
    return jnp.transpose(out, (0, 3, 1, 2))       # NCHW (bf16) for the PyTorch interface


def _reference(x_nchw, w_oihw, gamma, beta, run_mean, run_var, *, stride=1, eps=1e-5):
    # pure-JAX reference: lax conv + eval-mode BN + ReLU6 (NCHW, f32)
    pad = (w_oihw.shape[2] - 1) // 2
    y = lax.conv_general_dilated(
        x_nchw.astype(jnp.float32), w_oihw.astype(jnp.float32),
        window_strides=(stride, stride),
        padding=[(pad, pad), (pad, pad)],
        dimension_numbers=("NCHW", "OIHW", "NCHW"),
    )
    s = gamma / jnp.sqrt(run_var + eps)
    b = beta - run_mean * s
    return jnp.clip(y * s[None, :, None, None] + b[None, :, None, None], 0.0, 6.0)


if __name__ == "__main__":
    key = jax.random.PRNGKey(0)
    k_x, k_w, k_g, k_b, k_m, k_v = jax.random.split(key, 6)

    # small shapes consistent with the module: batch=2, in_channel=4,
    # out_channel=8, spatial=16x16, kernel_size=3, stride=1, groups=1
    N, Cin, Cout, H, W, K = 2, 4, 8, 16, 16, 3

    x = jax.random.normal(k_x, (N, Cin, H, W), dtype=jnp.float32)
    w = jax.random.normal(k_w, (Cout, Cin, K, K), dtype=jnp.float32) * 0.1
    gamma = 1.0 + 0.1 * jax.random.normal(k_g, (Cout,), dtype=jnp.float32)
    beta = 0.1 * jax.random.normal(k_b, (Cout,), dtype=jnp.float32)
    run_mean = 0.1 * jax.random.normal(k_m, (Cout,), dtype=jnp.float32)
    run_var = jnp.abs(1.0 + 0.1 * jax.random.normal(k_v, (Cout,), dtype=jnp.float32))

    out = conv_bn_relu6(x, w, gamma, beta, run_mean, run_var, stride=1)
    out = jax.block_until_ready(out)
    assert out.shape == (N, Cout, H, W), out.shape
    out_f32 = out.astype(jnp.float32)

    # Check against the same bf16-quantized inputs (kernel accumulates in f32,
    # stores bf16 -> tolerance covers the single output rounding).
    xq = x.astype(jnp.bfloat16).astype(jnp.float32)
    wq = w.astype(jnp.bfloat16).astype(jnp.float32)
    ref_q = _reference(xq, wq, gamma, beta, run_mean, run_var, stride=1)
    assert jnp.allclose(out_f32, ref_q, atol=3e-2, rtol=3e-2), \
        float(jnp.max(jnp.abs(out_f32 - ref_q)))

    # Sanity check against the full-f32 PyTorch-equivalent math.
    ref = _reference(x, w, gamma, beta, run_mean, run_var, stride=1)
    assert jnp.allclose(out_f32, ref, atol=8e-2, rtol=8e-2), \
        float(jnp.max(jnp.abs(out_f32 - ref)))

    print("KERNEL_OK")
</pallas_src>

<mosaic_0001>
module attributes {stable_mosaic.version = 11 : i64} {
  func.func @_convbn_kernel(%arg0: i32, %arg1: i32, %arg2: i32, %arg3: memref<1x18x18x4xbf16, #tpu.memory_space<vmem>>, %arg4: memref<9x4x8xbf16, #tpu.memory_space<vmem>>, %arg5: memref<1x8xf32, #tpu.memory_space<vmem>>, %arg6: memref<1x8xf32, #tpu.memory_space<vmem>>, %arg7: memref<1x16x16x8xbf16, #tpu.memory_space<vmem>>) attributes {dimension_semantics = [#tpu.dimension_semantics<parallel>, #tpu.dimension_semantics<parallel>, #tpu.dimension_semantics<parallel>], iteration_bounds = array<i64: 2, 1, 1>, scalar_prefetch = 0 : i64, scratch_operands = 0 : i64, tpu.core_type = #tpu.core_type<tc>, window_params = [{transform_indices = @transform_0, window_bounds = array<i64: 1, 18, 18, 4>}, {transform_indices = @transform_1, window_bounds = array<i64: 9, 4, 8>}, {transform_indices = @transform_2, window_bounds = array<i64: 1, 8>}, {transform_indices = @transform_3, window_bounds = array<i64: 1, 8>}, {transform_indices = @transform_4, window_bounds = array<i64: 1, 16, 16, 8>}]} {
    %c16_i32 = arith.constant 16 : i32
    %0 = arith.muli %arg2, %c16_i32 : i32
    %1 = tpu.assume_multiple %0, 16 : i32
    %c0 = arith.constant 0 : index
    %2 = arith.index_cast %1 : i32 to index
    %c0_0 = arith.constant 0 : index
    %c0_1 = arith.constant 0 : index
    %3 = vector.load %arg3[%c0, %2, %c0_0, %c0_1] : memref<1x18x18x4xbf16, #tpu.memory_space<vmem>>, vector<1x18x18x4xbf16>
    %4 = vector.shape_cast %3 : vector<1x18x18x4xbf16> to vector<18x18x4xbf16>
    %cst = arith.constant 0.000000e+00 : f32
    %5 = vector.broadcast %cst : f32 to vector<256x8xf32>
    %6 = vector.extract_strided_slice %4 {offsets = [0, 0, 0], sizes = [16, 16, 4], strides = [1, 1, 1]} : vector<18x18x4xbf16> to vector<16x16x4xbf16>
    %7 = vector.shape_cast %6 : vector<16x16x4xbf16> to vector<256x4xbf16>
    %c0_2 = arith.constant 0 : index
    %c0_3 = arith.constant 0 : index
    %c0_4 = arith.constant 0 : index
    %8 = vector.load %arg4[%c0_2, %c0_3, %c0_4] : memref<9x4x8xbf16, #tpu.memory_space<vmem>>, vector<1x4x8xbf16>
    %9 = vector.shape_cast %8 : vector<1x4x8xbf16> to vector<4x8xbf16>
    %cst_5 = arith.constant dense<0.000000e+00> : vector<256x8xf32>
    %10 = tpu.matmul %7, %9, %cst_5 {dimension_numbers = #tpu.dot_dimension_numbers<[1], [0], [0], [1], [0, 0, 1, 1], [], []>} : vector<256x4xbf16>, vector<4x8xbf16>, vector<256x8xf32> -> vector<256x8xf32>
    %11 = arith.addf %5, %10 : vector<256x8xf32>
    %12 = vector.extract_strided_slice %4 {offsets = [0, 1, 0], sizes = [16, 16, 4], strides = [1, 1, 1]} : vector<18x18x4xbf16> to vector<16x16x4xbf16>
    %13 = vector.shape_cast %12 : vector<16x16x4xbf16> to vector<256x4xbf16>
    %c1 = arith.constant 1 : index
    %c0_6 = arith.constant 0 : index
    %c0_7 = arith.constant 0 : index
    %14 = vector.load %arg4[%c1, %c0_6, %c0_7] : memref<9x4x8xbf16, #tpu.memory_space<vmem>>, vector<1x4x8xbf16>
    %15 = vector.shape_cast %14 : vector<1x4x8xbf16> to vector<4x8xbf16>
    %cst_8 = arith.constant dense<0.000000e+00> : vector<256x8xf32>
    %16 = tpu.matmul %13, %15, %cst_8 {dimension_numbers = #tpu.dot_dimension_numbers<[1], [0], [0], [1], [0, 0, 1, 1], [], []>} : vector<256x4xbf16>, vector<4x8xbf16>, vector<256x8xf32> -> vector<256x8xf32>
    %17 = arith.addf %11, %16 : vector<256x8xf32>
    %18 = vector.extract_strided_slice %4 {offsets = [0, 2, 0], sizes = [16, 16, 4], strides = [1, 1, 1]} : vector<18x18x4xbf16> to vector<16x16x4xbf16>
    %19 = vector.shape_cast %18 : vector<16x16x4xbf16> to vector<256x4xbf16>
    %c2 = arith.constant 2 : index
    %c0_9 = arith.constant 0 : index
    %c0_10 = arith.constant 0 : index
    %20 = vector.load %arg4[%c2, %c0_9, %c0_10] : memref<9x4x8xbf16, #tpu.memory_space<vmem>>, vector<1x4x8xbf16>
    %21 = vector.shape_cast %20 : vector<1x4x8xbf16> to vector<4x8xbf16>
    %cst_11 = arith.constant dense<0.000000e+00> : vector<256x8xf32>
    %22 = tpu.matmul %19, %21, %cst_11 {dimension_numbers = #tpu.dot_dimension_numbers<[1], [0], [0], [1], [0, 0, 1, 1], [], []>} : vector<256x4xbf16>, vector<4x8xbf16>, vector<256x8xf32> -> vector<256x8xf32>
    %23 = arith.addf %17, %22 : vector<256x8xf32>
    %24 = vector.extract_strided_slice %4 {offsets = [1, 0, 0], sizes = [16, 16, 4], strides = [1, 1, 1]} : vector<18x18x4xbf16> to vector<16x16x4xbf16>
    %25 = vector.shape_cast %24 : vector<16x16x4xbf16> to vector<256x4xbf16>
    %c3 = arith.constant 3 : index
    %c0_12 = arith.constant 0 : index
    %c0_13 = arith.constant 0 : index
    %26 = vector.load %arg4[%c3, %c0_12, %c0_13] : memref<9x4x8xbf16, #tpu.memory_space<vmem>>, vector<1x4x8xbf16>
    %27 = vector.shape_cast %26 : vector<1x4x8xbf16> to vector<4x8xbf16>
    %cst_14 = arith.constant dense<0.000000e+00> : vector<256x8xf32>
    %28 = tpu.matmul %25, %27, %cst_14 {dimension_numbers = #tpu.dot_dimension_numbers<[1], [0], [0], [1], [0, 0, 1, 1], [], []>} : vector<256x4xbf16>, vector<4x8xbf16>, vector<256x8xf32> -> vector<256x8xf32>
    %29 = arith.addf %23, %28 : vector<256x8xf32>
    %30 = vector.extract_strided_slice %4 {offsets = [1, 1, 0], sizes = [16, 16, 4], strides = [1, 1, 1]} : vector<18x18x4xbf16> to vector<16x16x4xbf16>
    %31 = vector.shape_cast %30 : vector<16x16x4xbf16> to vector<256x4xbf16>
    %c4 = arith.constant 4 : index
    %c0_15 = arith.constant 0 : index
    %c0_16 = arith.constant 0 : index
    %32 = vector.load %arg4[%c4, %c0_15, %c0_16] : memref<9x4x8xbf16, #tpu.memory_space<vmem>>, vector<1x4x8xbf16>
    %33 = vector.shape_cast %32 : vector<1x4x8xbf16> to vector<4x8xbf16>
    %cst_17 = arith.constant dense<0.000000e+00> : vector<256x8xf32>
    %34 = tpu.matmul %31, %33, %cst_17 {dimension_numbers = #tpu.dot_dimension_numbers<[1], [0], [0], [1], [0, 0, 1, 1], [], []>} : vector<256x4xbf16>, vector<4x8xbf16>, vector<256x8xf32> -> vector<256x8xf32>
    %35 = arith.addf %29, %34 : vector<256x8xf32>
    %36 = vector.extract_strided_slice %4 {offsets = [1, 2, 0], sizes = [16, 16, 4], strides = [1, 1, 1]} : vector<18x18x4xbf16> to vector<16x16x4xbf16>
    %37 = vector.shape_cast %36 : vector<16x16x4xbf16> to vector<256x4xbf16>
    %c5 = arith.constant 5 : index
    %c0_18 = arith.constant 0 : index
    %c0_19 = arith.constant 0 : index
    %38 = vector.load %arg4[%c5, %c0_18, %c0_19] : memref<9x4x8xbf16, #tpu.memory_space<vmem>>, vector<1x4x8xbf16>
    %39 = vector.shape_cast %38 : vector<1x4x8xbf16> to vector<4x8xbf16>
    %cst_20 = arith.constant dense<0.000000e+00> : vector<256x8xf32>
    %40 = tpu.matmul %37, %39, %cst_20 {dimension_numbers = #tpu.dot_dimension_numbers<[1], [0], [0], [1], [0, 0, 1, 1], [], []>} : vector<256x4xbf16>, vector<4x8xbf16>, vector<256x8xf32> -> vector<256x8xf32>
    %41 = arith.addf %35, %40 : vector<256x8xf32>
    %42 = vector.extract_strided_slice %4 {offsets = [2, 0, 0], sizes = [16, 16, 4], strides = [1, 1, 1]} : vector<18x18x4xbf16> to vector<16x16x4xbf16>
    %43 = vector.shape_cast %42 : vector<16x16x4xbf16> to vector<256x4xbf16>
    %c6 = arith.constant 6 : index
    %c0_21 = arith.constant 0 : index
    %c0_22 = arith.constant 0 : index
    %44 = vector.load %arg4[%c6, %c0_21, %c0_22] : memref<9x4x8xbf16, #tpu.memory_space<vmem>>, vector<1x4x8xbf16>
    %45 = vector.shape_cast %44 : vector<1x4x8xbf16> to vector<4x8xbf16>
    %cst_23 = arith.constant dense<0.000000e+00> : vector<256x8xf32>
    %46 = tpu.matmul %43, %45, %cst_23 {dimension_numbers = #tpu.dot_dimension_numbers<[1], [0], [0], [1], [0, 0, 1, 1], [], []>} : vector<256x4xbf16>, vector<4x8xbf16>, vector<256x8xf32> -> vector<256x8xf32>
    %47 = arith.addf %41, %46 : vector<256x8xf32>
    %48 = vector.extract_strided_slice %4 {offsets = [2, 1, 0], sizes = [16, 16, 4], strides = [1, 1, 1]} : vector<18x18x4xbf16> to vector<16x16x4xbf16>
    %49 = vector.shape_cast %48 : vector<16x16x4xbf16> to vector<256x4xbf16>
    %c7 = arith.constant 7 : index
    %c0_24 = arith.constant 0 : index
    %c0_25 = arith.constant 0 : index
    %50 = vector.load %arg4[%c7, %c0_24, %c0_25] : memref<9x4x8xbf16, #tpu.memory_space<vmem>>, vector<1x4x8xbf16>
    %51 = vector.shape_cast %50 : vector<1x4x8xbf16> to vector<4x8xbf16>
    %cst_26 = arith.constant dense<0.000000e+00> : vector<256x8xf32>
    %52 = tpu.matmul %49, %51, %cst_26 {dimension_numbers = #tpu.dot_dimension_numbers<[1], [0], [0], [1], [0, 0, 1, 1], [], []>} : vector<256x4xbf16>, vector<4x8xbf16>, vector<256x8xf32> -> vector<256x8xf32>
    %53 = arith.addf %47, %52 : vector<256x8xf32>
    %54 = vector.extract_strided_slice %4 {offsets = [2, 2, 0], sizes = [16, 16, 4], strides = [1, 1, 1]} : vector<18x18x4xbf16> to vector<16x16x4xbf16>
    %55 = vector.shape_cast %54 : vector<16x16x4xbf16> to vector<256x4xbf16>
    %c8 = arith.constant 8 : index
    %c0_27 = arith.constant 0 : index
    %c0_28 = arith.constant 0 : index
    %56 = vector.load %arg4[%c8, %c0_27, %c0_28] : memref<9x4x8xbf16, #tpu.memory_space<vmem>>, vector<1x4x8xbf16>
    %57 = vector.shape_cast %56 : vector<1x4x8xbf16> to vector<4x8xbf16>
    %cst_29 = arith.constant dense<0.000000e+00> : vector<256x8xf32>
    %58 = tpu.matmul %55, %57, %cst_29 {dimension_numbers = #tpu.dot_dimension_numbers<[1], [0], [0], [1], [0, 0, 1, 1], [], []>} : vector<256x4xbf16>, vector<4x8xbf16>, vector<256x8xf32> -> vector<256x8xf32>
    %59 = arith.addf %53, %58 : vector<256x8xf32>
    %c0_30 = arith.constant 0 : index
    %c0_31 = arith.constant 0 : index
    %60 = vector.load %arg5[%c0_30, %c0_31] : memref<1x8xf32, #tpu.memory_space<vmem>>, vector<1x8xf32>
    %61 = vector.broadcast %60 : vector<1x8xf32> to vector<256x8xf32>
    %62 = arith.mulf %59, %61 : vector<256x8xf32>
    %c0_32 = arith.constant 0 : index
    %c0_33 = arith.constant 0 : index
    %63 = vector.load %arg6[%c0_32, %c0_33] : memref<1x8xf32, #tpu.memory_space<vmem>>, vector<1x8xf32>
    %64 = vector.broadcast %63 : vector<1x8xf32> to vector<256x8xf32>
    %65 = arith.addf %62, %64 : vector<256x8xf32>
    %cst_34 = arith.constant 0.000000e+00 : f32
    %66 = vector.broadcast %cst_34 : f32 to vector<256x8xf32>
    %67 = arith.maximumf %65, %66 : vector<256x8xf32>
    %cst_35 = arith.constant 6.000000e+00 : f32
    %68 = vector.broadcast %cst_35 : f32 to vector<256x8xf32>
    %69 = arith.minimumf %67, %68 : vector<256x8xf32>
    %70 = vector.shape_cast %69 : vector<256x8xf32> to vector<16x16x8xf32>
    %71 = arith.truncf %70 : vector<16x16x8xf32> to vector<16x16x8xbf16>
    %c0_36 = arith.constant 0 : index
    %c0_37 = arith.constant 0 : index
    %c0_38 = arith.constant 0 : index
    %c0_39 = arith.constant 0 : index
    %72 = vector.load %arg7[%c0_36, %c0_37, %c0_38, %c0_39] : memref<1x16x16x8xbf16, #tpu.memory_space<vmem>>, vector<1x16x16x8xbf16>
    %73 = vector.shape_cast %72 : vector<1x16x16x8xbf16> to vector<16x16x8xbf16>
    %74 = vector.shape_cast %71 : vector<16x16x8xbf16> to vector<1x16x16x8xbf16>
    tpu.vector_store %arg7[%c0_36, %c0_37, %c0_38, %c0_39], %74 {strides = array<i32>} : memref<1x16x16x8xbf16, #tpu.memory_space<vmem>>, vector<1x16x16x8xbf16>,
    return
  }
  func.func @transform_0(%arg0: i32, %arg1: i32, %arg2: i32) -> (i32, i32, i32, i32) {
    %c0_i32 = arith.constant 0 : i32
    %c0_i32_0 = arith.constant 0 : i32
    %c0_i32_1 = arith.constant 0 : i32
    %c0_i32_2 = arith.constant 0 : i32
    return %arg0, %c0_i32, %c0_i32_0, %c0_i32_1 : i32, i32, i32, i32
  }
  func.func @transform_1(%arg0: i32, %arg1: i32, %arg2: i32) -> (i32, i32, i32) {
    %c0_i32 = arith.constant 0 : i32
    %c0_i32_0 = arith.constant 0 : i32
    %c0_i32_1 = arith.constant 0 : i32
    return %c0_i32, %c0_i32_0, %arg1 : i32, i32, i32
  }
  func.func @transform_2(%arg0: i32, %arg1: i32, %arg2: i32) -> (i32, i32) {
    %c0_i32 = arith.constant 0 : i32
    %c0_i32_0 = arith.constant 0 : i32
    return %c0_i32, %arg1 : i32, i32
  }
  func.func @transform_3(%arg0: i32, %arg1: i32, %arg2: i32) -> (i32, i32) {
    %c0_i32 = arith.constant 0 : i32
    %c0_i32_0 = arith.constant 0 : i32
    return %c0_i32, %arg1 : i32, i32
  }
  func.func @transform_4(%arg0: i32, %arg1: i32, %arg2: i32) -> (i32, i32, i32, i32) {
    %c0_i32 = arith.constant 0 : i32
    %c0_i32_0 = arith.constant 0 : i32
    return %arg0, %arg2, %c0_i32, %arg1 : i32, i32, i32, i32
  }
}

</mosaic_0001>

<llo_original>
// kernel: tpu_custom_call.1
$region0: #{tpu_custom_call.1}
  #allocation0 [shape = 'u32[]', space=smem, size = 0x4, offset = 0x4, fixed_abs, tag = 'smem constant byte address 0x4 - core index']
  #allocation1 [shape = 'u32[144,128]{1,0:T(1,128)}', space=vmem, size = 0x12000, scoped, tag = 'internal scratch']
  %s0 = inlined_call_operand.vmem [shape: bf16[2,18,18,4], index: 0, kind: input, shape index: {}]
  %s1 = inlined_call_operand.vmem [shape: bf16[9,4,8], index: 1, kind: input, shape index: {}]
  %s2 = inlined_call_operand.vmem [shape: f32[1,8], index: 2, kind: input, shape index: {}]
  %s3 = inlined_call_operand.vmem [shape: f32[1,8], index: 3, kind: input, shape index: {}]
  %s4 = inlined_call_operand.vmem [shape: bf16[2,16,16,8], index: 4, kind: output, shape index: {}]
  %s5 = sld [smem:[#allocation0]]
  $region49: #{tpu_custom_call.1} parent=0
    _
  %s7 = ssub.s32 1, %s5
  %s8 = scalar_select 0, %s7, %s5
  loop: start=0, step=1, limit=4
  $region2: #{tpu_custom_call.1} parent=0 // loop_pre_header
    _
  $region3: #{tpu_custom_call.1} parent=0 // loop_header
    %s10 = sphi 0, %s14
    %p11 = scmp.ge.s32.totalorder %s10, 4
    %s17 = sphi 0, %s36
    %s18 = sphi 0, %s32
    %s19 = sphi 0, %s28
    %s20 = sphi 0, %s17
    %s21 = sphi 0, %s18
    %s22 = sphi 0, %s19
    %s23 = sphi 0, %s20
    %s24 = sphi 0, %s21
    %s25 = sphi 0, %s22
    %s39 = sphi 0, %s41
    %s42 = sphi 0, %s39
    %s43 = sphi 0, %s42
    %s59 = sphi 0, %s43
    %s65 = sphi 0, %s67
    %s68 = sphi 0, %s65
    %s69 = sphi 0, %s68
    %s85 = sphi 0, %s69
    %s91 = sphi 0, %s93
    %s94 = sphi 0, %s91
    %s95 = sphi 0, %s94
    %s111 = sphi 0, %s95
    %s117 = sphi 0, %s119
    %s120 = sphi 0, %s117
    %s121 = sphi 0, %s120
    %s137 = sphi 0, %s121
    %s147 = sphi 0, %s149
    %s150 = sphi 0, %s147
    %s151 = sphi 0, %s150
    %s167 = sphi 0, %s151
  $region4: #{tpu_custom_call.1} parent=0 // loop_header_branch
    %13 = sbr.rel (%p11) target = $region8
  $region5: #{tpu_custom_call.1} parent=0 // loop_body
    %s15 = ssub.s32 %s10, 1
    %s16 = ssub.s32 %s10, 2
    %s26 = sadd.s32 1, %s19
    %p27 = scmp.ge.s32.totalorder %s26, 1
    %s28 = scalar_select %p27, 0, %s26
    %s29 = sadd.s32 1, %s18
    %s30 = scalar_select %p27, %s29, %s18
    %p31 = scmp.ge.s32.totalorder %s30, 1
    %s32 = scalar_select %p31, 0, %s30
    %s33 = sadd.s32 1, %s17
    %s34 = scalar_select %p31, %s33, %s17
    %p35 = scmp.ge.s32.totalorder %s34, 2
    %s36 = scalar_select %p35, 0, %s34
    %s37 = ssub.s32 %s17, %s36
    %p38 = scmp.eq.s32.totalorder %s37, 0
    %s40 = sadd.s32 %s39, 1
    %s41 = scalar_select %p38, %s39, %s40
    %p44 = pneg %p38
    %p45 = scmp.eq.s32.totalorder %s10, 1
    %p46 = por %p44, %p45
    %p47 = scmp.ne.s32.totalorder %s39, %s42
    %p48 = scmp.eq.s32.totalorder %s10, 0
    %p49 = por %p47, %p48
    %p50 = scmp.ne.s32.totalorder %s39, %s42
    %p51 = scmp.eq.s32.totalorder %s15, 1
    %p52 = por %p50, %p51
    %p53 = scmp.ne.s32.totalorder %s42, %s43
    %p54 = scmp.eq.s32.totalorder %s15, 0
    %p55 = por %p53, %p54
    %p56 = scmp.ne.s32.totalorder %s42, %s43
    %p57 = scmp.eq.s32.totalorder %s16, 1
    %p58 = por %p56, %p57
    %p60 = scmp.ne.s32.totalorder %s43, %s59
    %p61 = scmp.eq.s32.totalorder %s16, 0
    %p62 = por %p60, %p61
    %s63 = ssub.s32 %s18, %s32
    %p64 = scmp.eq.s32.totalorder %s63, 0
    %s66 = sadd.s32 %s65, 1
    %s67 = scalar_select %p64, %s65, %s66
    %p70 = pneg %p64
    %p71 = scmp.eq.s32.totalorder %s10, 1
    %p72 = por %p70, %p71
    %p73 = scmp.ne.s32.totalorder %s65, %s68
    %p74 = scmp.eq.s32.totalorder %s10, 0
    %p75 = por %p73, %p74
    %p76 = scmp.ne.s32.totalorder %s65, %s68
    %p77 = scmp.eq.s32.totalorder %s15, 1
    %p78 = por %p76, %p77
    %p79 = scmp.ne.s32.totalorder %s68, %s69
    %p80 = scmp.eq.s32.totalorder %s15, 0
    %p81 = por %p79, %p80
    %p82 = scmp.ne.s32.totalorder %s68, %s69
    %p83 = scmp.eq.s32.totalorder %s16, 1
    %p84 = por %p82, %p83
    %p86 = scmp.ne.s32.totalorder %s69, %s85
    %p87 = scmp.eq.s32.totalorder %s16, 0
    %p88 = por %p86, %p87
    %s89 = ssub.s32 %s18, %s32
    %p90 = scmp.eq.s32.totalorder %s89, 0
    %s92 = sadd.s32 %s91, 1
    %s93 = scalar_select %p90, %s91, %s92
    %p96 = pneg %p90
    %p97 = scmp.eq.s32.totalorder %s10, 1
    %p98 = por %p96, %p97
    %p99 = scmp.ne.s32.totalorder %s91, %s94
    %p100 = scmp.eq.s32.totalorder %s10, 0
    %p101 = por %p99, %p100
    %p102 = scmp.ne.s32.totalorder %s91, %s94
    %p103 = scmp.eq.s32.totalorder %s15, 1
    %p104 = por %p102, %p103
    %p105 = scmp.ne.s32.totalorder %s94, %s95
    %p106 = scmp.eq.s32.totalorder %s15, 0
    %p107 = por %p105, %p106
    %p108 = scmp.ne.s32.totalorder %s94, %s95
    %p109 = scmp.eq.s32.totalorder %s16, 1
    %p110 = por %p108, %p109
    %p112 = scmp.ne.s32.totalorder %s95, %s111
    %p113 = scmp.eq.s32.totalorder %s16, 0
    %p114 = por %p112, %p113
    %s115 = ssub.s32 %s18, %s32
    %p116 = scmp.eq.s32.totalorder %s115, 0
    %s118 = sadd.s32 %s117, 1
    %s119 = scalar_select %p116, %s117, %s118
    %p122 = pneg %p116
    %p123 = scmp.eq.s32.totalorder %s10, 1
    %p124 = por %p122, %p123
    %p125 = scmp.ne.s32.totalorder %s117, %s120
    %p126 = scmp.eq.s32.totalorder %s10, 0
    %p127 = por %p125, %p126
    %p128 = scmp.ne.s32.totalorder %s117, %s120
    %p129 = scmp.eq.s32.totalorder %s15, 1
    %p130 = por %p128, %p129
    %p131 = scmp.ne.s32.totalorder %s120, %s121
    %p132 = scmp.eq.s32.totalorder %s15, 0
    %p133 = por %p131, %p132
    %p134 = scmp.ne.s32.totalorder %s120, %s121
    %p135 = scmp.eq.s32.totalorder %s16, 1
    %p136 = por %p134, %p135
    %p138 = scmp.ne.s32.totalorder %s121, %s137
    %p139 = scmp.eq.s32.totalorder %s16, 0
    %p140 = por %p138, %p139
    %s141 = ssub.s32 %s17, %s36
    %s142 = ssub.s32 %s19, %s28
    %s143 = sor.u32 %s141, %s142
    %s144 = ssub.s32 %s18, %s32
    %s145 = sor.u32 %s143, %s144
    %p146 = scmp.eq.s32.totalorder %s145, 0
    %s148 = sadd.s32 %s147, 1
    %s149 = scalar_select %p146, %s147, %s148
    %p152 = pneg %p146
    %p153 = scmp.eq.s32.totalorder %s10, 1
    %p154 = por %p152, %p153
    %p155 = scmp.ne.s32.totalorder %s147, %s150
    %p156 = scmp.eq.s32.totalorder %s10, 0
    %p157 = por %p155, %p156
    %p158 = scmp.ne.s32.totalorder %s147, %s150
    %p159 = scmp.eq.s32.totalorder %s15, 1
    %p160 = por %p158, %p159
    %p161 = scmp.ne.s32.totalorder %s150, %s151
    %p162 = scmp.eq.s32.totalorder %s15, 0
    %p163 = por %p161, %p162
    %p164 = scmp.ne.s32.totalorder %s150, %s151
    %p165 = scmp.eq.s32.totalorder %s16, 1
    %p166 = por %p164, %p165
    %p168 = scmp.ne.s32.totalorder %s151, %s167
    %p169 = scmp.eq.s32.totalorder %s16, 0
    %p170 = por %p168, %p169
    %p171 = scmp.le.s32.totalorder 1, %s10
    %p172 = scmp.lt.s32.totalorder %s10, 3
    %p173 = pnand %p171, %p172
    %p174 = pneg %p173
    // Predicated region
    $region9: #{tpu_custom_call.1} parent=5 // pred_check
      _
    $region10: #{tpu_custom_call.1} parent=5 // pred_check_branch
      %176 = sbr.rel (%p173) target = $region12
    $region11: #{tpu_custom_call.1} parent=5 // pred_region
      %s177 = ssub.s32 %s10, 1
      // Predicated region
      $region13: #{tpu_custom_call.1} parent=11 // pred_check
        %p178 = pneg %p81
      $region14: #{tpu_custom_call.1} parent=11 // pred_check_branch
        %180 = sbr.rel (%p178) target = $region16
      $region15: #{tpu_custom_call.1} parent=11 // pred_region
        %p181 = scmp.lt.s32.totalorder %s21, 0
        %s182 = scalar_select %p181, %s21, 0
        %s183 = smul.addr %s182, 2
        %s184 = scalar_lea.vmem %s1, %s183
      $region16: #{tpu_custom_call.1} parent=11 // pred_fallthru
        _
      // Predicated region
      $region17: #{tpu_custom_call.1} parent=11 // pred_check
        %p185 = pneg %p107
      $region18: #{tpu_custom_call.1} parent=11 // pred_check_branch
        %187 = sbr.rel (%p185) target = $region20
      $region19: #{tpu_custom_call.1} parent=11 // pred_region
        %p188 = scmp.lt.s32.totalorder %s21, 0
        %s189 = scalar_select %p188, %s21, 0
        %s190 = scalar_lea.vmem %s2, %s189
      $region20: #{tpu_custom_call.1} parent=11 // pred_fallthru
        _
      // Predicated region
      $region21: #{tpu_custom_call.1} parent=11 // pred_check
        %p191 = pneg %p133
      $region22: #{tpu_custom_call.1} parent=11 // pred_check_branch
        %193 = sbr.rel (%p191) target = $region24
      $region23: #{tpu_custom_call.1} parent=11 // pred_region
        %p194 = scmp.lt.s32.totalorder %s21, 0
        %s195 = scalar_select %p194, %s21, 0
        %s196 = scalar_lea.vmem %s3, %s195
      $region24: #{tpu_custom_call.1} parent=11 // pred_fallthru
        _
    $region12: #{tpu_custom_call.1} parent=5 // pred_fallthru
      _
    %p197 = scmp.lt.s32.totalorder %s10, 2
    // Predicated region
    $region25: #{tpu_custom_call.1} parent=5 // pred_check
      %p198 = pneg %p197
    $region26: #{tpu_custom_call.1} parent=5 // pred_check_branch
      %200 = sbr.rel (%p198) target = $region28
    $region27: #{tpu_custom_call.1} parent=5 // pred_region
      // Predicated region
      $region29: #{tpu_custom_call.1} parent=27 // pred_check
        %p201 = pneg %p49
      $region30: #{tpu_custom_call.1} parent=27 // pred_check_branch
        %203 = sbr.rel (%p201) target = $region32
      $region31: #{tpu_custom_call.1} parent=27 // pred_region
        %p204 = scmp.lt.s32.totalorder %s17, 1
        %s205 = scalar_select %p204, %s17, 1
        %s206 = smul.addr %s205, 54
        %s207 = smul.addr %s206, 4
        %s208 = scalar_lea.vmem %s0, %s207
      $region32: #{tpu_custom_call.1} parent=27 // pred_fallthru
        _
    $region28: #{tpu_custom_call.1} parent=5 // pred_fallthru
      _
    %p209 = scmp.le.s32.totalorder 1, %s10
    %p210 = scmp.lt.s32.totalorder %s10, 3
    %p211 = pnand %p209, %p210
    %p212 = pneg %p211
    // Predicated region
    $region33: #{tpu_custom_call.1} parent=5 // pred_check
      _
    $region34: #{tpu_custom_call.1} parent=5 // pred_check_branch
      %214 = sbr.rel (%p211) target = $region36
    $region35: #{tpu_custom_call.1} parent=5 // pred_region
      %s215 = ssub.s32 %s10, 1
      %p216 = scmp.lt.s32.totalorder %s20, 1
      %s217 = scalar_select %p216, %s20, 1
      %s218 = smul.addr %s217, 54
      %s219 = smul.addr %s218, 4
      %s220 = scalar_lea.vmem %s0, %s219
      %p221 = pneg %p55
      %p222 = pneg %p52
      %p223 = scmp.lt.s32.totalorder %s21, 0
      %s224 = scalar_select %p223, %s21, 0
      %s225 = smul.addr %s224, 2
      %s226 = scalar_lea.vmem %s1, %s225
      %p227 = pneg %p81
      %p228 = pneg %p78
      %p229 = scmp.lt.s32.totalorder %s21, 0
      %s230 = scalar_select %p229, %s21, 0
      %s231 = scalar_lea.vmem %s2, %s230
      %p232 = pneg %p107
      %p233 = pneg %p104
      %p234 = scmp.lt.s32.totalorder %s21, 0
      %s235 = scalar_select %p234, %s21, 0
      %s236 = scalar_lea.vmem %s3, %s235
      %p237 = pneg %p133
      %p238 = pneg %p130
      %p239 = pneg %p163
      %p240 = pneg %p160
      %s241 = smul.u32 16, %s22
      %p242 = scmp.lt.s32.totalorder %s20, 1
      %s243 = scalar_select %p242, %s20, 1
      %p244 = scmp.lt.s32.totalorder %s241, 15
      %s245 = scalar_select %p244, %s241, 15
      %p246 = scmp.lt.s32.totalorder %s21, 0
      %s247 = scalar_select %p246, %s21, 0
      %s248 = smul.addr %s245, 2
      %s249 = sadd.s32 %s247, %s248
      %s250 = smul.addr %s243, 32
      %s251 = sadd.s32 %s249, %s250
      %s252 = smul.addr %s251, 4
      %s253 = scalar_lea.vmem %s4, %s252
      %p254 = scmp.lt.s32.totalorder %s20, 1
      %s255 = scalar_select %p254, %s20, 1
      %s256 = smul.addr %s255, 54
      %s257 = smul.addr %s256, 4
      %s258 = scalar_lea.vmem %s0, %s257
      %p259 = scmp.lt.s32.totalorder %s21, 0
      %s260 = scalar_select %p259, %s21, 0
      %s261 = smul.addr %s260, 2
      %s262 = scalar_lea.vmem %s1, %s261
      %p263 = scmp.lt.s32.totalorder %s21, 0
      %s264 = scalar_select %p263, %s21, 0
      %s265 = scalar_lea.vmem %s2, %s264
      %p266 = scmp.lt.s32.totalorder %s21, 0
      %s267 = scalar_select %p266, %s21, 0
      %s268 = scalar_lea.vmem %s3, %s267
      %s269 = smul.u32 16, %s22
      %p270 = scmp.lt.s32.totalorder %s20, 1
      %s271 = scalar_select %p270, %s20, 1
      %p272 = scmp.lt.s32.totalorder %s269, 15
      %s273 = scalar_select %p272, %s269, 15
      %p274 = scmp.lt.s32.totalorder %s21, 0
      %s275 = scalar_select %p274, %s21, 0
      %s276 = smul.addr %s273, 2
      %s277 = sadd.s32 %s275, %s276
      %s278 = smul.addr %s271, 32
      %s279 = sadd.s32 %s277, %s278
      %s280 = smul.addr %s279, 4
      %s281 = scalar_lea.vmem %s4, %s280
      %s282 = smul.u32 16, %s22
      %s284 = smul.u32 %s22, 16
      %s285 = smul.u32 %s284, 3
      %s286 = smul.addr %s285, 4
      %s287 = scalar_lea.vmem %s258, %s286
      %v288 = vld [vmem:[%s287] sm:$0xf]
      %v289 = vld [vmem:[%s287 + $0x4] sm:$0xf]
      %v290 = vld [vmem:[%s287 + $0x8] sm:$0x1]
      %v291 = vld [vmem:[%s287 + $0xc] sm:$0xf]
      %v292 = vld [vmem:[%s287 + $0x10] sm:$0xf]
      %v293 = vld [vmem:[%s287 + $0x14] sm:$0x1]
      %v294 = vld [vmem:[%s287 + $0x18] sm:$0xf]
      %v295 = vld [vmem:[%s287 + $0x1c] sm:$0xf]
      %v296 = vld [vmem:[%s287 + $0x20] sm:$0x1]
      %v297 = vld [vmem:[%s287 + $0x24] sm:$0xf]
      %v298 = vld [vmem:[%s287 + $0x28] sm:$0xf]
      %v299 = vld [vmem:[%s287 + $0x2c] sm:$0x1]
      %v300 = vld [vmem:[%s287 + $0x30] sm:$0xf]
      %v301 = vld [vmem:[%s287 + $0x34] sm:$0xf]
      %v302 = vld [vmem:[%s287 + $0x38] sm:$0x1]
      %v303 = vld [vmem:[%s287 + $0x3c] sm:$0xf]
      %v304 = vld [vmem:[%s287 + $0x40] sm:$0xf]
      %v305 = vld [vmem:[%s287 + $0x44] sm:$0x1]
      %v306 = vld [vmem:[%s287 + $0x48] sm:$0xf]
      %v307 = vld [vmem:[%s287 + $0x4c] sm:$0xf]
      %v308 = vld [vmem:[%s287 + $0x50] sm:$0x1]
      %v309 = vld [vmem:[%s287 + $0x54] sm:$0xf]
      %v310 = vld [vmem:[%s287 + $0x58] sm:$0xf]
      %v311 = vld [vmem:[%s287 + $0x5c] sm:$0x1]
      %v312 = vld [vmem:[%s287 + $0x60] sm:$0xf]
      %v313 = vld [vmem:[%s287 + $0x64] sm:$0xf]
      %v314 = vld [vmem:[%s287 + $0x68] sm:$0x1]
      %v315 = vld [vmem:[%s287 + $0x6c] sm:$0xf]
      %v316 = vld [vmem:[%s287 + $0x70] sm:$0xf]
      %v317 = vld [vmem:[%s287 + $0x74] sm:$0x1]
      %v318 = vld [vmem:[%s287 + $0x78] sm:$0xf]
      %v319 = vld [vmem:[%s287 + $0x7c] sm:$0xf]
      %v320 = vld [vmem:[%s287 + $0x80] sm:$0x1]
      %v321 = vld [vmem:[%s287 + $0x84] sm:$0xf]
      %v322 = vld [vmem:[%s287 + $0x88] sm:$0xf]
      %v323 = vld [vmem:[%s287 + $0x8c] sm:$0x1]
      %v324 = vld [vmem:[%s287 + $0x90] sm:$0xf]
      %v325 = vld [vmem:[%s287 + $0x94] sm:$0xf]
      %v326 = vld [vmem:[%s287 + $0x98] sm:$0x1]
      %v327 = vld [vmem:[%s287 + $0x9c] sm:$0xf]
      %v328 = vld [vmem:[%s287 + $0xa0] sm:$0xf]
      %v329 = vld [vmem:[%s287 + $0xa4] sm:$0x1]
      %v330 = vld [vmem:[%s287 + $0xa8] sm:$0xf]
      %v331 = vld [vmem:[%s287 + $0xac] sm:$0xf]
      %v332 = vld [vmem:[%s287 + $0xb0] sm:$0x1]
      %v333 = vld [vmem:[%s287 + $0xb4] sm:$0xf]
      %v334 = vld [vmem:[%s287 + $0xb8] sm:$0xf]
      %v335 = vld [vmem:[%s287 + $0xbc] sm:$0x1]
      %v336 = vld [vmem:[%s287 + $0xc0] sm:$0xf]
      %v337 = vld [vmem:[%s287 + $0xc4] sm:$0xf]
      %v338 = vld [vmem:[%s287 + $0xc8] sm:$0x1]
      %v339 = vld [vmem:[%s287 + $0xcc] sm:$0xf]
      %v340 = vld [vmem:[%s287 + $0xd0] sm:$0xf]
      %v341 = vld [vmem:[%s287 + $0xd4] sm:$0x1]
      %v342 = vld [vmem:[%s262] sm:$0x3]
      %vm343 = vsmask.f32 3328
      %vm344 = vsmask.f32 7440
      %vm345 = vmor %vm343, %vm344
      %v347 = vshrl.u32 %v288, 16
      %v349 = vrot.slane %v347, 4
      %v350 = vshll.u32 %v288, 16
      %v352 = vrot.slane %v350, 5
      %v353 = vor.u32 %v349, %v352
      %v354 = vrot.slane %v353, 4
      %v356 = vshll.u32 %v289, 16
      %v358 = vrot.slane %v356, 5
      %v359 = vsel %vm345, %v354, %v358
      %v360 = vshrl.u32 %v289, 16
      %v362 = vrot.slane %v360, 4
      %v363 = vor.u32 %v362, %v358
      %v364 = vrot.slane %v363, 4
      %v366 = vshll.u32 %v290, 16
      %v368 = vrot.slane %v366, 5
      %v369 = vsel %vm345, %v364, %v368
      %v371 = vshrl.u32 %v291, 16
      %v373 = vrot.slane %v371, 4
      %v374 = vshll.u32 %v291, 16
      %v376 = vrot.slane %v374, 5
      %v377 = vor.u32 %v373, %v376
      %v378 = vrot.slane %v377, 4
      %v380 = vshll.u32 %v292, 16
      %v382 = vrot.slane %v380, 5
      %v383 = vsel %vm345, %v378, %v382
      %v384 = vshrl.u32 %v292, 16
      %v386 = vrot.slane %v384, 4
      %v387 = vor.u32 %v386, %v382
      %v388 = vrot.slane %v387, 4
      %v390 = vshll.u32 %v293, 16
      %v392 = vrot.slane %v390, 5
      %v393 = vsel %vm345, %v388, %v392
      %v395 = vshrl.u32 %v294, 16
      %v397 = vrot.slane %v395, 4
      %v398 = vshll.u32 %v294, 16
      %v400 = vrot.slane %v398, 5
      %v401 = vor.u32 %v397, %v400
      %v402 = vrot.slane %v401, 4
      %v404 = vshll.u32 %v295, 16
      %v406 = vrot.slane %v404, 5
      %v407 = vsel %vm345, %v402, %v406
      %v408 = vshrl.u32 %v295, 16
      %v410 = vrot.slane %v408, 4
      %v411 = vor.u32 %v410, %v406
      %v412 = vrot.slane %v411, 4
      %v414 = vshll.u32 %v296, 16
      %v416 = vrot.slane %v414, 5
      %v417 = vsel %vm345, %v412, %v416
      %v419 = vshrl.u32 %v297, 16
      %v421 = vrot.slane %v419, 4
      %v422 = vshll.u32 %v297, 16
      %v424 = vrot.slane %v422, 5
      %v425 = vor.u32 %v421, %v424
      %v426 = vrot.slane %v425, 4
      %v428 = vshll.u32 %v298, 16
      %v430 = vrot.slane %v428, 5
      %v431 = vsel %vm345, %v426, %v430
      %v432 = vshrl.u32 %v298, 16
      %v434 = vrot.slane %v432, 4
      %v435 = vor.u32 %v434, %v430
      %v436 = vrot.slane %v435, 4
      %v438 = vshll.u32 %v299, 16
      %v440 = vrot.slane %v438, 5
      %v441 = vsel %vm345, %v436, %v440
      %v443 = vshrl.u32 %v300, 16
      %v445 = vrot.slane %v443, 4
      %v446 = vshll.u32 %v300, 16
      %v448 = vrot.slane %v446, 5
      %v449 = vor.u32 %v445, %v448
      %v450 = vrot.slane %v449, 4
      %v452 = vshll.u32 %v301, 16
      %v454 = vrot.slane %v452, 5
      %v455 = vsel %vm345, %v450, %v454
      %v456 = vshrl.u32 %v301, 16
      %v458 = vrot.slane %v456, 4
      %v459 = vor.u32 %v458, %v454
      %v460 = vrot.slane %v459, 4
      %v462 = vshll.u32 %v302, 16
      %v464 = vrot.slane %v462, 5
      %v465 = vsel %vm345, %v460, %v464
      %v467 = vshrl.u32 %v303, 16
      %v469 = vrot.slane %v467, 4
      %v470 = vshll.u32 %v303, 16
      %v472 = vrot.slane %v470, 5
      %v473 = vor.u32 %v469, %v472
      %v474 = vrot.slane %v473, 4
      %v476 = vshll.u32 %v304, 16
      %v478 = vrot.slane %v476, 5
      %v479 = vsel %vm345, %v474, %v478
      %v480 = vshrl.u32 %v304, 16
      %v482 = vrot.slane %v480, 4
      %v483 = vor.u32 %v482, %v478
      %v484 = vrot.slane %v483, 4
      %v486 = vshll.u32 %v305, 16
      %v488 = vrot.slane %v486, 5
      %v489 = vsel %vm345, %v484, %v488
      %v491 = vshrl.u32 %v306, 16
      %v493 = vrot.slane %v491, 4
      %v494 = vshll.u32 %v306, 16
      %v496 = vrot.slane %v494, 5
      %v497 = vor.u32 %v493, %v496
      %v498 = vrot.slane %v497, 4
      %v500 = vshll.u32 %v307, 16
      %v502 = vrot.slane %v500, 5
      %v503 = vsel %vm345, %v498, %v502
      %v504 = vshrl.u32 %v307, 16
      %v506 = vrot.slane %v504, 4
      %v507 = vor.u32 %v506, %v502
      %v508 = vrot.slane %v507, 4
      %v510 = vshll.u32 %v308, 16
      %v512 = vrot.slane %v510, 5
      %v513 = vsel %vm345, %v508, %v512
      %v515 = vshrl.u32 %v309, 16
      %v517 = vrot.slane %v515, 4
      %v518 = vshll.u32 %v309, 16
      %v520 = vrot.slane %v518, 5
      %v521 = vor.u32 %v517, %v520
      %v522 = vrot.slane %v521, 4
      %v524 = vshll.u32 %v310, 16
      %v526 = vrot.slane %v524, 5
      %v527 = vsel %vm345, %v522, %v526
      %v528 = vshrl.u32 %v310, 16
      %v530 = vrot.slane %v528, 4
      %v531 = vor.u32 %v530, %v526
      %v532 = vrot.slane %v531, 4
      %v534 = vshll.u32 %v311, 16
      %v536 = vrot.slane %v534, 5
      %v537 = vsel %vm345, %v532, %v536
      %v539 = vshrl.u32 %v312, 16
      %v541 = vrot.slane %v539, 4
      %v542 = vshll.u32 %v312, 16
      %v544 = vrot.slane %v542, 5
      %v545 = vor.u32 %v541, %v544
      %v546 = vrot.slane %v545, 4
      %v548 = vshll.u32 %v313, 16
      %v550 = vrot.slane %v548, 5
      %v551 = vsel %vm345, %v546, %v550
      %v552 = vshrl.u32 %v313, 16
      %v554 = vrot.slane %v552, 4
      %v555 = vor.u32 %v554, %v550
      %v556 = vrot.slane %v555, 4
      %v558 = vshll.u32 %v314, 16
      %v560 = vrot.slane %v558, 5
      %v561 = vsel %vm345, %v556, %v560
      %v563 = vshrl.u32 %v315, 16
      %v565 = vrot.slane %v563, 4
      %v566 = vshll.u32 %v315, 16
      %v568 = vrot.slane %v566, 5
      %v569 = vor.u32 %v565, %v568
      %v570 = vrot.slane %v569, 4
      %v572 = vshll.u32 %v316, 16
      %v574 = vrot.slane %v572, 5
      %v575 = vsel %vm345, %v570, %v574
      %v576 = vshrl.u32 %v316, 16
      %v578 = vrot.slane %v576, 4
      %v579 = vor.u32 %v578, %v574
      %v580 = vrot.slane %v579, 4
      %v582 = vshll.u32 %v317, 16
      %v584 = vrot.slane %v582, 5
      %v585 = vsel %vm345, %v580, %v584
      %v587 = vshrl.u32 %v318, 16
      %v589 = vrot.slane %v587, 4
      %v590 = vshll.u32 %v318, 16
      %v592 = vrot.slane %v590, 5
      %v593 = vor.u32 %v589, %v592
      %v594 = vrot.slane %v593, 4
      %v596 = vshll.u32 %v319, 16
      %v598 = vrot.slane %v596, 5
      %v599 = vsel %vm345, %v594, %v598
      %v600 = vshrl.u32 %v319, 16
      %v602 = vrot.slane %v600, 4
      %v603 = vor.u32 %v602, %v598
      %v604 = vrot.slane %v603, 4
      %v606 = vshll.u32 %v320, 16
      %v608 = vrot.slane %v606, 5
      %v609 = vsel %vm345, %v604, %v608
      %v611 = vshrl.u32 %v321, 16
      %v613 = vrot.slane %v611, 4
      %v614 = vshll.u32 %v321, 16
      %v616 = vrot.slane %v614, 5
      %v617 = vor.u32 %v613, %v616
      %v618 = vrot.slane %v617, 4
      %v620 = vshll.u32 %v322, 16
      %v622 = vrot.slane %v620, 5
      %v623 = vsel %vm345, %v618, %v622
      %v624 = vshrl.u32 %v322, 16
      %v626 = vrot.slane %v624, 4
      %v627 = vor.u32 %v626, %v622
      %v628 = vrot.slane %v627, 4
      %v630 = vshll.u32 %v323, 16
      %v632 = vrot.slane %v630, 5
      %v633 = vsel %vm345, %v628, %v632
      %v635 = vshrl.u32 %v324, 16
      %v637 = vrot.slane %v635, 4
      %v638 = vshll.u32 %v324, 16
      %v640 = vrot.slane %v638, 5
      %v641 = vor.u32 %v637, %v640
      %v642 = vrot.slane %v641, 4
      %v644 = vshll.u32 %v325, 16
      %v646 = vrot.slane %v644, 5
      %v647 = vsel %vm345, %v642, %v646
      %v648 = vshrl.u32 %v325, 16
      %v650 = vrot.slane %v648, 4
      %v651 = vor.u32 %v650, %v646
      %v652 = vrot.slane %v651, 4
      %v654 = vshll.u32 %v326, 16
      %v656 = vrot.slane %v654, 5
      %v657 = vsel %vm345, %v652, %v656
      %v659 = vshrl.u32 %v327, 16
      %v661 = vrot.slane %v659, 4
      %v662 = vshll.u32 %v327, 16
      %v664 = vrot.slane %v662, 5
      %v665 = vor.u32 %v661, %v664
      %v666 = vrot.slane %v665, 4
      %v668 = vshll.u32 %v328, 16
      %v670 = vrot.slane %v668, 5
      %v671 = vsel %vm345, %v666, %v670
      %v672 = vshrl.u32 %v328, 16
      %v674 = vrot.slane %v672, 4
      %v675 = vor.u32 %v674, %v670
      %v676 = vrot.slane %v675, 4
      %v678 = vshll.u32 %v329, 16
      %v680 = vrot.slane %v678, 5
      %v681 = vsel %vm345, %v676, %v680
      %v683 = vshrl.u32 %v330, 16
      %v685 = vrot.slane %v683, 4
      %v686 = vshll.u32 %v330, 16
      %v688 = vrot.slane %v686, 5
      %v689 = vor.u32 %v685, %v688
      %v690 = vrot.slane %v689, 4
      %v692 = vshll.u32 %v331, 16
      %v694 = vrot.slane %v692, 5
      %v695 = vsel %vm345, %v690, %v694
      %v696 = vshrl.u32 %v331, 16
      %v698 = vrot.slane %v696, 4
      %v699 = vor.u32 %v698, %v694
      %v700 = vrot.slane %v699, 4
      %v702 = vshll.u32 %v332, 16
      %v704 = vrot.slane %v702, 5
      %v705 = vsel %vm345, %v700, %v704
      %v707 = vshrl.u32 %v333, 16
      %v709 = vrot.slane %v707, 4
      %v710 = vshll.u32 %v333, 16
      %v712 = vrot.slane %v710, 5
      %v713 = vor.u32 %v709, %v712
      %v714 = vrot.slane %v713, 4
      %v716 = vshll.u32 %v334, 16
      %v718 = vrot.slane %v716, 5
      %v719 = vsel %vm345, %v714, %v718
      %v720 = vshrl.u32 %v334, 16
      %v722 = vrot.slane %v720, 4
      %v723 = vor.u32 %v722, %v718
      %v724 = vrot.slane %v723, 4
      %v726 = vshll.u32 %v335, 16
      %v728 = vrot.slane %v726, 5
      %v729 = vsel %vm345, %v724, %v728
      %s730 = scalar_lea.vmem %s262, 2
      %v731 = vld [vmem:[%s730] sm:$0x3]
      %v732 = vunpack.c.l.b16 %v359
      %v733 = vunpack.c.l.b16 %v369
      %v734 = vunpack.c.l.b16 %v383
      %v735 = vunpack.c.l.b16 %v393
      %v736 = vunpack.c.l.b16 %v407
      %v737 = vunpack.c.l.b16 %v417
      %v738 = vunpack.c.l.b16 %v431
      %v739 = vunpack.c.l.b16 %v441
      %v740 = vunpack.c.l.b16 %v455
      %v741 = vunpack.c.l.b16 %v465
      %v742 = vunpack.c.l.b16 %v479
      %v743 = vunpack.c.l.b16 %v489
      %v744 = vunpack.c.l.b16 %v503
      %v745 = vunpack.c.l.b16 %v513
      %v746 = vunpack.c.l.b16 %v527
      %v747 = vunpack.c.l.b16 %v537
      %v748 = vunpack.c.l.b16 %v551
      %v749 = vunpack.c.l.b16 %v561
      %v750 = vunpack.c.l.b16 %v575
      %v751 = vunpack.c.l.b16 %v585
      %v752 = vunpack.c.l.b16 %v599
      %v753 = vunpack.c.l.b16 %v609
      %v754 = vunpack.c.l.b16 %v623
      %v755 = vunpack.c.l.b16 %v633
      %v756 = vunpack.c.l.b16 %v647
      %v757 = vunpack.c.l.b16 %v657
      %v758 = vunpack.c.l.b16 %v671
      %v759 = vunpack.c.l.b16 %v681
      %v760 = vunpack.c.l.b16 %v695
      %v761 = vunpack.c.l.b16 %v705
      %v762 = vunpack.c.l.b16 %v719
      %v763 = vunpack.c.l.b16 %v729
      %v764 = vpack.c.b16 %v733, %v732
      %v765 = vpack.c.b16 %v735, %v734
      %v766 = vpack.c.b16 %v737, %v736
      %v767 = vpack.c.b16 %v739, %v738
      %v768 = vpack.c.b16 %v741, %v740
      %v769 = vpack.c.b16 %v743, %v742
      %v770 = vpack.c.b16 %v745, %v744
      %v771 = vpack.c.b16 %v747, %v746
      %v772 = vpack.c.b16 %v749, %v748
      %v773 = vpack.c.b16 %v751, %v750
      %v774 = vpack.c.b16 %v753, %v752
      %v775 = vpack.c.b16 %v755, %v754
      %v776 = vpack.c.b16 %v757, %v756
      %v777 = vpack.c.b16 %v759, %v758
      %v778 = vpack.c.b16 %v761, %v760
      %v779 = vpack.c.b16 %v763, %v762
      %vm780 = vcmask 31744
      %v782 = vsel %vm780, %v764, 0
      %v785 = vsel %vm780, %v765, 0
      %v788 = vsel %vm780, %v766, 0
      %v791 = vsel %vm780, %v767, 0
      %v794 = vsel %vm780, %v768, 0
      %v797 = vsel %vm780, %v769, 0
      %v800 = vsel %vm780, %v770, 0
      %v803 = vsel %vm780, %v771, 0
      %v806 = vsel %vm780, %v772, 0
      %v809 = vsel %vm780, %v773, 0
      %v812 = vsel %vm780, %v774, 0
      %v815 = vsel %vm780, %v775, 0
      %v818 = vsel %vm780, %v776, 0
      %v821 = vsel %vm780, %v777, 0
      %v824 = vsel %vm780, %v778, 0
      %v827 = vsel %vm780, %v779, 0
      %vm829 = vcmask 1041408
      %v831 = vsel %vm829, %v731, 0
      %833 = vmatprep.subr.bf16.mxu0 0
      %834 = vmatpush1.bf16.msra.mxu0 %v831
      %835 = vmatprep.subr.bf16.mxu0 0
      %836 = vmatpush1.bf16.msra.mxu0 0
      %837 = vmatprep.subr.bf16.mxu0 0
      %838 = vmatpush1.bf16.msra.mxu0 0
      %839 = vmatprep.subr.bf16.mxu0 0
      %840 = vmatpush1.bf16.msra.mxu0 0
      %841 = vmatprep.subr.bf16.mxu0 0
      %842 = vmatpush1.bf16.msra.mxu0 0
      %843 = vmatprep.subr.bf16.mxu0 0
      %844 = vmatpush1.bf16.msra.mxu0 0
      %845 = vmatprep.subr.bf16.mxu0 0
      %846 = vmatpush1.bf16.msra.mxu0 0
      %847 = vmatprep.subr.bf16.mxu0 0
      %848 = vmatpush1.bf16.msra.mxu0 0
      %849 = vmatprep.subr.bf16.mxu0 0
      %850 = vmatpush1.bf16.msra.mxu0 0
      %851 = vmatprep.subr.bf16.mxu0 0
      %852 = vmatpush1.bf16.msra.mxu0 0
      %853 = vmatprep.subr.bf16.mxu0 0
      %854 = vmatpush1.bf16.msra.mxu0 0
      %855 = vmatprep.subr.bf16.mxu0 0
      %856 = vmatpush1.bf16.msra.mxu0 0
      %857 = vmatprep.subr.bf16.mxu0 0
      %858 = vmatpush1.bf16.msra.mxu0 0
      %859 = vmatprep.subr.bf16.mxu0 0
      %860 = vmatpush1.bf16.msra.mxu0 0
      %861 = vmatprep.subr.bf16.mxu0 0
      %862 = vmatpush1.bf16.msra.mxu0 0
      %863 = vmatprep.subr.bf16.mxu0 0
      %864 = vmatpush1.bf16.msra.mxu0 0
      %865 = vmatprep.mubr.bf16.mxu0 0
      %866 = vmatmul.mubr.bf16.gmra.mrb[0].mxu0 %v782
      %v867 = vpop.f32.mrb[0].mxu0
      %v868 = vadd.f32 0.0, %v867
      %v869 = vpop.f32.mrb[0].mxu0
      %v870 = vpop.f32.mrb[0].mxu0
      %v871 = vadd.f32 0.0, %v870
      %v872 = vpop.f32.mrb[0].mxu0
      %873 = vmatprep.mubr.bf16.mxu0 0
      %874 = vmatmul.mubr.bf16.gmra.mrb[0].mxu0 %v785
      %v875 = vpop.f32.mrb[0].mxu0
      %v876 = vadd.f32 0.0, %v875
      %v877 = vpop.f32.mrb[0].mxu0
      %v878 = vpop.f32.mrb[0].mxu0
      %v879 = vadd.f32 0.0, %v878
      %v880 = vpop.f32.mrb[0].mxu0
      %881 = vmatprep.mubr.bf16.mxu0 0
      %882 = vmatmul.mubr.bf16.gmra.mrb[0].mxu0 %v788
      %v883 = vpop.f32.mrb[0].mxu0
      %v884 = vadd.f32 0.0, %v883
      %v885 = vpop.f32.mrb[0].mxu0
      %v886 = vpop.f32.mrb[0].mxu0
      %v887 = vadd.f32 0.0, %v886
      %v888 = vpop.f32.mrb[0].mxu0
      %889 = vmatprep.mubr.bf16.mxu0 0
      %890 = vmatmul.mubr.bf16.gmra.mrb[0].mxu0 %v791
      %v891 = vpop.f32.mrb[0].mxu0
      %v892 = vadd.f32 0.0, %v891
      %v893 = vpop.f32.mrb[0].mxu0
      %v894 = vpop.f32.mrb[0].mxu0
      %v895 = vadd.f32 0.0, %v894
      %v896 = vpop.f32.mrb[0].mxu0
      %897 = vmatprep.mubr.bf16.mxu0 0
      %898 = vmatmul.mubr.bf16.gmra.mrb[0].mxu0 %v794
      %v899 = vpop.f32.mrb[0].mxu0
      %v900 = vadd.f32 0.0, %v899
      %v901 = vpop.f32.mrb[0].mxu0
      %v902 = vpop.f32.mrb[0].mxu0
      %v903 = vadd.f32 0.0, %v902
      %v904 = vpop.f32.mrb[0].mxu0
      %905 = vmatprep.mubr.bf16.mxu0 0
      %906 = vmatmul.mubr.bf16.gmra.mrb[0].mxu0 %v797
      %v907 = vpop.f32.mrb[0].mxu0
      %v908 = vadd.f32 0.0, %v907
      %v909 = vpop.f32.mrb[0].mxu0
      %v910 = vpop.f32.mrb[0].mxu0
      %v911 = vadd.f32 0.0, %v910
      %v912 = vpop.f32.mrb[0].mxu0
      %913 = vmatprep.mubr.bf16.mxu0 0
      %914 = vmatmul.mubr.bf16.gmra.mrb[0].mxu0 %v800
      %v915 = vpop.f32.mrb[0].mxu0
      %v916 = vadd.f32 0.0, %v915
      %v917 = vpop.f32.mrb[0].mxu0
      %v918 = vpop.f32.mrb[0].mxu0
      %v919 = vadd.f32 0.0, %v918
      %v920 = vpop.f32.mrb[0].mxu0
      %921 = vmatprep.mubr.bf16.mxu0 0
      %922 = vmatmul.mubr.bf16.gmra.mrb[0].mxu0 %v803
      %v923 = vpop.f32.mrb[0].mxu0
      %v924 = vadd.f32 0.0, %v923
      %v925 = vpop.f32.mrb[0].mxu0
      %v926 = vpop.f32.mrb[0].mxu0
      %v927 = vadd.f32 0.0, %v926
      %v928 = vpop.f32.mrb[0].mxu0
      %929 = vmatprep.mubr.bf16.mxu0 0
      %930 = vmatmul.mubr.bf16.gmra.mrb[0].mxu0 %v806
      %v931 = vpop.f32.mrb[0].mxu0
      %v932 = vadd.f32 0.0, %v931
      %v933 = vpop.f32.mrb[0].mxu0
      %v934 = vpop.f32.mrb[0].mxu0
      %v935 = vadd.f32 0.0, %v934
      %v936 = vpop.f32.mrb[0].mxu0
      %937 = vmatprep.mubr.bf16.mxu0 0
      %938 = vmatmul.mubr.bf16.gmra.mrb[0].mxu0 %v809
      %v939 = vpop.f32.mrb[0].mxu0
      %v940 = vadd.f32 0.0, %v939
      %v941 = vpop.f32.mrb[0].mxu0
      %v942 = vpop.f32.mrb[0].mxu0
      %v943 = vadd.f32 0.0, %v942
      %v944 = vpop.f32.mrb[0].mxu0
      %945 = vmatprep.mubr.bf16.mxu0 0
      %946 = vmatmul.mubr.bf16.gmra.mrb[0].mxu0 %v812
      %v947 = vpop.f32.mrb[0].mxu0
      %v948 = vadd.f32 0.0, %v947
      %v949 = vpop.f32.mrb[0].mxu0
      %v950 = vpop.f32.mrb[0].mxu0
      %v951 = vadd.f32 0.0, %v950
      %v952 = vpop.f32.mrb[0].mxu0
      %953 = vmatprep.mubr.bf16.mxu0 0
      %954 = vmatmul.mubr.bf16.gmra.mrb[0].mxu0 %v815
      %v955 = vpop.f32.mrb[0].mxu0
      %v956 = vadd.f32 0.0, %v955
      %v957 = vpop.f32.mrb[0].mxu0
      %v958 = vpop.f32.mrb[0].mxu0
      %v959 = vadd.f32 0.0, %v958
      %v960 = vpop.f32.mrb[0].mxu0
      %961 = vmatprep.mubr.bf16.mxu0 0
      %962 = vmatmul.mubr.bf16.gmra.mrb[0].mxu0 %v818
      %v963 = vpop.f32.mrb[0].mxu0
      %v964 = vadd.f32 0.0, %v963
      %v965 = vpop.f32.mrb[0].mxu0
      %v966 = vpop.f32.mrb[0].mxu0
      %v967 = vadd.f32 0.0, %v966
      %v968 = vpop.f32.mrb[0].mxu0
      %969 = vmatprep.mubr.bf16.mxu0 0
      %970 = vmatmul.mubr.bf16.gmra.mrb[0].mxu0 %v821
      %v971 = vpop.f32.mrb[0].mxu0
      %v972 = vadd.f32 0.0, %v971
      %v973 = vpop.f32.mrb[0].mxu0
      %v974 = vpop.f32.mrb[0].mxu0
      %v975 = vadd.f32 0.0, %v974
      %v976 = vpop.f32.mrb[0].mxu0
      %977 = vmatprep.mubr.bf16.mxu0 0
      %978 = vmatmul.mubr.bf16.gmra.mrb[0].mxu0 %v824
      %v979 = vpop.f32.mrb[0].mxu0
      %v980 = vadd.f32 0.0, %v979
      %v981 = vpop.f32.mrb[0].mxu0
      %v982 = vpop.f32.mrb[0].mxu0
      %v983 = vadd.f32 0.0, %v982
      %v984 = vpop.f32.mrb[0].mxu0
      %985 = vmatprep.mubr.bf16.mxu0 0
      %986 = vmatmul.mubr.bf16.gmra.mrb[0].mxu0 %v827
      %v987 = vpop.f32.mrb[0].mxu0
      %v988 = vadd.f32 0.0, %v987
      %v989 = vpop.f32.mrb[0].mxu0
      %v990 = vpop.f32.mrb[0].mxu0
      %v991 = vadd.f32 0.0, %v990
      %v992 = vpop.f32.mrb[0].mxu0
      %993 = vdwg.mxu0
      %v1026 = vunpack.c.l.b16 %v288
      %v1027 = vunpack.c.l.b16 %v289
      %v1028 = vunpack.c.l.b16 %v291
      %v1029 = vunpack.c.l.b16 %v292
      %v1030 = vunpack.c.l.b16 %v294
      %v1031 = vunpack.c.l.b16 %v295
      %v1032 = vunpack.c.l.b16 %v297
      %v1033 = vunpack.c.l.b16 %v298
      %v1034 = vunpack.c.l.b16 %v300
      %v1035 = vunpack.c.l.b16 %v301
      %v1036 = vunpack.c.l.b16 %v303
      %v1037 = vunpack.c.l.b16 %v304
      %v1038 = vunpack.c.l.b16 %v306
      %v1039 = vunpack.c.l.b16 %v307
      %v1040 = vunpack.c.l.b16 %v309
      %v1041 = vunpack.c.l.b16 %v310
      %v1042 = vunpack.c.l.b16 %v312
      %v1043 = vunpack.c.l.b16 %v313
      %v1044 = vunpack.c.l.b16 %v315
      %v1045 = vunpack.c.l.b16 %v316
      %v1046 = vunpack.c.l.b16 %v318
      %v1047 = vunpack.c.l.b16 %v319
      %v1048 = vunpack.c.l.b16 %v321
      %v1049 = vunpack.c.l.b16 %v322
      %v1050 = vunpack.c.l.b16 %v324
      %v1051 = vunpack.c.l.b16 %v325
      %v1052 = vunpack.c.l.b16 %v327
      %v1053 = vunpack.c.l.b16 %v328
      %v1054 = vunpack.c.l.b16 %v330
      %v1055 = vunpack.c.l.b16 %v331
      %v1056 = vunpack.c.l.b16 %v333
      %v1057 = vunpack.c.l.b16 %v334
      %v1058 = vpack.c.b16 %v1027, %v1026
      %v1059 = vpack.c.b16 %v1029, %v1028
      %v1060 = vpack.c.b16 %v1031, %v1030
      %v1061 = vpack.c.b16 %v1033, %v1032
      %v1062 = vpack.c.b16 %v1035, %v1034
      %v1063 = vpack.c.b16 %v1037, %v1036
      %v1064 = vpack.c.b16 %v1039, %v1038
      %v1065 = vpack.c.b16 %v1041, %v1040
      %v1066 = vpack.c.b16 %v1043, %v1042
      %v1067 = vpack.c.b16 %v1045, %v1044
      %v1068 = vpack.c.b16 %v1047, %v1046
      %v1069 = vpack.c.b16 %v1049, %v1048
      %v1070 = vpack.c.b16 %v1051, %v1050
      %v1071 = vpack.c.b16 %v1053, %v1052
      %v1072 = vpack.c.b16 %v1055, %v1054
      %v1073 = vpack.c.b16 %v1057, %v1056
      %v1075 = vsel %vm780, %v1058, 0
      %v1078 = vsel %vm780, %v1059, 0
      %v1081 = vsel %vm780, %v1060, 0
      %v1084 = vsel %vm780, %v1061, 0
      %v1087 = vsel %vm780, %v1062, 0
      %v1090 = vsel %vm780, %v1063, 0
      %v1093 = vsel %vm780, %v1064, 0
      %v1096 = vsel %vm780, %v1065, 0
      %v1099 = vsel %vm780, %v1066, 0
      %v1102 = vsel %vm780, %v1067, 0
      %v1105 = vsel %vm780, %v1068, 0
      %v1108 = vsel %vm780, %v1069, 0
      %v1111 = vsel %vm780, %v1070, 0
      %v1114 = vsel %vm780, %v1071, 0
      %v1117 = vsel %vm780, %v1072, 0
      %v1120 = vsel %vm780, %v1073, 0
      %v1123 = vsel %vm829, %v342, 0
      %1125 = vmatprep.subr.bf16.mxu0 0
      %1126 = vmatpush1.bf16.msra.mxu0 %v1123
      %1127 = vmatprep.subr.bf16.mxu0 0
      %1128 = vmatpush1.bf16.msra.mxu0 0
      %1129 = vmatprep.subr.bf16.mxu0 0
      %1130 = vmatpush1.bf16.msra.mxu0 0
      %1131 = vmatprep.subr.bf16.mxu0 0
      %1132 = vmatpush1.bf16.msra.mxu0 0
      %1133 = vmatprep.subr.bf16.mxu0 0
      %1134 = vmatpush1.bf16.msra.mxu0 0
      %1135 = vmatprep.subr.bf16.mxu0 0
      %1136 = vmatpush1.bf16.msra.mxu0 0
      %1137 = vmatprep.subr.bf16.mxu0 0
      %1138 = vmatpush1.bf16.msra.mxu0 0
      %1139 = vmatprep.subr.bf16.mxu0 0
      %1140 = vmatpush1.bf16.msra.mxu0 0
      %1141 = vmatprep.subr.bf16.mxu0 0
      %1142 = vmatpush1.bf16.msra.mxu0 0
      %1143 = vmatprep.subr.bf16.mxu0 0
      %1144 = vmatpush1.bf16.msra.mxu0 0
      %1145 = vmatprep.subr.bf16.mxu0 0
      %1146 = vmatpush1.bf16.msra.mxu0 0
      %1147 = vmatprep.subr.bf16.mxu0 0
      %1148 = vmatpush1.bf16.msra.mxu0 0
      %1149 = vmatprep.subr.bf16.mxu0 0
      %1150 = vmatpush1.bf16.msra.mxu0 0
      %1151 = vmatprep.subr.bf16.mxu0 0
      %1152 = vmatpush1.bf16.msra.mxu0 0
      %1153 = vmatprep.subr.bf16.mxu0 0
      %1154 = vmatpush1.bf16.msra.mxu0 0
      %1155 = vmatprep.subr.bf16.mxu0 0
      %1156 = vmatpush1.bf16.msra.mxu0 0
      %1157 = vmatprep.mubr.bf16.mxu0 0
      %1158 = vmatmul.mubr.bf16.gmra.mrb[0].mxu0 %v1075
      %v1159 = vpop.f32.mrb[0].mxu0
      %v1160 = vadd.f32 %v868, %v1159
      %v1161 = vpop.f32.mrb[0].mxu0
      %v1162 = vpop.f32.mrb[0].mxu0
      %v1163 = vadd.f32 %v871, %v1162
      %v1164 = vpop.f32.mrb[0].mxu0
      %1165 = vmatprep.mubr.bf16.mxu0 0
      %1166 = vmatmul.mubr.bf16.gmra.mrb[0].mxu0 %v1078
      %v1167 = vpop.f32.mrb[0].mxu0
      %v1168 = vadd.f32 %v876, %v1167
      %v1169 = vpop.f32.mrb[0].mxu0
      %v1170 = vpop.f32.mrb[0].mxu0
      %v1171 = vadd.f32 %v879, %v1170
      %v1172 = vpop.f32.mrb[0].mxu0
      %1173 = vmatprep.mubr.bf16.mxu0 0
      %1174 = vmatmul.mubr.bf16.gmra.mrb[0].mxu0 %v1081
      %v1175 = vpop.f32.mrb[0].mxu0
      %v1176 = vadd.f32 %v884, %v1175
      %v1177 = vpop.f32.mrb[0].mxu0
      %v1178 = vpop.f32.mrb[0].mxu0
      %v1179 = vadd.f32 %v887, %v1178
      %v1180 = vpop.f32.mrb[0].mxu0
      %1181 = vmatprep.mubr.bf16.mxu0 0
      %1182 = vmatmul.mubr.bf16.gmra.mrb[0].mxu0 %v1084
      %v1183 = vpop.f32.mrb[0].mxu0
      %v1184 = vadd.f32 %v892, %v1183
      %v1185 = vpop.f32.mrb[0].mxu0
      %v1186 = vpop.f32.mrb[0].mxu0
      %v1187 = vadd.f32 %v895, %v1186
      %v1188 = vpop.f32.mrb[0].mxu0
      %1189 = vmatprep.mubr.bf16.mxu0 0
      %1190 = vmatmul.mubr.bf16.gmra.mrb[0].mxu0 %v1087
      %v1191 = vpop.f32.mrb[0].mxu0
      %v1192 = vadd.f32 %v900, %v1191
      %v1193 = vpop.f32.mrb[0].mxu0
      %v1194 = vpop.f32.mrb[0].mxu0
      %v1195 = vadd.f32 %v903, %v1194
      %v1196 = vpop.f32.mrb[0].mxu0
      %1197 = vmatprep.mubr.bf16.mxu0 0
      %1198 = vmatmul.mubr.bf16.gmra.mrb[0].mxu0 %v1090
      %v1199 = vpop.f32.mrb[0].mxu0
      %v1200 = vadd.f32 %v908, %v1199
      %v1201 = vpop.f32.mrb[0].mxu0
      %v1202 = vpop.f32.mrb[0].mxu0
      %v1203 = vadd.f32 %v911, %v1202
      %v1204 = vpop.f32.mrb[0].mxu0
      %1205 = vmatprep.mubr.bf16.mxu0 0
      %1206 = vmatmul.mubr.bf16.gmra.mrb[0].mxu0 %v1093
      %v1207 = vpop.f32.mrb[0].mxu0
      %v1208 = vadd.f32 %v916, %v1207
      %v1209 = vpop.f32.mrb[0].mxu0
      %v1210 = vpop.f32.mrb[0].mxu0
      %v1211 = vadd.f32 %v919, %v1210
      %v1212 = vpop.f32.mrb[0].mxu0
      %1213 = vmatprep.mubr.bf16.mxu0 0
      %1214 = vmatmul.mubr.bf16.gmra.mrb[0].mxu0 %v1096
      %v1215 = vpop.f32.mrb[0].mxu0
      %v1216 = vadd.f32 %v924, %v1215
      %v1217 = vpop.f32.mrb[0].mxu0
      %v1218 = vpop.f32.mrb[0].mxu0
      %v1219 = vadd.f32 %v927, %v1218
      %v1220 = vpop.f32.mrb[0].mxu0
      %1221 = vmatprep.mubr.bf16.mxu0 0
      %1222 = vmatmul.mubr.bf16.gmra.mrb[0].mxu0 %v1099
      %v1223 = vpop.f32.mrb[0].mxu0
      %v1224 = vadd.f32 %v932, %v1223
      %v1225 = vpop.f32.mrb[0].mxu0
      %v1226 = vpop.f32.mrb[0].mxu0
      %v1227 = vadd.f32 %v935, %v1226
      %v1228 = vpop.f32.mrb[0].mxu0
      %1229 = vmatprep.mubr.bf16.mxu0 0
      %1230 = vmatmul.mubr.bf16.gmra.mrb[0].mxu0 %v1102
      %v1231 = vpop.f32.mrb[0].mxu0
      %v1232 = vadd.f32 %v940, %v1231
      %v1233 = vpop.f32.mrb[0].mxu0
      %v1234 = vpop.f32.mrb[0].mxu0
      %v1235 = vadd.f32 %v943, %v1234
      %v1236 = vpop.f32.mrb[0].mxu0
      %1237 = vmatprep.mubr.bf16.mxu0 0
      %1238 = vmatmul.mubr.bf16.gmra.mrb[0].mxu0 %v1105
      %v1239 = vpop.f32.mrb[0].mxu0
      %v1240 = vadd.f32 %v948, %v1239
      %v1241 = vpop.f32.mrb[0].mxu0
      %v1242 = vpop.f32.mrb[0].mxu0
      %v1243 = vadd.f32 %v951, %v1242
      %v1244 = vpop.f32.mrb[0].mxu0
      %1245 = vmatprep.mubr.bf16.mxu0 0
      %1246 = vmatmul.mubr.bf16.gmra.mrb[0].mxu0 %v1108
      %v1247 = vpop.f32.mrb[0].mxu0
      %v1248 = vadd.f32 %v956, %v1247
      %v1249 = vpop.f32.mrb[0].mxu0
      %v1250 = vpop.f32.mrb[0].mxu0
      %v1251 = vadd.f32 %v959, %v1250
      %v1252 = vpop.f32.mrb[0].mxu0
      %1253 = vmatprep.mubr.bf16.mxu0 0
      %1254 = vmatmul.mubr.bf16.gmra.mrb[0].mxu0 %v1111
      %v1255 = vpop.f32.mrb[0].mxu0
      %v1256 = vadd.f32 %v964, %v1255
      %v1257 = vpop.f32.mrb[0].mxu0
      %v1258 = vpop.f32.mrb[0].mxu0
      %v1259 = vadd.f32 %v967, %v1258
      %v1260 = vpop.f32.mrb[0].mxu0
      %1261 = vmatprep.mubr.bf16.mxu0 0
      %1262 = vmatmul.mubr.bf16.gmra.mrb[0].mxu0 %v1114
      %v1263 = vpop.f32.mrb[0].mxu0
      %v1264 = vadd.f32 %v972, %v1263
      %v1265 = vpop.f32.mrb[0].mxu0
      %v1266 = vpop.f32.mrb[0].mxu0
      %v1267 = vadd.f32 %v975, %v1266
      %v1268 = vpop.f32.mrb[0].mxu0
      %1269 = vmatprep.mubr.bf16.mxu0 0
      %1270 = vmatmul.mubr.bf16.gmra.mrb[0].mxu0 %v1117
      %v1271 = vpop.f32.mrb[0].mxu0
      %v1272 = vadd.f32 %v980, %v1271
      %v1273 = vpop.f32.mrb[0].mxu0
      %v1274 = vpop.f32.mrb[0].mxu0
      %v1275 = vadd.f32 %v983, %v1274
      %v1276 = vpop.f32.mrb[0].mxu0
      %1277 = vmatprep.mubr.bf16.mxu0 0
      %1278 = vmatmul.mubr.bf16.gmra.mrb[0].mxu0 %v1120
      %v1279 = vpop.f32.mrb[0].mxu0
      %v1280 = vadd.f32 %v988, %v1279
      %v1281 = vpop.f32.mrb[0].mxu0
      %v1282 = vpop.f32.mrb[0].mxu0
      %v1283 = vadd.f32 %v991, %v1282
      %v1284 = vpop.f32.mrb[0].mxu0
      %1285 = vdwg.mxu0
      %vm1302 = vcmask 1042432
      %vm1303 = vcmask 1046532
      %vm1304 = vmor %vm1302, %vm1303
      %v1305 = vrot.slane %v288, 5
      %v1306 = vrot.slane %v1305, 4
      %v1307 = vrot.slane %v289, 5
      %v1308 = vsel %vm1304, %v1306, %v1307
      %v1309 = vrot.slane %v1307, 4
      %v1310 = vrot.slane %v290, 5
      %v1311 = vsel %vm1304, %v1309, %v1310
      %v1312 = vrot.slane %v291, 5
      %v1313 = vrot.slane %v1312, 4
      %v1314 = vrot.slane %v292, 5
      %v1315 = vsel %vm1304, %v1313, %v1314
      %v1316 = vrot.slane %v1314, 4
      %v1317 = vrot.slane %v293, 5
      %v1318 = vsel %vm1304, %v1316, %v1317
      %v1319 = vrot.slane %v294, 5
      %v1320 = vrot.slane %v1319, 4
      %v1321 = vrot.slane %v295, 5
      %v1322 = vsel %vm1304, %v1320, %v1321
      %v1323 = vrot.slane %v1321, 4
      %v1324 = vrot.slane %v296, 5
      %v1325 = vsel %vm1304, %v1323, %v1324
      %v1326 = vrot.slane %v297, 5
      %v1327 = vrot.slane %v1326, 4
      %v1328 = vrot.slane %v298, 5
      %v1329 = vsel %vm1304, %v1327, %v1328
      %v1330 = vrot.slane %v1328, 4
      %v1331 = vrot.slane %v299, 5
      %v1332 = vsel %vm1304, %v1330, %v1331
      %v1333 = vrot.slane %v300, 5
      %v1334 = vrot.slane %v1333, 4
      %v1335 = vrot.slane %v301, 5
      %v1336 = vsel %vm1304, %v1334, %v1335
      %v1337 = vrot.slane %v1335, 4
      %v1338 = vrot.slane %v302, 5
      %v1339 = vsel %vm1304, %v1337, %v1338
      %v1340 = vrot.slane %v303, 5
      %v1341 = vrot.slane %v1340, 4
      %v1342 = vrot.slane %v304, 5
      %v1343 = vsel %vm1304, %v1341, %v1342
      %v1344 = vrot.slane %v1342, 4
      %v1345 = vrot.slane %v305, 5
      %v1346 = vsel %vm1304, %v1344, %v1345
      %v1347 = vrot.slane %v306, 5
      %v1348 = vrot.slane %v1347, 4
      %v1349 = vrot.slane %v307, 5
      %v1350 = vsel %vm1304, %v1348, %v1349
      %v1351 = vrot.slane %v1349, 4
      %v1352 = vrot.slane %v308, 5
      %v1353 = vsel %vm1304, %v1351, %v1352
      %v1354 = vrot.slane %v309, 5
      %v1355 = vrot.slane %v1354, 4
      %v1356 = vrot.slane %v310, 5
      %v1357 = vsel %vm1304, %v1355, %v1356
      %v1358 = vrot.slane %v1356, 4
      %v1359 = vrot.slane %v311, 5
      %v1360 = vsel %vm1304, %v1358, %v1359
      %v1361 = vrot.slane %v312, 5
      %v1362 = vrot.slane %v1361, 4
      %v1363 = vrot.slane %v313, 5
      %v1364 = vsel %vm1304, %v1362, %v1363
      %v1365 = vrot.slane %v1363, 4
      %v1366 = vrot.slane %v314, 5
      %v1367 = vsel %vm1304, %v1365, %v1366
      %v1368 = vrot.slane %v315, 5
      %v1369 = vrot.slane %v1368, 4
      %v1370 = vrot.slane %v316, 5
      %v1371 = vsel %vm1304, %v1369, %v1370
      %v1372 = vrot.slane %v1370, 4
      %v1373 = vrot.slane %v317, 5
      %v1374 = vsel %vm1304, %v1372, %v1373
      %v1375 = vrot.slane %v318, 5
      %v1376 = vrot.slane %v1375, 4
      %v1377 = vrot.slane %v319, 5
      %v1378 = vsel %vm1304, %v1376, %v1377
      %v1379 = vrot.slane %v1377, 4
      %v1380 = vrot.slane %v320, 5
      %v1381 = vsel %vm1304, %v1379, %v1380
      %v1382 = vrot.slane %v321, 5
      %v1383 = vrot.slane %v1382, 4
      %v1384 = vrot.slane %v322, 5
      %v1385 = vsel %vm1304, %v1383, %v1384
      %v1386 = vrot.slane %v1384, 4
      %v1387 = vrot.slane %v323, 5
      %v1388 = vsel %vm1304, %v1386, %v1387
      %v1389 = vrot.slane %v324, 5
      %v1390 = vrot.slane %v1389, 4
      %v1391 = vrot.slane %v325, 5
      %v1392 = vsel %vm1304, %v1390, %v1391
      %v1393 = vrot.slane %v1391, 4
      %v1394 = vrot.slane %v326, 5
      %v1395 = vsel %vm1304, %v1393, %v1394
      %v1396 = vrot.slane %v327, 5
      %v1397 = vrot.slane %v1396, 4
      %v1398 = vrot.slane %v328, 5
      %v1399 = vsel %vm1304, %v1397, %v1398
      %v1400 = vrot.slane %v1398, 4
      %v1401 = vrot.slane %v329, 5
      %v1402 = vsel %vm1304, %v1400, %v1401
      %v1403 = vrot.slane %v330, 5
      %v1404 = vrot.slane %v1403, 4
      %v1405 = vrot.slane %v331, 5
      %v1406 = vsel %vm1304, %v1404, %v1405
      %v1407 = vrot.slane %v1405, 4
      %v1408 = vrot.slane %v332, 5
      %v1409 = vsel %vm1304, %v1407, %v1408
      %v1410 = vrot.slane %v333, 5
      %v1411 = vrot.slane %v1410, 4
      %v1412 = vrot.slane %v334, 5
      %v1413 = vsel %vm1304, %v1411, %v1412
      %v1414 = vrot.slane %v1412, 4
      %v1415 = vrot.slane %v335, 5
      %v1416 = vsel %vm1304, %v1414, %v1415
      %s1417 = scalar_lea.vmem %s262, 4
      %v1418 = vld [vmem:[%s1417] sm:$0x3]
      %v1419 = vunpack.c.l.b16 %v1308
      %v1420 = vunpack.c.l.b16 %v1311
      %v1421 = vunpack.c.l.b16 %v1315
      %v1422 = vunpack.c.l.b16 %v1318
      %v1423 = vunpack.c.l.b16 %v1322
      %v1424 = vunpack.c.l.b16 %v1325
      %v1425 = vunpack.c.l.b16 %v1329
      %v1426 = vunpack.c.l.b16 %v1332
      %v1427 = vunpack.c.l.b16 %v1336
      %v1428 = vunpack.c.l.b16 %v1339
      %v1429 = vunpack.c.l.b16 %v1343
      %v1430 = vunpack.c.l.b16 %v1346
      %v1431 = vunpack.c.l.b16 %v1350
      %v1432 = vunpack.c.l.b16 %v1353
      %v1433 = vunpack.c.l.b16 %v1357
      %v1434 = vunpack.c.l.b16 %v1360
      %v1435 = vunpack.c.l.b16 %v1364
      %v1436 = vunpack.c.l.b16 %v1367
      %v1437 = vunpack.c.l.b16 %v1371
      %v1438 = vunpack.c.l.b16 %v1374
      %v1439 = vunpack.c.l.b16 %v1378
      %v1440 = vunpack.c.l.b16 %v1381
      %v1441 = vunpack.c.l.b16 %v1385
      %v1442 = vunpack.c.l.b16 %v1388
      %v1443 = vunpack.c.l.b16 %v1392
      %v1444 = vunpack.c.l.b16 %v1395
      %v1445 = vunpack.c.l.b16 %v1399
      %v1446 = vunpack.c.l.b16 %v1402
      %v1447 = vunpack.c.l.b16 %v1406
      %v1448 = vunpack.c.l.b16 %v1409
      %v1449 = vunpack.c.l.b16 %v1413
      %v1450 = vunpack.c.l.b16 %v1416
      %v1451 = vpack.c.b16 %v1420, %v1419
      %v1452 = vpack.c.b16 %v1422, %v1421
      %v1453 = vpack.c.b16 %v1424, %v1423
      %v1454 = vpack.c.b16 %v1426, %v1425
      %v1455 = vpack.c.b16 %v1428, %v1427
      %v1456 = vpack.c.b16 %v1430, %v1429
      %v1457 = vpack.c.b16 %v1432, %v1431
      %v1458 = vpack.c.b16 %v1434, %v1433
      %v1459 = vpack.c.b16 %v1436, %v1435
      %v1460 = vpack.c.b16 %v1438, %v1437
      %v1461 = vpack.c.b16 %v1440, %v1439
      %v1462 = vpack.c.b16 %v1442, %v1441
      %v1463 = vpack.c.b16 %v1444, %v1443
      %v1464 = vpack.c.b16 %v1446, %v1445
      %v1465 = vpack.c.b16 %v1448, %v1447
      %v1466 = vpack.c.b16 %v1450, %v1449
      %v1468 = vsel %vm780, %v1451, 0
      %v1471 = vsel %vm780, %v1452, 0
      %v1474 = vsel %vm780, %v1453, 0
      %v1477 = vsel %vm780, %v1454, 0
      %v1480 = vsel %vm780, %v1455, 0
      %v1483 = vsel %vm780, %v1456, 0
      %v1486 = vsel %vm780, %v1457, 0
      %v1489 = vsel %vm780, %v1458, 0
      %v1492 = vsel %vm780, %v1459, 0
      %v1495 = vsel %vm780, %v1460, 0
      %v1498 = vsel %vm780, %v1461, 0
      %v1501 = vsel %vm780, %v1462, 0
      %v1504 = vsel %vm780, %v1463, 0
      %v1507 = vsel %vm780, %v1464, 0
      %v1510 = vsel %vm780, %v1465, 0
      %v1513 = vsel %vm780, %v1466, 0
      %v1516 = vsel %vm829, %v1418, 0
      %1518 = vmatprep.subr.bf16.mxu0 0
      %1519 = vmatpush1.bf16.msra.mxu0 %v1516
      %1520 = vmatprep.subr.bf16.mxu0 0
      %1521 = vmatpush1.bf16.msra.mxu0 0
      %1522 = vmatprep.subr.bf16.mxu0 0
      %1523 = vmatpush1.bf16.msra.mxu0 0
      %1524 = vmatprep.subr.bf16.mxu0 0
      %1525 = vmatpush1.bf16.msra.mxu0 0
      %1526 = vmatprep.subr.bf16.mxu0 0
      %1527 = vmatpush1.bf16.msra.mxu0 0
      %1528 = vmatprep.subr.bf16.mxu0 0
      %1529 = vmatpush1.bf16.msra.mxu0 0
      %1530 = vmatprep.subr.bf16.mxu0 0
      %1531 = vmatpush1.bf16.msra.mxu0 0
      %1532 = vmatprep.subr.bf16.mxu0 0
      %1533 = vmatpush1.bf16.msra.mxu0 0
      %1534 = vmatprep.subr.bf16.mxu0 0
      %1535 = vmatpush1.bf16.msra.mxu0 0
      %1536 = vmatprep.subr.bf16.mxu0 0
      %1537 = vmatpush1.bf16.msra.mxu0 0
      %1538 = vmatprep.subr.bf16.mxu0 0
      %1539 = vmatpush1.bf16.msra.mxu0 0
      %1540 = vmatprep.subr.bf16.mxu0 0
      %1541 = vmatpush1.bf16.msra.mxu0 0
      %1542 = vmatprep.subr.bf16.mxu0 0
      %1543 = vmatpush1.bf16.msra.mxu0 0
      %1544 = vmatprep.subr.bf16.mxu0 0
      %1545 = vmatpush1.bf16.msra.mxu0 0
      %1546 = vmatprep.subr.bf16.mxu0 0
      %1547 = vmatpush1.bf16.msra.mxu0 0
      %1548 = vmatprep.subr.bf16.mxu0 0
      %1549 = vmatpush1.bf16.msra.mxu0 0
      %1550 = vmatprep.mubr.bf16.mxu0 0
      %1551 = vmatmul.mubr.bf16.gmra.mrb[0].mxu0 %v1468
      %v1552 = vpop.f32.mrb[0].mxu0
      %v1553 = vadd.f32 0.0, %v1552
      %v1554 = vpop.f32.mrb[0].mxu0
      %v1555 = vpop.f32.mrb[0].mxu0
      %v1556 = vadd.f32 0.0, %v1555
      %v1557 = vpop.f32.mrb[0].mxu0
      %1558 = vmatprep.mubr.bf16.mxu0 0
      %1559 = vmatmul.mubr.bf16.gmra.mrb[0].mxu0 %v1471
      %v1560 = vpop.f32.mrb[0].mxu0
      %v1561 = vadd.f32 0.0, %v1560
      %v1562 = vpop.f32.mrb[0].mxu0
      %v1563 = vpop.f32.mrb[0].mxu0
      %v1564 = vadd.f32 0.0, %v1563
      %v1565 = vpop.f32.mrb[0].mxu0
      %1566 = vmatprep.mubr.bf16.mxu0 0
      %1567 = vmatmul.mubr.bf16.gmra.mrb[0].mxu0 %v1474
      %v1568 = vpop.f32.mrb[0].mxu0
      %v1569 = vadd.f32 0.0, %v1568
      %v1570 = vpop.f32.mrb[0].mxu0
      %v1571 = vpop.f32.mrb[0].mxu0
      %v1572 = vadd.f32 0.0, %v1571
      %v1573 = vpop.f32.mrb[0].mxu0
      %1574 = vmatprep.mubr.bf16.mxu0 0
      %1575 = vmatmul.mubr.bf16.gmra.mrb[0].mxu0 %v1477
      %v1576 = vpop.f32.mrb[0].mxu0
      %v1577 = vadd.f32 0.0, %v1576
      %v1578 = vpop.f32.mrb[0].mxu0
      %v1579 = vpop.f32.mrb[0].mxu0
      %v1580 = vadd.f32 0.0, %v1579
      %v1581 = vpop.f32.mrb[0].mxu0
      %1582 = vmatprep.mubr.bf16.mxu0 0
      %1583 = vmatmul.mubr.bf16.gmra.mrb[0].mxu0 %v1480
      %v1584 = vpop.f32.mrb[0].mxu0
      %v1585 = vadd.f32 0.0, %v1584
      %v1586 = vpop.f32.mrb[0].mxu0
      %v1587 = vpop.f32.mrb[0].mxu0
      %v1588 = vadd.f32 0.0, %v1587
      %v1589 = vpop.f32.mrb[0].mxu0
      %1590 = vmatprep.mubr.bf16.mxu0 0
      %1591 = vmatmul.mubr.bf16.gmra.mrb[0].mxu0 %v1483
      %v1592 = vpop.f32.mrb[0].mxu0
      %v1593 = vadd.f32 0.0, %v1592
      %v1594 = vpop.f32.mrb[0].mxu0
      %v1595 = vpop.f32.mrb[0].mxu0
      %v1596 = vadd.f32 0.0, %v1595
      %v1597 = vpop.f32.mrb[0].mxu0
      %1598 = vmatprep.mubr.bf16.mxu0 0
      %1599 = vmatmul.mubr.bf16.gmra.mrb[0].mxu0 %v1486
      %v1600 = vpop.f32.mrb[0].mxu0
      %v1601 = vadd.f32 0.0, %v1600
      %v1602 = vpop.f32.mrb[0].mxu0
      %v1603 = vpop.f32.mrb[0].mxu0
      %v1604 = vadd.f32 0.0, %v1603
      %v1605 = vpop.f32.mrb[0].mxu0
      %1606 = vmatprep.mubr.bf16.mxu0 0
      %1607 = vmatmul.mubr.bf16.gmra.mrb[0].mxu0 %v1489
      %v1608 = vpop.f32.mrb[0].mxu0
      %v1609 = vadd.f32 0.0, %v1608
      %v1610 = vpop.f32.mrb[0].mxu0
      %v1611 = vpop.f32.mrb[0].mxu0
      %v1612 = vadd.f32 0.0, %v1611
      %v1613 = vpop.f32.mrb[0].mxu0
      %1614 = vmatprep.mubr.bf16.mxu0 0
      %1615 = vmatmul.mubr.bf16.gmra.mrb[0].mxu0 %v1492
      %v1616 = vpop.f32.mrb[0].mxu0
      %v1617 = vadd.f32 0.0, %v1616
      %v1618 = vpop.f32.mrb[0].mxu0
      %v1619 = vpop.f32.mrb[0].mxu0
      %v1620 = vadd.f32 0.0, %v1619
      %v1621 = vpop.f32.mrb[0].mxu0
      %1622 = vmatprep.mubr.bf16.mxu0 0
      %1623 = vmatmul.mubr.bf16.gmra.mrb[0].mxu0 %v1495
      %v1624 = vpop.f32.mrb[0].mxu0
      %v1625 = vadd.f32 0.0, %v1624
      %v1626 = vpop.f32.mrb[0].mxu0
      %v1627 = vpop.f32.mrb[0].mxu0
      %v1628 = vadd.f32 0.0, %v1627
      %v1629 = vpop.f32.mrb[0].mxu0
      %1630 = vmatprep.mubr.bf16.mxu0 0
      %1631 = vmatmul.mubr.bf16.gmra.mrb[0].mxu0 %v1498
      %v1632 = vpop.f32.mrb[0].mxu0
      %v1633 = vadd.f32 0.0, %v1632
      %v1634 = vpop.f32.mrb[0].mxu0
      %v1635 = vpop.f32.mrb[0].mxu0
      %v1636 = vadd.f32 0.0, %v1635
      %v1637 = vpop.f32.mrb[0].mxu0
      %1638 = vmatprep.mubr.bf16.mxu0 0
      %1639 = vmatmul.mubr.bf16.gmra.mrb[0].mxu0 %v1501
      %v1640 = vpop.f32.mrb[0].mxu0
      %v1641 = vadd.f32 0.0, %v1640
      %v1642 = vpop.f32.mrb[0].mxu0
      %v1643 = vpop.f32.mrb[0].mxu0
      %v1644 = vadd.f32 0.0, %v1643
      %v1645 = vpop.f32.mrb[0].mxu0
      %1646 = vmatprep.mubr.bf16.mxu0 0
      %1647 = vmatmul.mubr.bf16.gmra.mrb[0].mxu0 %v1504
      %v1648 = vpop.f32.mrb[0].mxu0
      %v1649 = vadd.f32 0.0, %v1648
      %v1650 = vpop.f32.mrb[0].mxu0
      %v1651 = vpop.f32.mrb[0].mxu0
      %v1652 = vadd.f32 0.0, %v1651
      %v1653 = vpop.f32.mrb[0].mxu0
      %1654 = vmatprep.mubr.bf16.mxu0 0
      %1655 = vmatmul.mubr.bf16.gmra.mrb[0].mxu0 %v1507
      %v1656 = vpop.f32.mrb[0].mxu0
      %v1657 = vadd.f32 0.0, %v1656
      %v1658 = vpop.f32.mrb[0].mxu0
      %v1659 = vpop.f32.mrb[0].mxu0
      %v1660 = vadd.f32 0.0, %v1659
      %v1661 = vpop.f32.mrb[0].mxu0
      %1662 = vmatprep.mubr.bf16.mxu0 0
      %1663 = vmatmul.mubr.bf16.gmra.mrb[0].mxu0 %v1510
      %v1664 = vpop.f32.mrb[0].mxu0
      %v1665 = vadd.f32 0.0, %v1664
      %v1666 = vpop.f32.mrb[0].mxu0
      %v1667 = vpop.f32.mrb[0].mxu0
      %v1668 = vadd.f32 0.0, %v1667
      %v1669 = vpop.f32.mrb[0].mxu0
      %1670 = vmatprep.mubr.bf16.mxu0 0
      %1671 = vmatmul.mubr.bf16.gmra.mrb[0].mxu0 %v1513
      %v1672 = vpop.f32.mrb[0].mxu0
      %v1673 = vadd.f32 0.0, %v1672
      %v1674 = vpop.f32.mrb[0].mxu0
      %v1675 = vpop.f32.mrb[0].mxu0
      %v1676 = vadd.f32 0.0, %v1675
      %v1677 = vpop.f32.mrb[0].mxu0
      %1678 = vdwg.mxu0
      %v1679 = vadd.f32 %v1160, %v1553
      %v1680 = vadd.f32 %v1163, %v1556
      %v1681 = vadd.f32 %v1168, %v1561
      %v1682 = vadd.f32 %v1171, %v1564
      %v1683 = vadd.f32 %v1176, %v1569
      %v1684 = vadd.f32 %v1179, %v1572
      %v1685 = vadd.f32 %v1184, %v1577
      %v1686 = vadd.f32 %v1187, %v1580
      %v1687 = vadd.f32 %v1192, %v1585
      %v1688 = vadd.f32 %v1195, %v1588
      %v1689 = vadd.f32 %v1200, %v1593
      %v1690 = vadd.f32 %v1203, %v1596
      %v1691 = vadd.f32 %v1208, %v1601
      %v1692 = vadd.f32 %v1211, %v1604
      %v1693 = vadd.f32 %v1216, %v1609
      %v1694 = vadd.f32 %v1219, %v1612
      %v1695 = vadd.f32 %v1224, %v1617
      %v1696 = vadd.f32 %v1227, %v1620
      %v1697 = vadd.f32 %v1232, %v1625
      %v1698 = vadd.f32 %v1235, %v1628
      %v1699 = vadd.f32 %v1240, %v1633
      %v1700 = vadd.f32 %v1243, %v1636
      %v1701 = vadd.f32 %v1248, %v1641
      %v1702 = vadd.f32 %v1251, %v1644
      %v1703 = vadd.f32 %v1256, %v1649
      %v1704 = vadd.f32 %v1259, %v1652
      %v1705 = vadd.f32 %v1264, %v1657
      %v1706 = vadd.f32 %v1267, %v1660
      %v1707 = vadd.f32 %v1272, %v1665
      %v1708 = vadd.f32 %v1275, %v1668
      %v1709 = vadd.f32 %v1280, %v1673
      %v1710 = vadd.f32 %v1283, %v1676
      %s1711 = scalar_lea.vmem %s262, 6
      %v1712 = vld [vmem:[%s1711] sm:$0x3]
      %v1715 = vunpack.c.l.b16 %v336
      %v1716 = vunpack.c.l.b16 %v337
      %v1717 = vpack.c.b16 %v1716, %v1715
      %v1719 = vsel %vm780, %v1717, 0
      %v1722 = vsel %vm829, %v1712, 0
      %1724 = vmatprep.subr.bf16.mxu0 0
      %1725 = vmatpush1.bf16.msra.mxu0 %v1722
      %1726 = vmatprep.subr.bf16.mxu0 0
      %1727 = vmatpush1.bf16.msra.mxu0 0
      %1728 = vmatprep.subr.bf16.mxu0 0
      %1729 = vmatpush1.bf16.msra.mxu0 0
      %1730 = vmatprep.subr.bf16.mxu0 0
      %1731 = vmatpush1.bf16.msra.mxu0 0
      %1732 = vmatprep.subr.bf16.mxu0 0
      %1733 = vmatpush1.bf16.msra.mxu0 0
      %1734 = vmatprep.subr.bf16.mxu0 0
      %1735 = vmatpush1.bf16.msra.mxu0 0
      %1736 = vmatprep.subr.bf16.mxu0 0
      %1737 = vmatpush1.bf16.msra.mxu0 0
      %1738 = vmatprep.subr.bf16.mxu0 0
      %1739 = vmatpush1.bf16.msra.mxu0 0
      %1740 = vmatprep.subr.bf16.mxu0 0
      %1741 = vmatpush1.bf16.msra.mxu0 0
      %1742 = vmatprep.subr.bf16.mxu0 0
      %1743 = vmatpush1.bf16.msra.mxu0 0
      %1744 = vmatprep.subr.bf16.mxu0 0
      %1745 = vmatpush1.bf16.msra.mxu0 0
      %1746 = vmatprep.subr.bf16.mxu0 0
      %1747 = vmatpush1.bf16.msra.mxu0 0
      %1748 = vmatprep.subr.bf16.mxu0 0
      %1749 = vmatpush1.bf16.msra.mxu0 0
      %1750 = vmatprep.subr.bf16.mxu0 0
      %1751 = vmatpush1.bf16.msra.mxu0 0
      %1752 = vmatprep.subr.bf16.mxu0 0
      %1753 = vmatpush1.bf16.msra.mxu0 0
      %1754 = vmatprep.subr.bf16.mxu0 0
      %1755 = vmatpush1.bf16.msra.mxu0 0
      %1756 = vmatprep.mubr.bf16.mxu0 0
      %1757 = vmatmul.mubr.bf16.gmra.mrb[0].mxu0 %v1078
      %v1758 = vpop.f32.mrb[0].mxu0
      %v1759 = vadd.f32 0.0, %v1758
      %v1760 = vpop.f32.mrb[0].mxu0
      %v1761 = vpop.f32.mrb[0].mxu0
      %v1762 = vadd.f32 0.0, %v1761
      %v1763 = vpop.f32.mrb[0].mxu0
      %1764 = vmatprep.mubr.bf16.mxu0 0
      %1765 = vmatmul.mubr.bf16.gmra.mrb[0].mxu0 %v1081
      %v1766 = vpop.f32.mrb[0].mxu0
      %v1767 = vadd.f32 0.0, %v1766
      %v1768 = vpop.f32.mrb[0].mxu0
      %v1769 = vpop.f32.mrb[0].mxu0
      %v1770 = vadd.f32 0.0, %v1769
      %v1771 = vpop.f32.mrb[0].mxu0
      %1772 = vmatprep.mubr.bf16.mxu0 0
      %1773 = vmatmul.mubr.bf16.gmra.mrb[0].mxu0 %v1084
      %v1774 = vpop.f32.mrb[0].mxu0
      %v1775 = vadd.f32 0.0, %v1774
      %v1776 = vpop.f32.mrb[0].mxu0
      %v1777 = vpop.f32.mrb[0].mxu0
      %v1778 = vadd.f32 0.0, %v1777
      %v1779 = vpop.f32.mrb[0].mxu0
      %1780 = vmatprep.mubr.bf16.mxu0 0
      %1781 = vmatmul.mubr.bf16.gmra.mrb[0].mxu0 %v1087
      %v1782 = vpop.f32.mrb[0].mxu0
      %v1783 = vadd.f32 0.0, %v1782
      %v1784 = vpop.f32.mrb[0].mxu0
      %v1785 = vpop.f32.mrb[0].mxu0
      %v1786 = vadd.f32 0.0, %v1785
      %v1787 = vpop.f32.mrb[0].mxu0
      %1788 = vmatprep.mubr.bf16.mxu0 0
      %1789 = vmatmul.mubr.bf16.gmra.mrb[0].mxu0 %v1090
      %v1790 = vpop.f32.mrb[0].mxu0
      %v1791 = vadd.f32 0.0, %v1790
      %v1792 = vpop.f32.mrb[0].mxu0
      %v1793 = vpop.f32.mrb[0].mxu0
      %v1794 = vadd.f32 0.0, %v1793
      %v1795 = vpop.f32.mrb[0].mxu0
      %1796 = vmatprep.mubr.bf16.mxu0 0
      %1797 = vmatmul.mubr.bf16.gmra.mrb[0].mxu0 %v1093
      %v1798 = vpop.f32.mrb[0].mxu0
      %v1799 = vadd.f32 0.0, %v1798
      %v1800 = vpop.f32.mrb[0].mxu0
      %v1801 = vpop.f32.mrb[0].mxu0
      %v1802 = vadd.f32 0.0, %v1801
      %v1803 = vpop.f32.mrb[0].mxu0
      %1804 = vmatprep.mubr.bf16.mxu0 0
      %1805 = vmatmul.mubr.bf16.gmra.mrb[0].mxu0 %v1096
      %v1806 = vpop.f32.mrb[0].mxu0
      %v1807 = vadd.f32 0.0, %v1806
      %v1808 = vpop.f32.mrb[0].mxu0
      %v1809 = vpop.f32.mrb[0].mxu0
      %v1810 = vadd.f32 0.0, %v1809
      %v1811 = vpop.f32.mrb[0].mxu0
      %1812 = vmatprep.mubr.bf16.mxu0 0
      %1813 = vmatmul.mubr.bf16.gmra.mrb[0].mxu0 %v1099
      %v1814 = vpop.f32.mrb[0].mxu0
      %v1815 = vadd.f32 0.0, %v1814
      %v1816 = vpop.f32.mrb[0].mxu0
      %v1817 = vpop.f32.mrb[0].mxu0
      %v1818 = vadd.f32 0.0, %v1817
      %v1819 = vpop.f32.mrb[0].mxu0
      %1820 = vmatprep.mubr.bf16.mxu0 0
      %1821 = vmatmul.mubr.bf16.gmra.mrb[0].mxu0 %v1102
      %v1822 = vpop.f32.mrb[0].mxu0
      %v1823 = vadd.f32 0.0, %v1822
      %v1824 = vpop.f32.mrb[0].mxu0
      %v1825 = vpop.f32.mrb[0].mxu0
      %v1826 = vadd.f32 0.0, %v1825
      %v1827 = vpop.f32.mrb[0].mxu0
      %1828 = vmatprep.mubr.bf16.mxu0 0
      %1829 = vmatmul.mubr.bf16.gmra.mrb[0].mxu0 %v1105
      %v1830 = vpop.f32.mrb[0].mxu0
      %v1831 = vadd.f32 0.0, %v1830
      %v1832 = vpop.f32.mrb[0].mxu0
      %v1833 = vpop.f32.mrb[0].mxu0
      %v1834 = vadd.f32 0.0, %v1833
      %v1835 = vpop.f32.mrb[0].mxu0
      %1836 = vmatprep.mubr.bf16.mxu0 0
      %1837 = vmatmul.mubr.bf16.gmra.mrb[0].mxu0 %v1108
      %v1838 = vpop.f32.mrb[0].mxu0
      %v1839 = vadd.f32 0.0, %v1838
      %v1840 = vpop.f32.mrb[0].mxu0
      %v1841 = vpop.f32.mrb[0].mxu0
      %v1842 = vadd.f32 0.0, %v1841
      %v1843 = vpop.f32.mrb[0].mxu0
      %1844 = vmatprep.mubr.bf16.mxu0 0
      %1845 = vmatmul.mubr.bf16.gmra.mrb[0].mxu0 %v1111
      %v1846 = vpop.f32.mrb[0].mxu0
      %v1847 = vadd.f32 0.0, %v1846
      %v1848 = vpop.f32.mrb[0].mxu0
      %v1849 = vpop.f32.mrb[0].mxu0
      %v1850 = vadd.f32 0.0, %v1849
      %v1851 = vpop.f32.mrb[0].mxu0
      %1852 = vmatprep.mubr.bf16.mxu0 0
      %1853 = vmatmul.mubr.bf16.gmra.mrb[0].mxu0 %v1114
      %v1854 = vpop.f32.mrb[0].mxu0
      %v1855 = vadd.f32 0.0, %v1854
      %v1856 = vpop.f32.mrb[0].mxu0
      %v1857 = vpop.f32.mrb[0].mxu0
      %v1858 = vadd.f32 0.0, %v1857
      %v1859 = vpop.f32.mrb[0].mxu0
      %1860 = vmatprep.mubr.bf16.mxu0 0
      %1861 = vmatmul.mubr.bf16.gmra.mrb[0].mxu0 %v1117
      %v1862 = vpop.f32.mrb[0].mxu0
      %v1863 = vadd.f32 0.0, %v1862
      %v1864 = vpop.f32.mrb[0].mxu0
      %v1865 = vpop.f32.mrb[0].mxu0
      %v1866 = vadd.f32 0.0, %v1865
      %v1867 = vpop.f32.mrb[0].mxu0
      %1868 = vmatprep.mubr.bf16.mxu0 0
      %1869 = vmatmul.mubr.bf16.gmra.mrb[0].mxu0 %v1120
      %v1870 = vpop.f32.mrb[0].mxu0
      %v1871 = vadd.f32 0.0, %v1870
      %v1872 = vpop.f32.mrb[0].mxu0
      %v1873 = vpop.f32.mrb[0].mxu0
      %v1874 = vadd.f32 0.0, %v1873
      %v1875 = vpop.f32.mrb[0].mxu0
      %1876 = vmatprep.mubr.bf16.mxu0 0
      %1877 = vmatmul.mubr.bf16.gmra.mrb[0].mxu0 %v1719
      %v1878 = vpop.f32.mrb[0].mxu0
      %v1879 = vadd.f32 0.0, %v1878
      %v1880 = vpop.f32.mrb[0].mxu0
      %v1881 = vpop.f32.mrb[0].mxu0
      %v1882 = vadd.f32 0.0, %v1881
      %v1883 = vpop.f32.mrb[0].mxu0
      %1884 = vdwg.mxu0
      %v1885 = vadd.f32 %v1679, %v1759
      %v1886 = vadd.f32 %v1680, %v1762
      %v1887 = vadd.f32 %v1681, %v1767
      %v1888 = vadd.f32 %v1682, %v1770
      %v1889 = vadd.f32 %v1683, %v1775
      %v1890 = vadd.f32 %v1684, %v1778
      %v1891 = vadd.f32 %v1685, %v1783
      %v1892 = vadd.f32 %v1686, %v1786
      %v1893 = vadd.f32 %v1687, %v1791
      %v1894 = vadd.f32 %v1688, %v1794
      %v1895 = vadd.f32 %v1689, %v1799
      %v1896 = vadd.f32 %v1690, %v1802
      %v1897 = vadd.f32 %v1691, %v1807
      %v1898 = vadd.f32 %v1692, %v1810
      %v1899 = vadd.f32 %v1693, %v1815
      %v1900 = vadd.f32 %v1694, %v1818
      %v1901 = vadd.f32 %v1695, %v1823
      %v1902 = vadd.f32 %v1696, %v1826
      %v1903 = vadd.f32 %v1697, %v1831
      %v1904 = vadd.f32 %v1698, %v1834
      %v1905 = vadd.f32 %v1699, %v1839
      %v1906 = vadd.f32 %v1700, %v1842
      %v1907 = vadd.f32 %v1701, %v1847
      %v1908 = vadd.f32 %v1702, %v1850
      %v1909 = vadd.f32 %v1703, %v1855
      %v1910 = vadd.f32 %v1704, %v1858
      %v1911 = vadd.f32 %v1705, %v1863
      %v1912 = vadd.f32 %v1706, %v1866
      %v1913 = vadd.f32 %v1707, %v1871
      %v1914 = vadd.f32 %v1708, %v1874
      %v1915 = vadd.f32 %v1709, %v1879
      %v1916 = vadd.f32 %v1710, %v1882
      %v1918 = vshrl.u32 %v336, 16
      %v1920 = vrot.slane %v1918, 4
      %v1921 = vshll.u32 %v336, 16
      %v1923 = vrot.slane %v1921, 5
      %v1924 = vor.u32 %v1920, %v1923
      %v1925 = vrot.slane %v1924, 4
      %v1927 = vshll.u32 %v337, 16
      %v1929 = vrot.slane %v1927, 5
      %v1930 = vsel %vm345, %v1925, %v1929
      %v1931 = vshrl.u32 %v337, 16
      %v1933 = vrot.slane %v1931, 4
      %v1934 = vor.u32 %v1933, %v1929
      %v1935 = vrot.slane %v1934, 4
      %v1937 = vshll.u32 %v338, 16
      %v1939 = vrot.slane %v1937, 5
      %v1940 = vsel %vm345, %v1935, %v1939
      %s1941 = scalar_lea.vmem %s262, 8
      %v1942 = vld [vmem:[%s1941] sm:$0x3]
      %v1943 = vunpack.c.l.b16 %v1930
      %v1944 = vunpack.c.l.b16 %v1940
      %v1945 = vpack.c.b16 %v1944, %v1943
      %v1947 = vsel %vm780, %v1945, 0
      %v1950 = vsel %vm829, %v1942, 0
      %1952 = vmatprep.subr.bf16.mxu0 0
      %1953 = vmatpush1.bf16.msra.mxu0 %v1950
      %1954 = vmatprep.subr.bf16.mxu0 0
      %1955 = vmatpush1.bf16.msra.mxu0 0
      %1956 = vmatprep.subr.bf16.mxu0 0
      %1957 = vmatpush1.bf16.msra.mxu0 0
      %1958 = vmatprep.subr.bf16.mxu0 0
      %1959 = vmatpush1.bf16.msra.mxu0 0
      %1960 = vmatprep.subr.bf16.mxu0 0
      %1961 = vmatpush1.bf16.msra.mxu0 0
      %1962 = vmatprep.subr.bf16.mxu0 0
      %1963 = vmatpush1.bf16.msra.mxu0 0
      %1964 = vmatprep.subr.bf16.mxu0 0
      %1965 = vmatpush1.bf16.msra.mxu0 0
      %1966 = vmatprep.subr.bf16.mxu0 0
      %1967 = vmatpush1.bf16.msra.mxu0 0
      %1968 = vmatprep.subr.bf16.mxu0 0
      %1969 = vmatpush1.bf16.msra.mxu0 0
      %1970 = vmatprep.subr.bf16.mxu0 0
      %1971 = vmatpush1.bf16.msra.mxu0 0
      %1972 = vmatprep.subr.bf16.mxu0 0
      %1973 = vmatpush1.bf16.msra.mxu0 0
      %1974 = vmatprep.subr.bf16.mxu0 0
      %1975 = vmatpush1.bf16.msra.mxu0 0
      %1976 = vmatprep.subr.bf16.mxu0 0
      %1977 = vmatpush1.bf16.msra.mxu0 0
      %1978 = vmatprep.subr.bf16.mxu0 0
      %1979 = vmatpush1.bf16.msra.mxu0 0
      %1980 = vmatprep.subr.bf16.mxu0 0
      %1981 = vmatpush1.bf16.msra.mxu0 0
      %1982 = vmatprep.subr.bf16.mxu0 0
      %1983 = vmatpush1.bf16.msra.mxu0 0
      %1984 = vmatprep.mubr.bf16.mxu0 0
      %1985 = vmatmul.mubr.bf16.gmra.mrb[0].mxu0 %v785
      %v1986 = vpop.f32.mrb[0].mxu0
      %v1987 = vadd.f32 0.0, %v1986
      %v1988 = vpop.f32.mrb[0].mxu0
      %v1989 = vpop.f32.mrb[0].mxu0
      %v1990 = vadd.f32 0.0, %v1989
      %v1991 = vpop.f32.mrb[0].mxu0
      %1992 = vmatprep.mubr.bf16.mxu0 0
      %1993 = vmatmul.mubr.bf16.gmra.mrb[0].mxu0 %v788
      %v1994 = vpop.f32.mrb[0].mxu0
      %v1995 = vadd.f32 0.0, %v1994
      %v1996 = vpop.f32.mrb[0].mxu0
      %v1997 = vpop.f32.mrb[0].mxu0
      %v1998 = vadd.f32 0.0, %v1997
      %v1999 = vpop.f32.mrb[0].mxu0
      %2000 = vmatprep.mubr.bf16.mxu0 0
      %2001 = vmatmul.mubr.bf16.gmra.mrb[0].mxu0 %v791
      %v2002 = vpop.f32.mrb[0].mxu0
      %v2003 = vadd.f32 0.0, %v2002
      %v2004 = vpop.f32.mrb[0].mxu0
      %v2005 = vpop.f32.mrb[0].mxu0
      %v2006 = vadd.f32 0.0, %v2005
      %v2007 = vpop.f32.mrb[0].mxu0
      %2008 = vmatprep.mubr.bf16.mxu0 0
      %2009 = vmatmul.mubr.bf16.gmra.mrb[0].mxu0 %v794
      %v2010 = vpop.f32.mrb[0].mxu0
      %v2011 = vadd.f32 0.0, %v2010
      %v2012 = vpop.f32.mrb[0].mxu0
      %v2013 = vpop.f32.mrb[0].mxu0
      %v2014 = vadd.f32 0.0, %v2013
      %v2015 = vpop.f32.mrb[0].mxu0
      %2016 = vmatprep.mubr.bf16.mxu0 0
      %2017 = vmatmul.mubr.bf16.gmra.mrb[0].mxu0 %v797
      %v2018 = vpop.f32.mrb[0].mxu0
      %v2019 = vadd.f32 0.0, %v2018
      %v2020 = vpop.f32.mrb[0].mxu0
      %v2021 = vpop.f32.mrb[0].mxu0
      %v2022 = vadd.f32 0.0, %v2021
      %v2023 = vpop.f32.mrb[0].mxu0
      %2024 = vmatprep.mubr.bf16.mxu0 0
      %2025 = vmatmul.mubr.bf16.gmra.mrb[0].mxu0 %v800
      %v2026 = vpop.f32.mrb[0].mxu0
      %v2027 = vadd.f32 0.0, %v2026
      %v2028 = vpop.f32.mrb[0].mxu0
      %v2029 = vpop.f32.mrb[0].mxu0
      %v2030 = vadd.f32 0.0, %v2029
      %v2031 = vpop.f32.mrb[0].mxu0
      %2032 = vmatprep.mubr.bf16.mxu0 0
      %2033 = vmatmul.mubr.bf16.gmra.mrb[0].mxu0 %v803
      %v2034 = vpop.f32.mrb[0].mxu0
      %v2035 = vadd.f32 0.0, %v2034
      %v2036 = vpop.f32.mrb[0].mxu0
      %v2037 = vpop.f32.mrb[0].mxu0
      %v2038 = vadd.f32 0.0, %v2037
      %v2039 = vpop.f32.mrb[0].mxu0
      %2040 = vmatprep.mubr.bf16.mxu0 0
      %2041 = vmatmul.mubr.bf16.gmra.mrb[0].mxu0 %v806
      %v2042 = vpop.f32.mrb[0].mxu0
      %v2043 = vadd.f32 0.0, %v2042
      %v2044 = vpop.f32.mrb[0].mxu0
      %v2045 = vpop.f32.mrb[0].mxu0
      %v2046 = vadd.f32 0.0, %v2045
      %v2047 = vpop.f32.mrb[0].mxu0
      %2048 = vmatprep.mubr.bf16.mxu0 0
      %2049 = vmatmul.mubr.bf16.gmra.mrb[0].mxu0 %v809
      %v2050 = vpop.f32.mrb[0].mxu0
      %v2051 = vadd.f32 0.0, %v2050
      %v2052 = vpop.f32.mrb[0].mxu0
      %v2053 = vpop.f32.mrb[0].mxu0
      %v2054 = vadd.f32 0.0, %v2053
      %v2055 = vpop.f32.mrb[0].mxu0
      %2056 = vmatprep.mubr.bf16.mxu0 0
      %2057 = vmatmul.mubr.bf16.gmra.mrb[0].mxu0 %v812
      %v2058 = vpop.f32.mrb[0].mxu0
      %v2059 = vadd.f32 0.0, %v2058
      %v2060 = vpop.f32.mrb[0].mxu0
      %v2061 = vpop.f32.mrb[0].mxu0
      %v2062 = vadd.f32 0.0, %v2061
      %v2063 = vpop.f32.mrb[0].mxu0
      %2064 = vmatprep.mubr.bf16.mxu0 0
      %2065 = vmatmul.mubr.bf16.gmra.mrb[0].mxu0 %v815
      %v2066 = vpop.f32.mrb[0].mxu0
      %v2067 = vadd.f32 0.0, %v2066
      %v2068 = vpop.f32.mrb[0].mxu0
      %v2069 = vpop.f32.mrb[0].mxu0
      %v2070 = vadd.f32 0.0, %v2069
      %v2071 = vpop.f32.mrb[0].mxu0
      %2072 = vmatprep.mubr.bf16.mxu0 0
      %2073 = vmatmul.mubr.bf16.gmra.mrb[0].mxu0 %v818
      %v2074 = vpop.f32.mrb[0].mxu0
      %v2075 = vadd.f32 0.0, %v2074
      %v2076 = vpop.f32.mrb[0].mxu0
      %v2077 = vpop.f32.mrb[0].mxu0
      %v2078 = vadd.f32 0.0, %v2077
      %v2079 = vpop.f32.mrb[0].mxu0
      %2080 = vmatprep.mubr.bf16.mxu0 0
      %2081 = vmatmul.mubr.bf16.gmra.mrb[0].mxu0 %v821
      %v2082 = vpop.f32.mrb[0].mxu0
      %v2083 = vadd.f32 0.0, %v2082
      %v2084 = vpop.f32.mrb[0].mxu0
      %v2085 = vpop.f32.mrb[0].mxu0
      %v2086 = vadd.f32 0.0, %v2085
      %v2087 = vpop.f32.mrb[0].mxu0
      %2088 = vmatprep.mubr.bf16.mxu0 0
      %2089 = vmatmul.mubr.bf16.gmra.mrb[0].mxu0 %v824
      %v2090 = vpop.f32.mrb[0].mxu0
      %v2091 = vadd.f32 0.0, %v2090
      %v2092 = vpop.f32.mrb[0].mxu0
      %v2093 = vpop.f32.mrb[0].mxu0
      %v2094 = vadd.f32 0.0, %v2093
      %v2095 = vpop.f32.mrb[0].mxu0
      %2096 = vmatprep.mubr.bf16.mxu0 0
      %2097 = vmatmul.mubr.bf16.gmra.mrb[0].mxu0 %v827
      %v2098 = vpop.f32.mrb[0].mxu0
      %v2099 = vadd.f32 0.0, %v2098
      %v2100 = vpop.f32.mrb[0].mxu0
      %v2101 = vpop.f32.mrb[0].mxu0
      %v2102 = vadd.f32 0.0, %v2101
      %v2103 = vpop.f32.mrb[0].mxu0
      %2104 = vmatprep.mubr.bf16.mxu0 0
      %2105 = vmatmul.mubr.bf16.gmra.mrb[0].mxu0 %v1947
      %v2106 = vpop.f32.mrb[0].mxu0
      %v2107 = vadd.f32 0.0, %v2106
      %v2108 = vpop.f32.mrb[0].mxu0
      %v2109 = vpop.f32.mrb[0].mxu0
      %v2110 = vadd.f32 0.0, %v2109
      %v2111 = vpop.f32.mrb[0].mxu0
      %2112 = vdwg.mxu0
      %v2113 = vadd.f32 %v1885, %v1987
      %v2114 = vadd.f32 %v1886, %v1990
      %v2115 = vadd.f32 %v1887, %v1995
      %v2116 = vadd.f32 %v1888, %v1998
      %v2117 = vadd.f32 %v1889, %v2003
      %v2118 = vadd.f32 %v1890, %v2006
      %v2119 = vadd.f32 %v1891, %v2011
      %v2120 = vadd.f32 %v1892, %v2014
      %v2121 = vadd.f32 %v1893, %v2019
      %v2122 = vadd.f32 %v1894, %v2022
      %v2123 = vadd.f32 %v1895, %v2027
      %v2124 = vadd.f32 %v1896, %v2030
      %v2125 = vadd.f32 %v1897, %v2035
      %v2126 = vadd.f32 %v1898, %v2038
      %v2127 = vadd.f32 %v1899, %v2043
      %v2128 = vadd.f32 %v1900, %v2046
      %v2129 = vadd.f32 %v1901, %v2051
      %v2130 = vadd.f32 %v1902, %v2054
      %v2131 = vadd.f32 %v1903, %v2059
      %v2132 = vadd.f32 %v1904, %v2062
      %v2133 = vadd.f32 %v1905, %v2067
      %v2134 = vadd.f32 %v1906, %v2070
      %v2135 = vadd.f32 %v1907, %v2075
      %v2136 = vadd.f32 %v1908, %v2078
      %v2137 = vadd.f32 %v1909, %v2083
      %v2138 = vadd.f32 %v1910, %v2086
      %v2139 = vadd.f32 %v1911, %v2091
      %v2140 = vadd.f32 %v1912, %v2094
      %v2141 = vadd.f32 %v1913, %v2099
      %v2142 = vadd.f32 %v1914, %v2102
      %v2143 = vadd.f32 %v1915, %v2107
      %v2144 = vadd.f32 %v1916, %v2110
      %v2146 = vrot.slane %v336, 5
      %v2147 = vrot.slane %v2146, 4
      %v2148 = vrot.slane %v337, 5
      %v2149 = vsel %vm1304, %v2147, %v2148
      %v2150 = vrot.slane %v2148, 4
      %v2151 = vrot.slane %v338, 5
      %v2152 = vsel %vm1304, %v2150, %v2151
      %s2153 = scalar_lea.vmem %s262, 10
      %v2154 = vld [vmem:[%s2153] sm:$0x3]
      %v2155 = vunpack.c.l.b16 %v2149
      %v2156 = vunpack.c.l.b16 %v2152
      %v2157 = vpack.c.b16 %v2156, %v2155
      %v2159 = vsel %vm780, %v2157, 0
      %v2162 = vsel %vm829, %v2154, 0
      %2164 = vmatprep.subr.bf16.mxu0 0
      %2165 = vmatpush1.bf16.msra.mxu0 %v2162
      %2166 = vmatprep.subr.bf16.mxu0 0
      %2167 = vmatpush1.bf16.msra.mxu0 0
      %2168 = vmatprep.subr.bf16.mxu0 0
      %2169 = vmatpush1.bf16.msra.mxu0 0
      %2170 = vmatprep.subr.bf16.mxu0 0
      %2171 = vmatpush1.bf16.msra.mxu0 0
      %2172 = vmatprep.subr.bf16.mxu0 0
      %2173 = vmatpush1.bf16.msra.mxu0 0
      %2174 = vmatprep.subr.bf16.mxu0 0
      %2175 = vmatpush1.bf16.msra.mxu0 0
      %2176 = vmatprep.subr.bf16.mxu0 0
      %2177 = vmatpush1.bf16.msra.mxu0 0
      %2178 = vmatprep.subr.bf16.mxu0 0
      %2179 = vmatpush1.bf16.msra.mxu0 0
      %2180 = vmatprep.subr.bf16.mxu0 0
      %2181 = vmatpush1.bf16.msra.mxu0 0
      %2182 = vmatprep.subr.bf16.mxu0 0
      %2183 = vmatpush1.bf16.msra.mxu0 0
      %2184 = vmatprep.subr.bf16.mxu0 0
      %2185 = vmatpush1.bf16.msra.mxu0 0
      %2186 = vmatprep.subr.bf16.mxu0 0
      %2187 = vmatpush1.bf16.msra.mxu0 0
      %2188 = vmatprep.subr.bf16.mxu0 0
      %2189 = vmatpush1.bf16.msra.mxu0 0
      %2190 = vmatprep.subr.bf16.mxu0 0
      %2191 = vmatpush1.bf16.msra.mxu0 0
      %2192 = vmatprep.subr.bf16.mxu0 0
      %2193 = vmatpush1.bf16.msra.mxu0 0
      %2194 = vmatprep.subr.bf16.mxu0 0
      %2195 = vmatpush1.bf16.msra.mxu0 0
      %2196 = vmatprep.mubr.bf16.mxu0 0
      %2197 = vmatmul.mubr.bf16.gmra.mrb[0].mxu0 %v1471
      %v2198 = vpop.f32.mrb[0].mxu0
      %v2199 = vadd.f32 0.0, %v2198
      %v2200 = vpop.f32.mrb[0].mxu0
      %v2201 = vpop.f32.mrb[0].mxu0
      %v2202 = vadd.f32 0.0, %v2201
      %v2203 = vpop.f32.mrb[0].mxu0
      %2204 = vmatprep.mubr.bf16.mxu0 0
      %2205 = vmatmul.mubr.bf16.gmra.mrb[0].mxu0 %v1474
      %v2206 = vpop.f32.mrb[0].mxu0
      %v2207 = vadd.f32 0.0, %v2206
      %v2208 = vpop.f32.mrb[0].mxu0
      %v2209 = vpop.f32.mrb[0].mxu0
      %v2210 = vadd.f32 0.0, %v2209
      %v2211 = vpop.f32.mrb[0].mxu0
      %2212 = vmatprep.mubr.bf16.mxu0 0
      %2213 = vmatmul.mubr.bf16.gmra.mrb[0].mxu0 %v1477
      %v2214 = vpop.f32.mrb[0].mxu0
      %v2215 = vadd.f32 0.0, %v2214
      %v2216 = vpop.f32.mrb[0].mxu0
      %v2217 = vpop.f32.mrb[0].mxu0
      %v2218 = vadd.f32 0.0, %v2217
      %v2219 = vpop.f32.mrb[0].mxu0
      %2220 = vmatprep.mubr.bf16.mxu0 0
      %2221 = vmatmul.mubr.bf16.gmra.mrb[0].mxu0 %v1480
      %v2222 = vpop.f32.mrb[0].mxu0
      %v2223 = vadd.f32 0.0, %v2222
      %v2224 = vpop.f32.mrb[0].mxu0
      %v2225 = vpop.f32.mrb[0].mxu0
      %v2226 = vadd.f32 0.0, %v2225
      %v2227 = vpop.f32.mrb[0].mxu0
      %2228 = vmatprep.mubr.bf16.mxu0 0
      %2229 = vmatmul.mubr.bf16.gmra.mrb[0].mxu0 %v1483
      %v2230 = vpop.f32.mrb[0].mxu0
      %v2231 = vadd.f32 0.0, %v2230
      %v2232 = vpop.f32.mrb[0].mxu0
      %v2233 = vpop.f32.mrb[0].mxu0
      %v2234 = vadd.f32 0.0, %v2233
      %v2235 = vpop.f32.mrb[0].mxu0
      %2236 = vmatprep.mubr.bf16.mxu0 0
      %2237 = vmatmul.mubr.bf16.gmra.mrb[0].mxu0 %v1486
      %v2238 = vpop.f32.mrb[0].mxu0
      %v2239 = vadd.f32 0.0, %v2238
      %v2240 = vpop.f32.mrb[0].mxu0
      %v2241 = vpop.f32.mrb[0].mxu0
      %v2242 = vadd.f32 0.0, %v2241
      %v2243 = vpop.f32.mrb[0].mxu0
      %2244 = vmatprep.mubr.bf16.mxu0 0
      %2245 = vmatmul.mubr.bf16.gmra.mrb[0].mxu0 %v1489
      %v2246 = vpop.f32.mrb[0].mxu0
      %v2247 = vadd.f32 0.0, %v2246
      %v2248 = vpop.f32.mrb[0].mxu0
      %v2249 = vpop.f32.mrb[0].mxu0
      %v2250 = vadd.f32 0.0, %v2249
      %v2251 = vpop.f32.mrb[0].mxu0
      %2252 = vmatprep.mubr.bf16.mxu0 0
      %2253 = vmatmul.mubr.bf16.gmra.mrb[0].mxu0 %v1492
      %v2254 = vpop.f32.mrb[0].mxu0
      %v2255 = vadd.f32 0.0, %v2254
      %v2256 = vpop.f32.mrb[0].mxu0
      %v2257 = vpop.f32.mrb[0].mxu0
      %v2258 = vadd.f32 0.0, %v2257
      %v2259 = vpop.f32.mrb[0].mxu0
      %2260 = vmatprep.mubr.bf16.mxu0 0
      %2261 = vmatmul.mubr.bf16.gmra.mrb[0].mxu0 %v1495
      %v2262 = vpop.f32.mrb[0].mxu0
      %v2263 = vadd.f32 0.0, %v2262
      %v2264 = vpop.f32.mrb[0].mxu0
      %v2265 = vpop.f32.mrb[0].mxu0
      %v2266 = vadd.f32 0.0, %v2265
      %v2267 = vpop.f32.mrb[0].mxu0
      %2268 = vmatprep.mubr.bf16.mxu0 0
      %2269 = vmatmul.mubr.bf16.gmra.mrb[0].mxu0 %v1498
      %v2270 = vpop.f32.mrb[0].mxu0
      %v2271 = vadd.f32 0.0, %v2270
      %v2272 = vpop.f32.mrb[0].mxu0
      %v2273 = vpop.f32.mrb[0].mxu0
      %v2274 = vadd.f32 0.0, %v2273
      %v2275 = vpop.f32.mrb[0].mxu0
      %2276 = vmatprep.mubr.bf16.mxu0 0
      %2277 = vmatmul.mubr.bf16.gmra.mrb[0].mxu0 %v1501
      %v2278 = vpop.f32.mrb[0].mxu0
      %v2279 = vadd.f32 0.0, %v2278
      %v2280 = vpop.f32.mrb[0].mxu0
      %v2281 = vpop.f32.mrb[0].mxu0
      %v2282 = vadd.f32 0.0, %v2281
      %v2283 = vpop.f32.mrb[0].mxu0
      %2284 = vmatprep.mubr.bf16.mxu0 0
      %2285 = vmatmul.mubr.bf16.gmra.mrb[0].mxu0 %v1504
      %v2286 = vpop.f32.mrb[0].mxu0
      %v2287 = vadd.f32 0.0, %v2286
      %v2288 = vpop.f32.mrb[0].mxu0
      %v2289 = vpop.f32.mrb[0].mxu0
      %v2290 = vadd.f32 0.0, %v2289
      %v2291 = vpop.f32.mrb[0].mxu0
      %2292 = vmatprep.mubr.bf16.mxu0 0
      %2293 = vmatmul.mubr.bf16.gmra.mrb[0].mxu0 %v1507
      %v2294 = vpop.f32.mrb[0].mxu0
      %v2295 = vadd.f32 0.0, %v2294
      %v2296 = vpop.f32.mrb[0].mxu0
      %v2297 = vpop.f32.mrb[0].mxu0
      %v2298 = vadd.f32 0.0, %v2297
      %v2299 = vpop.f32.mrb[0].mxu0
      %2300 = vmatprep.mubr.bf16.mxu0 0
      %2301 = vmatmul.mubr.bf16.gmra.mrb[0].mxu0 %v1510
      %v2302 = vpop.f32.mrb[0].mxu0
      %v2303 = vadd.f32 0.0, %v2302
      %v2304 = vpop.f32.mrb[0].mxu0
      %v2305 = vpop.f32.mrb[0].mxu0
      %v2306 = vadd.f32 0.0, %v2305
      %v2307 = vpop.f32.mrb[0].mxu0
      %2308 = vmatprep.mubr.bf16.mxu0 0
      %2309 = vmatmul.mubr.bf16.gmra.mrb[0].mxu0 %v1513
      %v2310 = vpop.f32.mrb[0].mxu0
      %v2311 = vadd.f32 0.0, %v2310
      %v2312 = vpop.f32.mrb[0].mxu0
      %v2313 = vpop.f32.mrb[0].mxu0
      %v2314 = vadd.f32 0.0, %v2313
      %v2315 = vpop.f32.mrb[0].mxu0
      %2316 = vmatprep.mubr.bf16.mxu0 0
      %2317 = vmatmul.mubr.bf16.gmra.mrb[0].mxu0 %v2159
      %v2318 = vpop.f32.mrb[0].mxu0
      %v2319 = vadd.f32 0.0, %v2318
      %v2320 = vpop.f32.mrb[0].mxu0
      %v2321 = vpop.f32.mrb[0].mxu0
      %v2322 = vadd.f32 0.0, %v2321
      %v2323 = vpop.f32.mrb[0].mxu0
      %2324 = vdwg.mxu0
      %v2325 = vadd.f32 %v2113, %v2199
      %v2326 = vadd.f32 %v2114, %v2202
      %v2327 = vadd.f32 %v2115, %v2207
      %v2328 = vadd.f32 %v2116, %v2210
      %v2329 = vadd.f32 %v2117, %v2215
      %v2330 = vadd.f32 %v2118, %v2218
      %v2331 = vadd.f32 %v2119, %v2223
      %v2332 = vadd.f32 %v2120, %v2226
      %v2333 = vadd.f32 %v2121, %v2231
      %v2334 = vadd.f32 %v2122, %v2234
      %v2335 = vadd.f32 %v2123, %v2239
      %v2336 = vadd.f32 %v2124, %v2242
      %v2337 = vadd.f32 %v2125, %v2247
      %v2338 = vadd.f32 %v2126, %v2250
      %v2339 = vadd.f32 %v2127, %v2255
      %v2340 = vadd.f32 %v2128, %v2258
      %v2341 = vadd.f32 %v2129, %v2263
      %v2342 = vadd.f32 %v2130, %v2266
      %v2343 = vadd.f32 %v2131, %v2271
      %v2344 = vadd.f32 %v2132, %v2274
      %v2345 = vadd.f32 %v2133, %v2279
      %v2346 = vadd.f32 %v2134, %v2282
      %v2347 = vadd.f32 %v2135, %v2287
      %v2348 = vadd.f32 %v2136, %v2290
      %v2349 = vadd.f32 %v2137, %v2295
      %v2350 = vadd.f32 %v2138, %v2298
      %v2351 = vadd.f32 %v2139, %v2303
      %v2352 = vadd.f32 %v2140, %v2306
      %v2353 = vadd.f32 %v2141, %v2311
      %v2354 = vadd.f32 %v2142, %v2314
      %v2355 = vadd.f32 %v2143, %v2319
      %v2356 = vadd.f32 %v2144, %v2322
      %s2357 = scalar_lea.vmem %s262, 12
      %v2358 = vld [vmem:[%s2357] sm:$0x3]
      %v2361 = vunpack.c.l.b16 %v339
      %v2362 = vunpack.c.l.b16 %v340
      %v2363 = vpack.c.b16 %v2362, %v2361
      %v2365 = vsel %vm780, %v2363, 0
      %v2368 = vsel %vm829, %v2358, 0
      %2370 = vmatprep.subr.bf16.mxu0 0
      %2371 = vmatpush1.bf16.msra.mxu0 %v2368
      %2372 = vmatprep.subr.bf16.mxu0 0
      %2373 = vmatpush1.bf16.msra.mxu0 0
      %2374 = vmatprep.subr.bf16.mxu0 0
      %2375 = vmatpush1.bf16.msra.mxu0 0
      %2376 = vmatprep.subr.bf16.mxu0 0
      %2377 = vmatpush1.bf16.msra.mxu0 0
      %2378 = vmatprep.subr.bf16.mxu0 0
      %2379 = vmatpush1.bf16.msra.mxu0 0
      %2380 = vmatprep.subr.bf16.mxu0 0
      %2381 = vmatpush1.bf16.msra.mxu0 0
      %2382 = vmatprep.subr.bf16.mxu0 0
      %2383 = vmatpush1.bf16.msra.mxu0 0
      %2384 = vmatprep.subr.bf16.mxu0 0
      %2385 = vmatpush1.bf16.msra.mxu0 0
      %2386 = vmatprep.subr.bf16.mxu0 0
      %2387 = vmatpush1.bf16.msra.mxu0 0
      %2388 = vmatprep.subr.bf16.mxu0 0
      %2389 = vmatpush1.bf16.msra.mxu0 0
      %2390 = vmatprep.subr.bf16.mxu0 0
      %2391 = vmatpush1.bf16.msra.mxu0 0
      %2392 = vmatprep.subr.bf16.mxu0 0
      %2393 = vmatpush1.bf16.msra.mxu0 0
      %2394 = vmatprep.subr.bf16.mxu0 0
      %2395 = vmatpush1.bf16.msra.mxu0 0
      %2396 = vmatprep.subr.bf16.mxu0 0
      %2397 = vmatpush1.bf16.msra.mxu0 0
      %2398 = vmatprep.subr.bf16.mxu0 0
      %2399 = vmatpush1.bf16.msra.mxu0 0
      %2400 = vmatprep.subr.bf16.mxu0 0
      %2401 = vmatpush1.bf16.msra.mxu0 0
      %2402 = vmatprep.mubr.bf16.mxu0 0
      %2403 = vmatmul.mubr.bf16.gmra.mrb[0].mxu0 %v1081
      %v2404 = vpop.f32.mrb[0].mxu0
      %v2405 = vadd.f32 0.0, %v2404
      %v2406 = vpop.f32.mrb[0].mxu0
      %v2407 = vpop.f32.mrb[0].mxu0
      %v2408 = vadd.f32 0.0, %v2407
      %v2409 = vpop.f32.mrb[0].mxu0
      %2410 = vmatprep.mubr.bf16.mxu0 0
      %2411 = vmatmul.mubr.bf16.gmra.mrb[0].mxu0 %v1084
      %v2412 = vpop.f32.mrb[0].mxu0
      %v2413 = vadd.f32 0.0, %v2412
      %v2414 = vpop.f32.mrb[0].mxu0
      %v2415 = vpop.f32.mrb[0].mxu0
      %v2416 = vadd.f32 0.0, %v2415
      %v2417 = vpop.f32.mrb[0].mxu0
      %2418 = vmatprep.mubr.bf16.mxu0 0
      %2419 = vmatmul.mubr.bf16.gmra.mrb[0].mxu0 %v1087
      %v2420 = vpop.f32.mrb[0].mxu0
      %v2421 = vadd.f32 0.0, %v2420
      %v2422 = vpop.f32.mrb[0].mxu0
      %v2423 = vpop.f32.mrb[0].mxu0
      %v2424 = vadd.f32 0.0, %v2423
      %v2425 = vpop.f32.mrb[0].mxu0
      %2426 = vmatprep.mubr.bf16.mxu0 0
      %2427 = vmatmul.mubr.bf16.gmra.mrb[0].mxu0 %v1090
      %v2428 = vpop.f32.mrb[0].mxu0
      %v2429 = vadd.f32 0.0, %v2428
      %v2430 = vpop.f32.mrb[0].mxu0
      %v2431 = vpop.f32.mrb[0].mxu0
      %v2432 = vadd.f32 0.0, %v2431
      %v2433 = vpop.f32.mrb[0].mxu0
      %2434 = vmatprep.mubr.bf16.mxu0 0
      %2435 = vmatmul.mubr.bf16.gmra.mrb[0].mxu0 %v1093
      %v2436 = vpop.f32.mrb[0].mxu0
      %v2437 = vadd.f32 0.0, %v2436
      %v2438 = vpop.f32.mrb[0].mxu0
      %v2439 = vpop.f32.mrb[0].mxu0
      %v2440 = vadd.f32 0.0, %v2439
      %v2441 = vpop.f32.mrb[0].mxu0
      %2442 = vmatprep.mubr.bf16.mxu0 0
      %2443 = vmatmul.mubr.bf16.gmra.mrb[0].mxu0 %v1096
      %v2444 = vpop.f32.mrb[0].mxu0
      %v2445 = vadd.f32 0.0, %v2444
      %v2446 = vpop.f32.mrb[0].mxu0
      %v2447 = vpop.f32.mrb[0].mxu0
      %v2448 = vadd.f32 0.0, %v2447
      %v2449 = vpop.f32.mrb[0].mxu0
      %2450 = vmatprep.mubr.bf16.mxu0 0
      %2451 = vmatmul.mubr.bf16.gmra.mrb[0].mxu0 %v1099
      %v2452 = vpop.f32.mrb[0].mxu0
      %v2453 = vadd.f32 0.0, %v2452
      %v2454 = vpop.f32.mrb[0].mxu0
      %v2455 = vpop.f32.mrb[0].mxu0
      %v2456 = vadd.f32 0.0, %v2455
      %v2457 = vpop.f32.mrb[0].mxu0
      %2458 = vmatprep.mubr.bf16.mxu0 0
      %2459 = vmatmul.mubr.bf16.gmra.mrb[0].mxu0 %v1102
      %v2460 = vpop.f32.mrb[0].mxu0
      %v2461 = vadd.f32 0.0, %v2460
      %v2462 = vpop.f32.mrb[0].mxu0
      %v2463 = vpop.f32.mrb[0].mxu0
      %v2464 = vadd.f32 0.0, %v2463
      %v2465 = vpop.f32.mrb[0].mxu0
      %2466 = vmatprep.mubr.bf16.mxu0 0
      %2467 = vmatmul.mubr.bf16.gmra.mrb[0].mxu0 %v1105
      %v2468 = vpop.f32.mrb[0].mxu0
      %v2469 = vadd.f32 0.0, %v2468
      %v2470 = vpop.f32.mrb[0].mxu0
      %v2471 = vpop.f32.mrb[0].mxu0
      %v2472 = vadd.f32 0.0, %v2471
      %v2473 = vpop.f32.mrb[0].mxu0
      %2474 = vmatprep.mubr.bf16.mxu0 0
      %2475 = vmatmul.mubr.bf16.gmra.mrb[0].mxu0 %v1108
      %v2476 = vpop.f32.mrb[0].mxu0
      %v2477 = vadd.f32 0.0, %v2476
      %v2478 = vpop.f32.mrb[0].mxu0
      %v2479 = vpop.f32.mrb[0].mxu0
      %v2480 = vadd.f32 0.0, %v2479
      %v2481 = vpop.f32.mrb[0].mxu0
      %2482 = vmatprep.mubr.bf16.mxu0 0
      %2483 = vmatmul.mubr.bf16.gmra.mrb[0].mxu0 %v1111
      %v2484 = vpop.f32.mrb[0].mxu0
      %v2485 = vadd.f32 0.0, %v2484
      %v2486 = vpop.f32.mrb[0].mxu0
      %v2487 = vpop.f32.mrb[0].mxu0
      %v2488 = vadd.f32 0.0, %v2487
      %v2489 = vpop.f32.mrb[0].mxu0
      %2490 = vmatprep.mubr.bf16.mxu0 0
      %2491 = vmatmul.mubr.bf16.gmra.mrb[0].mxu0 %v1114
      %v2492 = vpop.f32.mrb[0].mxu0
      %v2493 = vadd.f32 0.0, %v2492
      %v2494 = vpop.f32.mrb[0].mxu0
      %v2495 = vpop.f32.mrb[0].mxu0
      %v2496 = vadd.f32 0.0, %v2495
      %v2497 = vpop.f32.mrb[0].mxu0
      %2498 = vmatprep.mubr.bf16.mxu0 0
      %2499 = vmatmul.mubr.bf16.gmra.mrb[0].mxu0 %v1117
      %v2500 = vpop.f32.mrb[0].mxu0
      %v2501 = vadd.f32 0.0, %v2500
      %v2502 = vpop.f32.mrb[0].mxu0
      %v2503 = vpop.f32.mrb[0].mxu0
      %v2504 = vadd.f32 0.0, %v2503
      %v2505 = vpop.f32.mrb[0].mxu0
      %2506 = vmatprep.mubr.bf16.mxu0 0
      %2507 = vmatmul.mubr.bf16.gmra.mrb[0].mxu0 %v1120
      %v2508 = vpop.f32.mrb[0].mxu0
      %v2509 = vadd.f32 0.0, %v2508
      %v2510 = vpop.f32.mrb[0].mxu0
      %v2511 = vpop.f32.mrb[0].mxu0
      %v2512 = vadd.f32 0.0, %v2511
      %v2513 = vpop.f32.mrb[0].mxu0
      %2514 = vmatprep.mubr.bf16.mxu0 0
      %2515 = vmatmul.mubr.bf16.gmra.mrb[0].mxu0 %v1719
      %v2516 = vpop.f32.mrb[0].mxu0
      %v2517 = vadd.f32 0.0, %v2516
      %v2518 = vpop.f32.mrb[0].mxu0
      %v2519 = vpop.f32.mrb[0].mxu0
      %v2520 = vadd.f32 0.0, %v2519
      %v2521 = vpop.f32.mrb[0].mxu0
      %2522 = vmatprep.mubr.bf16.mxu0 0
      %2523 = vmatmul.mubr.bf16.gmra.mrb[0].mxu0 %v2365
      %v2524 = vpop.f32.mrb[0].mxu0
      %v2525 = vadd.f32 0.0, %v2524
      %v2526 = vpop.f32.mrb[0].mxu0
      %v2527 = vpop.f32.mrb[0].mxu0
      %v2528 = vadd.f32 0.0, %v2527
      %v2529 = vpop.f32.mrb[0].mxu0
      %2530 = vdwg.mxu0
      %v2531 = vadd.f32 %v2325, %v2405
      %v2532 = vadd.f32 %v2326, %v2408
      %v2533 = vadd.f32 %v2327, %v2413
      %v2534 = vadd.f32 %v2328, %v2416
      %v2535 = vadd.f32 %v2329, %v2421
      %v2536 = vadd.f32 %v2330, %v2424
      %v2537 = vadd.f32 %v2331, %v2429
      %v2538 = vadd.f32 %v2332, %v2432
      %v2539 = vadd.f32 %v2333, %v2437
      %v2540 = vadd.f32 %v2334, %v2440
      %v2541 = vadd.f32 %v2335, %v2445
      %v2542 = vadd.f32 %v2336, %v2448
      %v2543 = vadd.f32 %v2337, %v2453
      %v2544 = vadd.f32 %v2338, %v2456
      %v2545 = vadd.f32 %v2339, %v2461
      %v2546 = vadd.f32 %v2340, %v2464
      %v2547 = vadd.f32 %v2341, %v2469
      %v2548 = vadd.f32 %v2342, %v2472
      %v2549 = vadd.f32 %v2343, %v2477
      %v2550 = vadd.f32 %v2344, %v2480
      %v2551 = vadd.f32 %v2345, %v2485
      %v2552 = vadd.f32 %v2346, %v2488
      %v2553 = vadd.f32 %v2347, %v2493
      %v2554 = vadd.f32 %v2348, %v2496
      %v2555 = vadd.f32 %v2349, %v2501
      %v2556 = vadd.f32 %v2350, %v2504
      %v2557 = vadd.f32 %v2351, %v2509
      %v2558 = vadd.f32 %v2352, %v2512
      %v2559 = vadd.f32 %v2353, %v2517
      %v2560 = vadd.f32 %v2354, %v2520
      %v2561 = vadd.f32 %v2355, %v2525
      %v2562 = vadd.f32 %v2356, %v2528
      %v2564 = vshrl.u32 %v339, 16
      %v2566 = vrot.slane %v2564, 4
      %v2567 = vshll.u32 %v339, 16
      %v2569 = vrot.slane %v2567, 5
      %v2570 = vor.u32 %v2566, %v2569
      %v2571 = vrot.slane %v2570, 4
      %v2573 = vshll.u32 %v340, 16
      %v2575 = vrot.slane %v2573, 5
      %v2576 = vsel %vm345, %v2571, %v2575
      %v2577 = vshrl.u32 %v340, 16
      %v2579 = vrot.slane %v2577, 4
      %v2580 = vor.u32 %v2579, %v2575
      %v2581 = vrot.slane %v2580, 4
      %v2583 = vshll.u32 %v341, 16
      %v2585 = vrot.slane %v2583, 5
      %v2586 = vsel %vm345, %v2581, %v2585
      %s2587 = scalar_lea.vmem %s262, 14
      %v2588 = vld [vmem:[%s2587] sm:$0x3]
      %v2589 = vunpack.c.l.b16 %v2576
      %v2590 = vunpack.c.l.b16 %v2586
      %v2591 = vpack.c.b16 %v2590, %v2589
      %v2593 = vsel %vm780, %v2591, 0
      %v2596 = vsel %vm829, %v2588, 0
      %2598 = vmatprep.subr.bf16.mxu0 0
      %2599 = vmatpush1.bf16.msra.mxu0 %v2596
      %2600 = vmatprep.subr.bf16.mxu0 0
      %2601 = vmatpush1.bf16.msra.mxu0 0
      %2602 = vmatprep.subr.bf16.mxu0 0
      %2603 = vmatpush1.bf16.msra.mxu0 0
      %2604 = vmatprep.subr.bf16.mxu0 0
      %2605 = vmatpush1.bf16.msra.mxu0 0
      %2606 = vmatprep.subr.bf16.mxu0 0
      %2607 = vmatpush1.bf16.msra.mxu0 0
      %2608 = vmatprep.subr.bf16.mxu0 0
      %2609 = vmatpush1.bf16.msra.mxu0 0
      %2610 = vmatprep.subr.bf16.mxu0 0
      %2611 = vmatpush1.bf16.msra.mxu0 0
      %2612 = vmatprep.subr.bf16.mxu0 0
      %2613 = vmatpush1.bf16.msra.mxu0 0
      %2614 = vmatprep.subr.bf16.mxu0 0
      %2615 = vmatpush1.bf16.msra.mxu0 0
      %2616 = vmatprep.subr.bf16.mxu0 0
      %2617 = vmatpush1.bf16.msra.mxu0 0
      %2618 = vmatprep.subr.bf16.mxu0 0
      %2619 = vmatpush1.bf16.msra.mxu0 0
      %2620 = vmatprep.subr.bf16.mxu0 0
      %2621 = vmatpush1.bf16.msra.mxu0 0
      %2622 = vmatprep.subr.bf16.mxu0 0
      %2623 = vmatpush1.bf16.msra.mxu0 0
      %2624 = vmatprep.subr.bf16.mxu0 0
      %2625 = vmatpush1.bf16.msra.mxu0 0
      %2626 = vmatprep.subr.bf16.mxu0 0
      %2627 = vmatpush1.bf16.msra.mxu0 0
      %2628 = vmatprep.subr.bf16.mxu0 0
      %2629 = vmatpush1.bf16.msra.mxu0 0
      %2630 = vmatprep.mubr.bf16.mxu0 0
      %2631 = vmatmul.mubr.bf16.gmra.mrb[0].mxu0 %v788
      %v2632 = vpop.f32.mrb[0].mxu0
      %v2633 = vadd.f32 0.0, %v2632
      %v2634 = vpop.f32.mrb[0].mxu0
      %v2635 = vpop.f32.mrb[0].mxu0
      %v2636 = vadd.f32 0.0, %v2635
      %v2637 = vpop.f32.mrb[0].mxu0
      %2638 = vmatprep.mubr.bf16.mxu0 0
      %2639 = vmatmul.mubr.bf16.gmra.mrb[0].mxu0 %v791
      %v2640 = vpop.f32.mrb[0].mxu0
      %v2641 = vadd.f32 0.0, %v2640
      %v2642 = vpop.f32.mrb[0].mxu0
      %v2643 = vpop.f32.mrb[0].mxu0
      %v2644 = vadd.f32 0.0, %v2643
      %v2645 = vpop.f32.mrb[0].mxu0
      %2646 = vmatprep.mubr.bf16.mxu0 0
      %2647 = vmatmul.mubr.bf16.gmra.mrb[0].mxu0 %v794
      %v2648 = vpop.f32.mrb[0].mxu0
      %v2649 = vadd.f32 0.0, %v2648
      %v2650 = vpop.f32.mrb[0].mxu0
      %v2651 = vpop.f32.mrb[0].mxu0
      %v2652 = vadd.f32 0.0, %v2651
      %v2653 = vpop.f32.mrb[0].mxu0
      %2654 = vmatprep.mubr.bf16.mxu0 0
      %2655 = vmatmul.mubr.bf16.gmra.mrb[0].mxu0 %v797
      %v2656 = vpop.f32.mrb[0].mxu0
      %v2657 = vadd.f32 0.0, %v2656
      %v2658 = vpop.f32.mrb[0].mxu0
      %v2659 = vpop.f32.mrb[0].mxu0
      %v2660 = vadd.f32 0.0, %v2659
      %v2661 = vpop.f32.mrb[0].mxu0
      %2662 = vmatprep.mubr.bf16.mxu0 0
      %2663 = vmatmul.mubr.bf16.gmra.mrb[0].mxu0 %v800
      %v2664 = vpop.f32.mrb[0].mxu0
      %v2665 = vadd.f32 0.0, %v2664
      %v2666 = vpop.f32.mrb[0].mxu0
      %v2667 = vpop.f32.mrb[0].mxu0
      %v2668 = vadd.f32 0.0, %v2667
      %v2669 = vpop.f32.mrb[0].mxu0
      %2670 = vmatprep.mubr.bf16.mxu0 0
      %2671 = vmatmul.mubr.bf16.gmra.mrb[0].mxu0 %v803
      %v2672 = vpop.f32.mrb[0].mxu0
      %v2673 = vadd.f32 0.0, %v2672
      %v2674 = vpop.f32.mrb[0].mxu0
      %v2675 = vpop.f32.mrb[0].mxu0
      %v2676 = vadd.f32 0.0, %v2675
      %v2677 = vpop.f32.mrb[0].mxu0
      %2678 = vmatprep.mubr.bf16.mxu0 0
      %2679 = vmatmul.mubr.bf16.gmra.mrb[0].mxu0 %v806
      %v2680 = vpop.f32.mrb[0].mxu0
      %v2681 = vadd.f32 0.0, %v2680
      %v2682 = vpop.f32.mrb[0].mxu0
      %v2683 = vpop.f32.mrb[0].mxu0
      %v2684 = vadd.f32 0.0, %v2683
      %v2685 = vpop.f32.mrb[0].mxu0
      %2686 = vmatprep.mubr.bf16.mxu0 0
      %2687 = vmatmul.mubr.bf16.gmra.mrb[0].mxu0 %v809
      %v2688 = vpop.f32.mrb[0].mxu0
      %v2689 = vadd.f32 0.0, %v2688
      %v2690 = vpop.f32.mrb[0].mxu0
      %v2691 = vpop.f32.mrb[0].mxu0
      %v2692 = vadd.f32 0.0, %v2691
      %v2693 = vpop.f32.mrb[0].mxu0
      %2694 = vmatprep.mubr.bf16.mxu0 0
      %2695 = vmatmul.mubr.bf16.gmra.mrb[0].mxu0 %v812
      %v2696 = vpop.f32.mrb[0].mxu0
      %v2697 = vadd.f32 0.0, %v2696
      %v2698 = vpop.f32.mrb[0].mxu0
      %v2699 = vpop.f32.mrb[0].mxu0
      %v2700 = vadd.f32 0.0, %v2699
      %v2701 = vpop.f32.mrb[0].mxu0
      %2702 = vmatprep.mubr.bf16.mxu0 0
      %2703 = vmatmul.mubr.bf16.gmra.mrb[0].mxu0 %v815
      %v2704 = vpop.f32.mrb[0].mxu0
      %v2705 = vadd.f32 0.0, %v2704
      %v2706 = vpop.f32.mrb[0].mxu0
      %v2707 = vpop.f32.mrb[0].mxu0
      %v2708 = vadd.f32 0.0, %v2707
      %v2709 = vpop.f32.mrb[0].mxu0
      %2710 = vmatprep.mubr.bf16.mxu0 0
      %2711 = vmatmul.mubr.bf16.gmra.mrb[0].mxu0 %v818
      %v2712 = vpop.f32.mrb[0].mxu0
      %v2713 = vadd.f32 0.0, %v2712
      %v2714 = vpop.f32.mrb[0].mxu0
      %v2715 = vpop.f32.mrb[0].mxu0
      %v2716 = vadd.f32 0.0, %v2715
      %v2717 = vpop.f32.mrb[0].mxu0
      %2718 = vmatprep.mubr.bf16.mxu0 0
      %2719 = vmatmul.mubr.bf16.gmra.mrb[0].mxu0 %v821
      %v2720 = vpop.f32.mrb[0].mxu0
      %v2721 = vadd.f32 0.0, %v2720
      %v2722 = vpop.f32.mrb[0].mxu0
      %v2723 = vpop.f32.mrb[0].mxu0
      %v2724 = vadd.f32 0.0, %v2723
      %v2725 = vpop.f32.mrb[0].mxu0
      %2726 = vmatprep.mubr.bf16.mxu0 0
      %2727 = vmatmul.mubr.bf16.gmra.mrb[0].mxu0 %v824
      %v2728 = vpop.f32.mrb[0].mxu0
      %v2729 = vadd.f32 0.0, %v2728
      %v2730 = vpop.f32.mrb[0].mxu0
      %v2731 = vpop.f32.mrb[0].mxu0
      %v2732 = vadd.f32 0.0, %v2731
      %v2733 = vpop.f32.mrb[0].mxu0
      %2734 = vmatprep.mubr.bf16.mxu0 0
      %2735 = vmatmul.mubr.bf16.gmra.mrb[0].mxu0 %v827
      %v2736 = vpop.f32.mrb[0].mxu0
      %v2737 = vadd.f32 0.0, %v2736
      %v2738 = vpop.f32.mrb[0].mxu0
      %v2739 = vpop.f32.mrb[0].mxu0
      %v2740 = vadd.f32 0.0, %v2739
      %v2741 = vpop.f32.mrb[0].mxu0
      %2742 = vmatprep.mubr.bf16.mxu0 0
      %2743 = vmatmul.mubr.bf16.gmra.mrb[0].mxu0 %v1947
      %v2744 = vpop.f32.mrb[0].mxu0
      %v2745 = vadd.f32 0.0, %v2744
      %v2746 = vpop.f32.mrb[0].mxu0
      %v2747 = vpop.f32.mrb[0].mxu0
      %v2748 = vadd.f32 0.0, %v2747
      %v2749 = vpop.f32.mrb[0].mxu0
      %2750 = vmatprep.mubr.bf16.mxu0 0
      %2751 = vmatmul.mubr.bf16.gmra.mrb[0].mxu0 %v2593
      %v2752 = vpop.f32.mrb[0].mxu0
      %v2753 = vadd.f32 0.0, %v2752
      %v2754 = vpop.f32.mrb[0].mxu0
      %v2755 = vpop.f32.mrb[0].mxu0
      %v2756 = vadd.f32 0.0, %v2755
      %v2757 = vpop.f32.mrb[0].mxu0
      %2758 = vdwg.mxu0
      %v2759 = vadd.f32 %v2531, %v2633
      %v2760 = vadd.f32 %v2532, %v2636
      %v2761 = vadd.f32 %v2533, %v2641
      %v2762 = vadd.f32 %v2534, %v2644
      %v2763 = vadd.f32 %v2535, %v2649
      %v2764 = vadd.f32 %v2536, %v2652
      %v2765 = vadd.f32 %v2537, %v2657
      %v2766 = vadd.f32 %v2538, %v2660
      %v2767 = vadd.f32 %v2539, %v2665
      %v2768 = vadd.f32 %v2540, %v2668
      %v2769 = vadd.f32 %v2541, %v2673
      %v2770 = vadd.f32 %v2542, %v2676
      %v2771 = vadd.f32 %v2543, %v2681
      %v2772 = vadd.f32 %v2544, %v2684
      %v2773 = vadd.f32 %v2545, %v2689
      %v2774 = vadd.f32 %v2546, %v2692
      %v2775 = vadd.f32 %v2547, %v2697
      %v2776 = vadd.f32 %v2548, %v2700
      %v2777 = vadd.f32 %v2549, %v2705
      %v2778 = vadd.f32 %v2550, %v2708
      %v2779 = vadd.f32 %v2551, %v2713
      %v2780 = vadd.f32 %v2552, %v2716
      %v2781 = vadd.f32 %v2553, %v2721
      %v2782 = vadd.f32 %v2554, %v2724
      %v2783 = vadd.f32 %v2555, %v2729
      %v2784 = vadd.f32 %v2556, %v2732
      %v2785 = vadd.f32 %v2557, %v2737
      %v2786 = vadd.f32 %v2558, %v2740
      %v2787 = vadd.f32 %v2559, %v2745
      %v2788 = vadd.f32 %v2560, %v2748
      %v2789 = vadd.f32 %v2561, %v2753
      %v2790 = vadd.f32 %v2562, %v2756
      %v2792 = vrot.slane %v339, 5
      %v2793 = vrot.slane %v2792, 4
      %v2794 = vrot.slane %v340, 5
      %v2795 = vsel %vm1304, %v2793, %v2794
      %v2796 = vrot.slane %v2794, 4
      %v2797 = vrot.slane %v341, 5
      %v2798 = vsel %vm1304, %v2796, %v2797
      %s2799 = scalar_lea.vmem %s262, 16
      %v2800 = vld [vmem:[%s2799] sm:$0x3]
      %v2801 = vunpack.c.l.b16 %v2795
      %v2802 = vunpack.c.l.b16 %v2798
      %v2803 = vpack.c.b16 %v2802, %v2801
      %v2805 = vsel %vm780, %v2803, 0
      %v2808 = vsel %vm829, %v2800, 0
      %2810 = vmatprep.subr.bf16.mxu0 0
      %2811 = vmatpush1.bf16.msra.mxu0 %v2808
      %2812 = vmatprep.subr.bf16.mxu0 0
      %2813 = vmatpush1.bf16.msra.mxu0 0
      %2814 = vmatprep.subr.bf16.mxu0 0
      %2815 = vmatpush1.bf16.msra.mxu0 0
      %2816 = vmatprep.subr.bf16.mxu0 0
      %2817 = vmatpush1.bf16.msra.mxu0 0
      %2818 = vmatprep.subr.bf16.mxu0 0
      %2819 = vmatpush1.bf16.msra.mxu0 0
      %2820 = vmatprep.subr.bf16.mxu0 0
      %2821 = vmatpush1.bf16.msra.mxu0 0
      %2822 = vmatprep.subr.bf16.mxu0 0
      %2823 = vmatpush1.bf16.msra.mxu0 0
      %2824 = vmatprep.subr.bf16.mxu0 0
      %2825 = vmatpush1.bf16.msra.mxu0 0
      %2826 = vmatprep.subr.bf16.mxu0 0
      %2827 = vmatpush1.bf16.msra.mxu0 0
      %2828 = vmatprep.subr.bf16.mxu0 0
      %2829 = vmatpush1.bf16.msra.mxu0 0
      %2830 = vmatprep.subr.bf16.mxu0 0
      %2831 = vmatpush1.bf16.msra.mxu0 0
      %2832 = vmatprep.subr.bf16.mxu0 0
      %2833 = vmatpush1.bf16.msra.mxu0 0
      %2834 = vmatprep.subr.bf16.mxu0 0
      %2835 = vmatpush1.bf16.msra.mxu0 0
      %2836 = vmatprep.subr.bf16.mxu0 0
      %2837 = vmatpush1.bf16.msra.mxu0 0
      %2838 = vmatprep.subr.bf16.mxu0 0
      %2839 = vmatpush1.bf16.msra.mxu0 0
      %2840 = vmatprep.subr.bf16.mxu0 0
      %2841 = vmatpush1.bf16.msra.mxu0 0
      %2842 = vmatprep.mubr.bf16.mxu0 0
      %2843 = vmatmul.mubr.bf16.gmra.mrb[0].mxu0 %v1474
      %v2844 = vpop.f32.mrb[0].mxu0
      %v2845 = vadd.f32 0.0, %v2844
      %v2846 = vpop.f32.mrb[0].mxu0
      %v2847 = vpop.f32.mrb[0].mxu0
      %v2848 = vadd.f32 0.0, %v2847
      %v2849 = vpop.f32.mrb[0].mxu0
      %2850 = vmatprep.mubr.bf16.mxu0 0
      %2851 = vmatmul.mubr.bf16.gmra.mrb[0].mxu0 %v1477
      %v2852 = vpop.f32.mrb[0].mxu0
      %v2853 = vadd.f32 0.0, %v2852
      %v2854 = vpop.f32.mrb[0].mxu0
      %v2855 = vpop.f32.mrb[0].mxu0
      %v2856 = vadd.f32 0.0, %v2855
      %v2857 = vpop.f32.mrb[0].mxu0
      %2858 = vmatprep.mubr.bf16.mxu0 0
      %2859 = vmatmul.mubr.bf16.gmra.mrb[0].mxu0 %v1480
      %v2860 = vpop.f32.mrb[0].mxu0
      %v2861 = vadd.f32 0.0, %v2860
      %v2862 = vpop.f32.mrb[0].mxu0
      %v2863 = vpop.f32.mrb[0].mxu0
      %v2864 = vadd.f32 0.0, %v2863
      %v2865 = vpop.f32.mrb[0].mxu0
      %2866 = vmatprep.mubr.bf16.mxu0 0
      %2867 = vmatmul.mubr.bf16.gmra.mrb[0].mxu0 %v1483
      %v2868 = vpop.f32.mrb[0].mxu0
      %v2869 = vadd.f32 0.0, %v2868
      %v2870 = vpop.f32.mrb[0].mxu0
      %v2871 = vpop.f32.mrb[0].mxu0
      %v2872 = vadd.f32 0.0, %v2871
      %v2873 = vpop.f32.mrb[0].mxu0
      %2874 = vmatprep.mubr.bf16.mxu0 0
      %2875 = vmatmul.mubr.bf16.gmra.mrb[0].mxu0 %v1486
      %v2876 = vpop.f32.mrb[0].mxu0
      %v2877 = vadd.f32 0.0, %v2876
      %v2878 = vpop.f32.mrb[0].mxu0
      %v2879 = vpop.f32.mrb[0].mxu0
      %v2880 = vadd.f32 0.0, %v2879
      %v2881 = vpop.f32.mrb[0].mxu0
      %2882 = vmatprep.mubr.bf16.mxu0 0
      %2883 = vmatmul.mubr.bf16.gmra.mrb[0].mxu0 %v1489
      %v2884 = vpop.f32.mrb[0].mxu0
      %v2885 = vadd.f32 0.0, %v2884
      %v2886 = vpop.f32.mrb[0].mxu0
      %v2887 = vpop.f32.mrb[0].mxu0
      %v2888 = vadd.f32 0.0, %v2887
      %v2889 = vpop.f32.mrb[0].mxu0
      %2890 = vmatprep.mubr.bf16.mxu0 0
      %2891 = vmatmul.mubr.bf16.gmra.mrb[0].mxu0 %v1492
      %v2892 = vpop.f32.mrb[0].mxu0
      %v2893 = vadd.f32 0.0, %v2892
      %v2894 = vpop.f32.mrb[0].mxu0
      %v2895 = vpop.f32.mrb[0].mxu0
      %v2896 = vadd.f32 0.0, %v2895
      %v2897 = vpop.f32.mrb[0].mxu0
      %2898 = vmatprep.mubr.bf16.mxu0 0
      %2899 = vmatmul.mubr.bf16.gmra.mrb[0].mxu0 %v1495
      %v2900 = vpop.f32.mrb[0].mxu0
      %v2901 = vadd.f32 0.0, %v2900
      %v2902 = vpop.f32.mrb[0].mxu0
      %v2903 = vpop.f32.mrb[0].mxu0
      %v2904 = vadd.f32 0.0, %v2903
      %v2905 = vpop.f32.mrb[0].mxu0
      %2906 = vmatprep.mubr.bf16.mxu0 0
      %2907 = vmatmul.mubr.bf16.gmra.mrb[0].mxu0 %v1498
      %v2908 = vpop.f32.mrb[0].mxu0
      %v2909 = vadd.f32 0.0, %v2908
      %v2910 = vpop.f32.mrb[0].mxu0
      %v2911 = vpop.f32.mrb[0].mxu0
      %v2912 = vadd.f32 0.0, %v2911
      %v2913 = vpop.f32.mrb[0].mxu0
      %2914 = vmatprep.mubr.bf16.mxu0 0
      %2915 = vmatmul.mubr.bf16.gmra.mrb[0].mxu0 %v1501
      %v2916 = vpop.f32.mrb[0].mxu0
      %v2917 = vadd.f32 0.0, %v2916
      %v2918 = vpop.f32.mrb[0].mxu0
      %v2919 = vpop.f32.mrb[0].mxu0
      %v2920 = vadd.f32 0.0, %v2919
      %v2921 = vpop.f32.mrb[0].mxu0
      %2922 = vmatprep.mubr.bf16.mxu0 0
      %2923 = vmatmul.mubr.bf16.gmra.mrb[0].mxu0 %v1504
      %v2924 = vpop.f32.mrb[0].mxu0
      %v2925 = vadd.f32 0.0, %v2924
      %v2926 = vpop.f32.mrb[0].mxu0
      %v2927 = vpop.f32.mrb[0].mxu0
      %v2928 = vadd.f32 0.0, %v2927
      %v2929 = vpop.f32.mrb[0].mxu0
      %2930 = vmatprep.mubr.bf16.mxu0 0
      %2931 = vmatmul.mubr.bf16.gmra.mrb[0].mxu0 %v1507
      %v2932 = vpop.f32.mrb[0].mxu0
      %v2933 = vadd.f32 0.0, %v2932
      %v2934 = vpop.f32.mrb[0].mxu0
      %v2935 = vpop.f32.mrb[0].mxu0
      %v2936 = vadd.f32 0.0, %v2935
      %v2937 = vpop.f32.mrb[0].mxu0
      %2938 = vmatprep.mubr.bf16.mxu0 0
      %2939 = vmatmul.mubr.bf16.gmra.mrb[0].mxu0 %v1510
      %v2940 = vpop.f32.mrb[0].mxu0
      %v2941 = vadd.f32 0.0, %v2940
      %v2942 = vpop.f32.mrb[0].mxu0
      %v2943 = vpop.f32.mrb[0].mxu0
      %v2944 = vadd.f32 0.0, %v2943
      %v2945 = vpop.f32.mrb[0].mxu0
      %2946 = vmatprep.mubr.bf16.mxu0 0
      %2947 = vmatmul.mubr.bf16.gmra.mrb[0].mxu0 %v1513
      %v2948 = vpop.f32.mrb[0].mxu0
      %v2949 = vadd.f32 0.0, %v2948
      %v2950 = vpop.f32.mrb[0].mxu0
      %v2951 = vpop.f32.mrb[0].mxu0
      %v2952 = vadd.f32 0.0, %v2951
      %v2953 = vpop.f32.mrb[0].mxu0
      %2954 = vmatprep.mubr.bf16.mxu0 0
      %2955 = vmatmul.mubr.bf16.gmra.mrb[0].mxu0 %v2159
      %v2956 = vpop.f32.mrb[0].mxu0
      %v2957 = vadd.f32 0.0, %v2956
      %v2958 = vpop.f32.mrb[0].mxu0
      %v2959 = vpop.f32.mrb[0].mxu0
      %v2960 = vadd.f32 0.0, %v2959
      %v2961 = vpop.f32.mrb[0].mxu0
      %2962 = vmatprep.mubr.bf16.mxu0 0
      %2963 = vmatmul.mubr.bf16.gmra.mrb[0].mxu0 %v2805
      %v2964 = vpop.f32.mrb[0].mxu0
      %v2965 = vadd.f32 0.0, %v2964
      %v2966 = vpop.f32.mrb[0].mxu0
      %v2967 = vpop.f32.mrb[0].mxu0
      %v2968 = vadd.f32 0.0, %v2967
      %v2969 = vpop.f32.mrb[0].mxu0
      %2970 = vdwg.mxu0
      %v2971 = vadd.f32 %v2759, %v2845
      %v2972 = vadd.f32 %v2760, %v2848
      %v2973 = vadd.f32 %v2761, %v2853
      %v2974 = vadd.f32 %v2762, %v2856
      %v2975 = vadd.f32 %v2763, %v2861
      %v2976 = vadd.f32 %v2764, %v2864
      %v2977 = vadd.f32 %v2765, %v2869
      %v2978 = vadd.f32 %v2766, %v2872
      %v2979 = vadd.f32 %v2767, %v2877
      %v2980 = vadd.f32 %v2768, %v2880
      %v2981 = vadd.f32 %v2769, %v2885
      %v2982 = vadd.f32 %v2770, %v2888
      %v2983 = vadd.f32 %v2771, %v2893
      %v2984 = vadd.f32 %v2772, %v2896
      %v2985 = vadd.f32 %v2773, %v2901
      %v2986 = vadd.f32 %v2774, %v2904
      %v2987 = vadd.f32 %v2775, %v2909
      %v2988 = vadd.f32 %v2776, %v2912
      %v2989 = vadd.f32 %v2777, %v2917
      %v2990 = vadd.f32 %v2778, %v2920
      %v2991 = vadd.f32 %v2779, %v2925
      %v2992 = vadd.f32 %v2780, %v2928
      %v2993 = vadd.f32 %v2781, %v2933
      %v2994 = vadd.f32 %v2782, %v2936
      %v2995 = vadd.f32 %v2783, %v2941
      %v2996 = vadd.f32 %v2784, %v2944
      %v2997 = vadd.f32 %v2785, %v2949
      %v2998 = vadd.f32 %v2786, %v2952
      %v2999 = vadd.f32 %v2787, %v2957
      %v3000 = vadd.f32 %v2788, %v2960
      %v3001 = vadd.f32 %v2789, %v2965
      %v3002 = vadd.f32 %v2790, %v2968
      %v3003 = vld [vmem:[%s265] sm:$0x1]
      %v3005 = vlaneseq
      %v3006 = vshrl.u32 %v3005, 7
      %v3007 = vsub.s32 0, %v3006
      %v3008 = vrot.slane %v3003, %v3007
      %v3010 = vmul.f32 %v2971, %v3008
      %v3011 = vmul.f32 %v2972, %v3008
      %v3012 = vmul.f32 %v2973, %v3008
      %v3013 = vmul.f32 %v2974, %v3008
      %v3014 = vmul.f32 %v2975, %v3008
      %v3015 = vmul.f32 %v2976, %v3008
      %v3016 = vmul.f32 %v2977, %v3008
      %v3017 = vmul.f32 %v2978, %v3008
      %v3018 = vmul.f32 %v2979, %v3008
      %v3019 = vmul.f32 %v2980, %v3008
      %v3020 = vmul.f32 %v2981, %v3008
      %v3021 = vmul.f32 %v2982, %v3008
      %v3022 = vmul.f32 %v2983, %v3008
      %v3023 = vmul.f32 %v2984, %v3008
      %v3024 = vmul.f32 %v2985, %v3008
      %v3025 = vmul.f32 %v2986, %v3008
      %v3026 = vmul.f32 %v2987, %v3008
      %v3027 = vmul.f32 %v2988, %v3008
      %v3028 = vmul.f32 %v2989, %v3008
      %v3029 = vmul.f32 %v2990, %v3008
      %v3030 = vmul.f32 %v2991, %v3008
      %v3031 = vmul.f32 %v2992, %v3008
      %v3032 = vmul.f32 %v2993, %v3008
      %v3033 = vmul.f32 %v2994, %v3008
      %v3034 = vmul.f32 %v2995, %v3008
      %v3035 = vmul.f32 %v2996, %v3008
      %v3036 = vmul.f32 %v2997, %v3008
      %v3037 = vmul.f32 %v2998, %v3008
      %v3038 = vmul.f32 %v2999, %v3008
      %v3039 = vmul.f32 %v3000, %v3008
      %v3040 = vmul.f32 %v3001, %v3008
      %v3041 = vmul.f32 %v3002, %v3008
      %v3042 = vld [vmem:[%s268] sm:$0x1]
      %v3044 = vlaneseq
      %v3045 = vshrl.u32 %v3044, 7
      %v3046 = vsub.s32 0, %v3045
      %v3047 = vrot.slane %v3042, %v3046
      %v3049 = vadd.f32 %v3010, %v3047
      %v3050 = vadd.f32 %v3011, %v3047
      %v3051 = vadd.f32 %v3012, %v3047
      %v3052 = vadd.f32 %v3013, %v3047
      %v3053 = vadd.f32 %v3014, %v3047
      %v3054 = vadd.f32 %v3015, %v3047
      %v3055 = vadd.f32 %v3016, %v3047
      %v3056 = vadd.f32 %v3017, %v3047
      %v3057 = vadd.f32 %v3018, %v3047
      %v3058 = vadd.f32 %v3019, %v3047
      %v3059 = vadd.f32 %v3020, %v3047
      %v3060 = vadd.f32 %v3021, %v3047
      %v3061 = vadd.f32 %v3022, %v3047
      %v3062 = vadd.f32 %v3023, %v3047
      %v3063 = vadd.f32 %v3024, %v3047
      %v3064 = vadd.f32 %v3025, %v3047
      %v3065 = vadd.f32 %v3026, %v3047
      %v3066 = vadd.f32 %v3027, %v3047
      %v3067 = vadd.f32 %v3028, %v3047
      %v3068 = vadd.f32 %v3029, %v3047
      %v3069 = vadd.f32 %v3030, %v3047
      %v3070 = vadd.f32 %v3031, %v3047
      %v3071 = vadd.f32 %v3032, %v3047
      %v3072 = vadd.f32 %v3033, %v3047
      %v3073 = vadd.f32 %v3034, %v3047
      %v3074 = vadd.f32 %v3035, %v3047
      %v3075 = vadd.f32 %v3036, %v3047
      %v3076 = vadd.f32 %v3037, %v3047
      %v3077 = vadd.f32 %v3038, %v3047
      %v3078 = vadd.f32 %v3039, %v3047
      %v3079 = vadd.f32 %v3040, %v3047
      %v3080 = vadd.f32 %v3041, %v3047
      %v3081 = vmax.f32 %v3049, 0.0
      %v3082 = vmax.f32 %v3050, 0.0
      %v3083 = vmax.f32 %v3051, 0.0
      %v3084 = vmax.f32 %v3052, 0.0
      %v3085 = vmax.f32 %v3053, 0.0
      %v3086 = vmax.f32 %v3054, 0.0
      %v3087 = vmax.f32 %v3055, 0.0
      %v3088 = vmax.f32 %v3056, 0.0
      %v3089 = vmax.f32 %v3057, 0.0
      %v3090 = vmax.f32 %v3058, 0.0
      %v3091 = vmax.f32 %v3059, 0.0
      %v3092 = vmax.f32 %v3060, 0.0
      %v3093 = vmax.f32 %v3061, 0.0
      %v3094 = vmax.f32 %v3062, 0.0
      %v3095 = vmax.f32 %v3063, 0.0
      %v3096 = vmax.f32 %v3064, 0.0
      %v3097 = vmax.f32 %v3065, 0.0
      %v3098 = vmax.f32 %v3066, 0.0
      %v3099 = vmax.f32 %v3067, 0.0
      %v3100 = vmax.f32 %v3068, 0.0
      %v3101 = vmax.f32 %v3069, 0.0
      %v3102 = vmax.f32 %v3070, 0.0
      %v3103 = vmax.f32 %v3071, 0.0
      %v3104 = vmax.f32 %v3072, 0.0
      %v3105 = vmax.f32 %v3073, 0.0
      %v3106 = vmax.f32 %v3074, 0.0
      %v3107 = vmax.f32 %v3075, 0.0
      %v3108 = vmax.f32 %v3076, 0.0
      %v3109 = vmax.f32 %v3077, 0.0
      %v3110 = vmax.f32 %v3078, 0.0
      %v3111 = vmax.f32 %v3079, 0.0
      %v3112 = vmax.f32 %v3080, 0.0
      %v3113 = vmin.f32 %v3081, 6.0
      %v3114 = vmin.f32 %v3082, 6.0
      %v3115 = vmin.f32 %v3083, 6.0
      %v3116 = vmin.f32 %v3084, 6.0
      %v3117 = vmin.f32 %v3085, 6.0
      %v3118 = vmin.f32 %v3086, 6.0
      %v3119 = vmin.f32 %v3087, 6.0
      %v3120 = vmin.f32 %v3088, 6.0
      %v3121 = vmin.f32 %v3089, 6.0
      %v3122 = vmin.f32 %v3090, 6.0
      %v3123 = vmin.f32 %v3091, 6.0
      %v3124 = vmin.f32 %v3092, 6.0
      %v3125 = vmin.f32 %v3093, 6.0
      %v3126 = vmin.f32 %v3094, 6.0
      %v3127 = vmin.f32 %v3095, 6.0
      %v3128 = vmin.f32 %v3096, 6.0
      %v3129 = vmin.f32 %v3097, 6.0
      %v3130 = vmin.f32 %v3098, 6.0
      %v3131 = vmin.f32 %v3099, 6.0
      %v3132 = vmin.f32 %v3100, 6.0
      %v3133 = vmin.f32 %v3101, 6.0
      %v3134 = vmin.f32 %v3102, 6.0
      %v3135 = vmin.f32 %v3103, 6.0
      %v3136 = vmin.f32 %v3104, 6.0
      %v3137 = vmin.f32 %v3105, 6.0
      %v3138 = vmin.f32 %v3106, 6.0
      %v3139 = vmin.f32 %v3107, 6.0
      %v3140 = vmin.f32 %v3108, 6.0
      %v3141 = vmin.f32 %v3109, 6.0
      %v3142 = vmin.f32 %v3110, 6.0
      %v3143 = vmin.f32 %v3111, 6.0
      %v3144 = vmin.f32 %v3112, 6.0
      %v3145 = vpack.c.bf16 %v3114, %v3113
      %v3146 = vpack.c.bf16 %v3116, %v3115
      %v3147 = vpack.c.bf16 %v3118, %v3117
      %v3148 = vpack.c.bf16 %v3120, %v3119
      %v3149 = vpack.c.bf16 %v3122, %v3121
      %v3150 = vpack.c.bf16 %v3124, %v3123
      %v3151 = vpack.c.bf16 %v3126, %v3125
      %v3152 = vpack.c.bf16 %v3128, %v3127
      %v3153 = vpack.c.bf16 %v3130, %v3129
      %v3154 = vpack.c.bf16 %v3132, %v3131
      %v3155 = vpack.c.bf16 %v3134, %v3133
      %v3156 = vpack.c.bf16 %v3136, %v3135
      %v3157 = vpack.c.bf16 %v3138, %v3137
      %v3158 = vpack.c.bf16 %v3140, %v3139
      %v3159 = vpack.c.bf16 %v3142, %v3141
      %v3160 = vpack.c.bf16 %v3144, %v3143
      %v3177 = vunpack.c.l.b16 %v3145
      %v3178 = vunpack.c.h.b16 %v3145
      %v3179 = vunpack.c.l.b16 %v3146
      %v3180 = vunpack.c.h.b16 %v3146
      %v3181 = vunpack.c.l.b16 %v3147
      %v3182 = vunpack.c.h.b16 %v3147
      %v3183 = vunpack.c.l.b16 %v3148
      %v3184 = vunpack.c.h.b16 %v3148
      %v3185 = vunpack.c.l.b16 %v3149
      %v3186 = vunpack.c.h.b16 %v3149
      %v3187 = vunpack.c.l.b16 %v3150
      %v3188 = vunpack.c.h.b16 %v3150
      %v3189 = vunpack.c.l.b16 %v3151
      %v3190 = vunpack.c.h.b16 %v3151
      %v3191 = vunpack.c.l.b16 %v3152
      %v3192 = vunpack.c.h.b16 %v3152
      %v3193 = vunpack.c.l.b16 %v3153
      %v3194 = vunpack.c.h.b16 %v3153
      %v3195 = vunpack.c.l.b16 %v3154
      %v3196 = vunpack.c.h.b16 %v3154
      %v3197 = vunpack.c.l.b16 %v3155
      %v3198 = vunpack.c.h.b16 %v3155
      %v3199 = vunpack.c.l.b16 %v3156
      %v3200 = vunpack.c.h.b16 %v3156
      %v3201 = vunpack.c.l.b16 %v3157
      %v3202 = vunpack.c.h.b16 %v3157
      %v3203 = vunpack.c.l.b16 %v3158
      %v3204 = vunpack.c.h.b16 %v3158
      %v3205 = vunpack.c.l.b16 %v3159
      %v3206 = vunpack.c.h.b16 %v3159
      %v3207 = vunpack.c.l.b16 %v3160
      %v3208 = vunpack.c.h.b16 %v3160
      %v3209 = vpack.c.b16 %v3177, %v3177
      %v3210 = vpack.c.b16 %v3178, %v3178
      %v3211 = vpack.c.b16 %v3179, %v3179
      %v3212 = vpack.c.b16 %v3180, %v3180
      %v3213 = vpack.c.b16 %v3181, %v3181
      %v3214 = vpack.c.b16 %v3182, %v3182
      %v3215 = vpack.c.b16 %v3183, %v3183
      %v3216 = vpack.c.b16 %v3184, %v3184
      %v3217 = vpack.c.b16 %v3185, %v3185
      %v3218 = vpack.c.b16 %v3186, %v3186
      %v3219 = vpack.c.b16 %v3187, %v3187
      %v3220 = vpack.c.b16 %v3188, %v3188
      %v3221 = vpack.c.b16 %v3189, %v3189
      %v3222 = vpack.c.b16 %v3190, %v3190
      %v3223 = vpack.c.b16 %v3191, %v3191
      %v3224 = vpack.c.b16 %v3192, %v3192
      %v3225 = vpack.c.b16 %v3193, %v3193
      %v3226 = vpack.c.b16 %v3194, %v3194
      %v3227 = vpack.c.b16 %v3195, %v3195
      %v3228 = vpack.c.b16 %v3196, %v3196
      %v3229 = vpack.c.b16 %v3197, %v3197
      %v3230 = vpack.c.b16 %v3198, %v3198
      %v3231 = vpack.c.b16 %v3199, %v3199
      %v3232 = vpack.c.b16 %v3200, %v3200
      %v3233 = vpack.c.b16 %v3201, %v3201
      %v3234 = vpack.c.b16 %v3202, %v3202
      %v3235 = vpack.c.b16 %v3203, %v3203
      %v3236 = vpack.c.b16 %v3204, %v3204
      %v3237 = vpack.c.b16 %v3205, %v3205
      %v3238 = vpack.c.b16 %v3206, %v3206
      %v3239 = vpack.c.b16 %v3207, %v3207
      %v3240 = vpack.c.b16 %v3208, %v3208
      %vm3273 = vcmask 60416
      %3274 = vst.msk [vmem:[%s281] sm:$0xf] %vm3273, %v3209
      %3275 = vst.msk [vmem:[%s281 + $0x4] sm:$0xf] %vm3273, %v3210
      %3276 = vst.msk [vmem:[%s281 + $0x8] sm:$0xf] %vm3273, %v3211
      %3277 = vst.msk [vmem:[%s281 + $0xc] sm:$0xf] %vm3273, %v3212
      %3278 = vst.msk [vmem:[%s281 + $0x10] sm:$0xf] %vm3273, %v3213
      %3279 = vst.msk [vmem:[%s281 + $0x14] sm:$0xf] %vm3273, %v3214
      %3280 = vst.msk [vmem:[%s281 + $0x18] sm:$0xf] %vm3273, %v3215
      %3281 = vst.msk [vmem:[%s281 + $0x1c] sm:$0xf] %vm3273, %v3216
      %3282 = vst.msk [vmem:[%s281 + $0x20] sm:$0xf] %vm3273, %v3217
      %3283 = vst.msk [vmem:[%s281 + $0x24] sm:$0xf] %vm3273, %v3218
      %3284 = vst.msk [vmem:[%s281 + $0x28] sm:$0xf] %vm3273, %v3219
      %3285 = vst.msk [vmem:[%s281 + $0x2c] sm:$0xf] %vm3273, %v3220
      %3286 = vst.msk [vmem:[%s281 + $0x30] sm:$0xf] %vm3273, %v3221
      %3287 = vst.msk [vmem:[%s281 + $0x34] sm:$0xf] %vm3273, %v3222
      %3288 = vst.msk [vmem:[%s281 + $0x38] sm:$0xf] %vm3273, %v3223
      %3289 = vst.msk [vmem:[%s281 + $0x3c] sm:$0xf] %vm3273, %v3224
      %3290 = vst.msk [vmem:[%s281 + $0x40] sm:$0xf] %vm3273, %v3225
      %3291 = vst.msk [vmem:[%s281 + $0x44] sm:$0xf] %vm3273, %v3226
      %3292 = vst.msk [vmem:[%s281 + $0x48] sm:$0xf] %vm3273, %v3227
      %3293 = vst.msk [vmem:[%s281 + $0x4c] sm:$0xf] %vm3273, %v3228
      %3294 = vst.msk [vmem:[%s281 + $0x50] sm:$0xf] %vm3273, %v3229
      %3295 = vst.msk [vmem:[%s281 + $0x54] sm:$0xf] %vm3273, %v3230
      %3296 = vst.msk [vmem:[%s281 + $0x58] sm:$0xf] %vm3273, %v3231
      %3297 = vst.msk [vmem:[%s281 + $0x5c] sm:$0xf] %vm3273, %v3232
      %3298 = vst.msk [vmem:[%s281 + $0x60] sm:$0xf] %vm3273, %v3233
      %3299 = vst.msk [vmem:[%s281 + $0x64] sm:$0xf] %vm3273, %v3234
      %3300 = vst.msk [vmem:[%s281 + $0x68] sm:$0xf] %vm3273, %v3235
      %3301 = vst.msk [vmem:[%s281 + $0x6c] sm:$0xf] %vm3273, %v3236
      %3302 = vst.msk [vmem:[%s281 + $0x70] sm:$0xf] %vm3273, %v3237
      %3303 = vst.msk [vmem:[%s281 + $0x74] sm:$0xf] %vm3273, %v3238
      %3304 = vst.msk [vmem:[%s281 + $0x78] sm:$0xf] %vm3273, %v3239
      %3305 = vst.msk [vmem:[%s281 + $0x7c] sm:$0xf] %vm3273, %v3240
      %s3306 = smul.u32 16, %s22
      %p3307 = scmp.lt.s32.totalorder %s20, 1
      %s3308 = scalar_select %p3307, %s20, 1
      %p3309 = scmp.lt.s32.totalorder %s3306, 15
      %s3310 = scalar_select %p3309, %s3306, 15
      %p3311 = scmp.lt.s32.totalorder %s21, 0
      %s3312 = scalar_select %p3311, %s21, 0
      %s3313 = smul.addr %s3310, 2
      %s3314 = sadd.s32 %s3312, %s3313
      %s3315 = smul.addr %s3308, 32
      %s3316 = sadd.s32 %s3314, %s3315
      %s3317 = smul.addr %s3316, 4
      %s3318 = scalar_lea.vmem %s4, %s3317
      // Predicated region
      $region37: #{tpu_custom_call.1} parent=35 // pred_check
        %p3319 = pneg %p160
      $region38: #{tpu_custom_call.1} parent=35 // pred_check_branch
        %3321 = sbr.rel (%p3319) target = $region40
      $region39: #{tpu_custom_call.1} parent=35 // pred_region
        %s3322 = smul.u32 16, %s22
      $region40: #{tpu_custom_call.1} parent=35 // pred_fallthru
        _
    $region36: #{tpu_custom_call.1} parent=5 // pred_fallthru
      _
    %p3323 = scmp.le.s32.totalorder 2, %s10
    // Predicated region
    $region41: #{tpu_custom_call.1} parent=5 // pred_check
      %p3324 = pneg %p3323
    $region42: #{tpu_custom_call.1} parent=5 // pred_check_branch
      %3326 = sbr.rel (%p3324) target = $region44
    $region43: #{tpu_custom_call.1} parent=5 // pred_region
      %s3327 = ssub.s32 %s10, 2
      // Predicated region
      $region45: #{tpu_custom_call.1} parent=43 // pred_check
        %p3328 = pneg %p166
      $region46: #{tpu_custom_call.1} parent=43 // pred_check_branch
        %3330 = sbr.rel (%p3328) target = $region48
      $region47: #{tpu_custom_call.1} parent=43 // pred_region
        %s3331 = smul.u32 16, %s25
        %p3332 = scmp.lt.s32.totalorder %s23, 1
        %s3333 = scalar_select %p3332, %s23, 1
        %p3334 = scmp.lt.s32.totalorder %s3331, 15
        %s3335 = scalar_select %p3334, %s3331, 15
        %p3336 = scmp.lt.s32.totalorder %s24, 0
        %s3337 = scalar_select %p3336, %s24, 0
        %s3338 = smul.addr %s3335, 2
        %s3339 = sadd.s32 %s3337, %s3338
        %s3340 = smul.addr %s3333, 32
        %s3341 = sadd.s32 %s3339, %s3340
        %s3342 = smul.addr %s3341, 4
        %s3343 = scalar_lea.vmem %s4, %s3342
      $region48: #{tpu_custom_call.1} parent=43 // pred_fallthru
        _
    $region44: #{tpu_custom_call.1} parent=5 // pred_fallthru
      _
  $region6: #{tpu_custom_call.1} parent=0 // loop_footer
    %s14 = sadd.s32 1, %s10
  $region7: #{tpu_custom_call.1} parent=0 // loop_footer_branch
    %9 = sbr.rel target = $region3
  $region8: #{tpu_custom_call.1} parent=0 // loop_exit
    _

</llo_original>
